<compile_context>
chip_gen: v5e
topology: v5e:2x2
jax: 0.10.0
libtpu: 0.0.40
codegen_flags: <defaults>
</compile_context>

<pallas_src>
import functools
import math

import numpy as np

import jax
import jax.numpy as jnp
from jax.experimental import pallas as pl
from jax.experimental.pallas import tpu as pltpu


# ---------------------------------------------------------------------------
# small helpers
# ---------------------------------------------------------------------------
def _round_up(n, m):
    return ((n + m - 1) // m) * m


def _pick_tile(n):
    for t in (512, 256, 128):
        if n % t == 0:
            return t
    return n


def _pad2(x, rows, cols):
    return jnp.pad(x, ((0, rows - x.shape[0]), (0, cols - x.shape[1])))


def _nbytes(shape, dtype):
    return math.prod(shape) * np.dtype(dtype).itemsize


def _vmem_limit(tiled, resident):
    """Scoped-VMEM request sized from the actual operand footprint.

    tiled / resident: lists of (block_shape, dtype).  Tiled blocks are double
    buffered by the Pallas pipeline; the 2x margin covers Mosaic temporaries on
    the (dst_tile, n_src) attention plane.  Capped at 64 MiB (valid on v7x).
    """
    need = 2 * sum(_nbytes(s, d) for s, d in tiled)
    need += sum(_nbytes(s, d) for s, d in resident)
    return int(min(64 << 20, max(2 * need + (16 << 20), 24 << 20)))


def _attn_compute_dtype():
    """bf16 attention plane on chips with bf16 VPU/EUP (v6e, v7x); f32 elsewhere."""
    try:
        kind = jax.devices()[0].device_kind.lower()
    except Exception:
        return jnp.float32
    if any(tag in kind for tag in ("v6", "v7", "7x")):
        return jnp.bfloat16
    return jnp.float32


# ---------------------------------------------------------------------------
# kernels
# ---------------------------------------------------------------------------
def _proj_kernel(x_ref, wl_ref, bl_ref, wp_ref, o_ref):
    """One row tile: h = relu(x @ wl + bl);  o = h @ wp (packed projection)."""
    f32, bf16 = jnp.float32, jnp.bfloat16
    h = jnp.dot(x_ref[...], wl_ref[...], preferred_element_type=f32) + bl_ref[...]
    h = jnp.maximum(h, 0.0).astype(bf16)
    o_ref[...] = jnp.dot(h, wp_ref[...], preferred_element_type=f32).astype(o_ref.dtype)


def _gat_tile(adj_a_ref, adj_b_ref, za_ref, zb_ref, asa_ref, asb_ref,
              dsc_ref, bias_ref, *, heads, head_dim, cdt):
    """Two dense-masked GAT relations for one destination-row tile.

    Returns the f32 (tile, heads*head_dim) destination features (bias added).
    Masks are recomputed from the adjacency value at each use (never kept live
    across layers), and the O(dst*src) attention plane runs in `cdt`
    (bf16 on v6e/v7x, f32 on v5e).
    """
    f32, bf16 = jnp.float32, jnp.bfloat16
    neg = jnp.asarray(-1e30, cdt)
    zero = jnp.asarray(0.0, cdt)
    adj_a = adj_a_ref[...].astype(cdt)                 # (Td, Na)
    adj_b = adj_b_ref[...].astype(cdt)                 # (Td, Nb)
    dsc = dsc_ref[...].astype(cdt)                     # (Td, 2*heads) a_dst columns

    def one_relation(adj, a_src_row, a_dst_col, z_ref, h):
        logits = a_dst_col + a_src_row                              # (Td, Nsrc)
        logits = jnp.where(logits > 0, logits, 0.2 * logits)        # LeakyReLU(0.2)
        mask = adj > zero                                           # recomputed per use
        masked = jnp.where(mask, logits, neg)
        mrow = jnp.max(masked, axis=-1, keepdims=True)
        e = jnp.where(mask, jnp.exp(masked - mrow), zero)
        denom = jnp.sum(e, axis=-1, keepdims=True).astype(f32)
        inv = pl.reciprocal(jnp.maximum(denom, 1e-20), approx=True).astype(cdt)
        p = (e * inv).astype(bf16)                                  # no-edge rows -> all zero
        z = z_ref[:, h * head_dim:(h + 1) * head_dim]               # (Nsrc, head_dim) bf16
        return jnp.dot(p, z, preferred_element_type=f32)            # (Td, head_dim)

    pieces = []
    for h in range(heads):                                          # tiny static unroll
        asa = asa_ref[h:h + 1, :].astype(cdt)                       # (1, Na)
        asb = asb_ref[h:h + 1, :].astype(cdt)                       # (1, Nb)
        msg = (one_relation(adj_a, asa, dsc[:, h:h + 1], za_ref, h)
               + one_relation(adj_b, asb, dsc[:, heads + h:heads + h + 1], zb_ref, h))
        pieces.append(msg)
    hval = pieces[0] if heads == 1 else jnp.concatenate(pieces, axis=-1)
    return hval + bias_ref[...]


def _gat_proj_kernel(adj_a_ref, adj_b_ref, za_ref, zb_ref, asa_ref, asb_ref,
                     dsc_ref, bias_ref, wnext_ref, o_ref, *, heads, head_dim, cdt):
    """conv1 GAT tile fused with the conv2 packed projection -> one lane-dense store."""
    h = _gat_tile(adj_a_ref, adj_b_ref, za_ref, zb_ref, asa_ref, asb_ref,
                  dsc_ref, bias_ref, heads=heads, head_dim=head_dim, cdt=cdt)
    o_ref[...] = jnp.dot(h.astype(jnp.bfloat16), wnext_ref[...],
                         preferred_element_type=jnp.float32).astype(o_ref.dtype)


def _gat_out_kernel(adj_a_ref, adj_b_ref, za_ref, zb_ref, asa_ref, asb_ref,
                    dsc_ref, bias_ref, o_ref, *, heads, head_dim, cdt):
    """conv2 GAT tile (heads=1) -> final lane-dense output store."""
    o_ref[...] = _gat_tile(adj_a_ref, adj_b_ref, za_ref, zb_ref, asa_ref, asb_ref,
                           dsc_ref, bias_ref, heads=heads, head_dim=head_dim,
                           cdt=cdt).astype(o_ref.dtype)


# ---------------------------------------------------------------------------
# pallas_call wrappers
# ---------------------------------------------------------------------------
def _run_proj(x, wl, bl, wp):
    n, fp = x.shape
    c = wp.shape[1]
    tr = _pick_tile(n)
    limit = _vmem_limit(
        tiled=[((tr, fp), x.dtype), ((tr, c), jnp.bfloat16)],
        resident=[(wl.shape, wl.dtype), (bl.shape, bl.dtype), (wp.shape, wp.dtype)])
    return pl.pallas_call(
        _proj_kernel,
        out_shape=jax.ShapeDtypeStruct((n, c), jnp.bfloat16),
        grid=(n // tr,),
        in_specs=[pl.BlockSpec((tr, fp), lambda i: (i, 0)),
                  pl.BlockSpec(wl.shape, lambda i: (0, 0)),
                  pl.BlockSpec(bl.shape, lambda i: (0, 0)),
                  pl.BlockSpec(wp.shape, lambda i: (0, 0))],
        out_specs=pl.BlockSpec((tr, c), lambda i: (i, 0)),
        compiler_params=pltpu.CompilerParams(
            dimension_semantics=("parallel",), vmem_limit_bytes=limit),
    )(x, wl, bl, wp)


def _run_gat(adj_a, adj_b, za, zb, asa, asb, dsc, bias, wnext, *,
             heads, head_dim, out_dtype, cdt):
    nd, na = adj_a.shape
    nb = adj_b.shape[1]
    td = _pick_tile(nd)
    fuse = wnext is not None
    out_w = wnext.shape[1] if fuse else bias.shape[1]

    tiled = [((td, na), adj_a.dtype), ((td, nb), adj_b.dtype),
             ((td, dsc.shape[1]), dsc.dtype), ((td, out_w), out_dtype)]
    resident = [(za.shape, za.dtype), (zb.shape, zb.dtype),
                (asa.shape, asa.dtype), (asb.shape, asb.dtype),
                (bias.shape, bias.dtype)]
    if fuse:
        resident.append((wnext.shape, wnext.dtype))
    limit = _vmem_limit(tiled, resident)

    in_specs = [pl.BlockSpec((td, na), lambda i: (i, 0)),
                pl.BlockSpec((td, nb), lambda i: (i, 0)),
                pl.BlockSpec(za.shape, lambda i: (0, 0)),
                pl.BlockSpec(zb.shape, lambda i: (0, 0)),
                pl.BlockSpec(asa.shape, lambda i: (0, 0)),
                pl.BlockSpec(asb.shape, lambda i: (0, 0)),
                pl.BlockSpec((td, dsc.shape[1]), lambda i: (i, 0)),
                pl.BlockSpec(bias.shape, lambda i: (0, 0))]
    args = [adj_a, adj_b, za, zb, asa, asb, dsc, bias]
    if fuse:
        in_specs.append(pl.BlockSpec(wnext.shape, lambda i: (0, 0)))
        args.append(wnext)
        kernel = functools.partial(_gat_proj_kernel, heads=heads,
                                   head_dim=head_dim, cdt=cdt)
    else:
        kernel = functools.partial(_gat_out_kernel, heads=heads,
                                   head_dim=head_dim, cdt=cdt)

    return pl.pallas_call(
        kernel,
        out_shape=jax.ShapeDtypeStruct((nd, out_w), out_dtype),
        grid=(nd // td,),
        in_specs=in_specs,
        out_specs=pl.BlockSpec((td, out_w), lambda i: (i, 0)),
        compiler_params=pltpu.CompilerParams(
            dimension_semantics=("parallel",), vmem_limit_bytes=limit),
    )(*args)


# ---------------------------------------------------------------------------
# weight packing (fold attention vectors, pad column groups to 128 lanes)
# ---------------------------------------------------------------------------
def _fold_att(w, att, heads, per_head):
    # w: (in, heads*per_head), att: (heads, per_head) -> (in, heads), col h = W_h @ att_h
    w3 = w.reshape(w.shape[0], heads, per_head)
    return jnp.einsum("ihk,hk->ih", w3, att)


def _prepare_operands(params, heads, hidden, out_size, f_pad):
    bf16, f32 = jnp.bfloat16, jnp.float32
    c1, c2 = params["conv1"], params["conv2"]
    hh = heads * hidden
    hhp = _round_up(hh, 128)
    outp = _round_up(out_size, 128)

    def pad_block(w, rows, cols):
        return jnp.pad(w, ((0, rows - w.shape[0]), (0, cols - w.shape[1])))

    # ---- conv1 packed weights ----------------------------------------------
    vs = {r: _fold_att(c1[r]["w"], c1[r]["att_src"], heads, hidden) for r in c1}
    vd = {r: _fold_att(c1[r]["w"], c1[r]["att_dst"], heads, hidden) for r in c1}

    # sentence-source pack: [W_sim | W_pro | W_has | a_src(sim,pro,has), a_dst(sim,in)]
    sc_s = jnp.concatenate([vs["similarity"], vs["pro_ant"], vs["has"],
                            vd["similarity"], vd["in"]], axis=1)
    w1s = jnp.concatenate([pad_block(c1["similarity"]["w"], f_pad, hhp),
                           pad_block(c1["pro_ant"]["w"], f_pad, hhp),
                           pad_block(c1["has"]["w"], f_pad, hhp),
                           pad_block(sc_s, f_pad, 128)], axis=1).astype(bf16)
    # word-source pack: [W_in | a_src(in), a_dst(pro_ant, has)]
    sc_w = jnp.concatenate([vs["in"], vd["pro_ant"], vd["has"]], axis=1)
    w1w = jnp.concatenate([pad_block(c1["in"]["w"], f_pad, hhp),
                           pad_block(sc_w, f_pad, 128)], axis=1).astype(bf16)
    b1s = (c1["similarity"]["bias"] + c1["in"]["bias"]).reshape(1, hh).astype(f32)
    b1w = (c1["pro_ant"]["bias"] + c1["has"]["bias"]).reshape(1, hh).astype(f32)

    # ---- conv2 packed weights (only relations with destination 'sentence') --
    vs2 = {r: _fold_att(c2[r]["w"], c2[r]["att_src"], 1, out_size) for r in ("similarity", "in")}
    vd2 = {r: _fold_att(c2[r]["w"], c2[r]["att_dst"], 1, out_size) for r in ("similarity", "in")}
    sc2_s = jnp.concatenate([vs2["similarity"], vd2["similarity"], vd2["in"]], axis=1)
    w2s = jnp.concatenate([pad_block(c2["similarity"]["w"], hh, outp),
                           pad_block(sc2_s, hh, 128)], axis=1).astype(bf16)
    w2w = jnp.concatenate([pad_block(c2["in"]["w"], hh, outp),
                           pad_block(vs2["in"], hh, 128)], axis=1).astype(bf16)
    b2 = pad_block((c2["similarity"]["bias"] + c2["in"]["bias"]).reshape(1, out_size),
                   1, outp).astype(f32)

    wls = pad_block(params["lin_sent"]["w"], f_pad, f_pad).astype(bf16)
    bls = pad_block(params["lin_sent"]["b"].reshape(1, -1), 1, f_pad).astype(f32)
    wlw = pad_block(params["lin_word"]["w"], f_pad, f_pad).astype(bf16)
    blw = pad_block(params["lin_word"]["b"].reshape(1, -1), 1, f_pad).astype(f32)

    return dict(wls=wls, bls=bls, wlw=wlw, blw=blw,
                w1s=w1s, w1w=w1w, b1s=b1s, b1w=b1w,
                w2s=w2s, w2w=w2w, b2=b2, hhp=hhp, outp=outp)


# ---------------------------------------------------------------------------
# forward
# ---------------------------------------------------------------------------
def rel_het_graph_forward(params, adjs, sentence_feat, word_feat,
                          *, hidden_size, out_size, num_heads):
    ns, f_in = sentence_feat.shape
    nw, f_in_w = word_feat.shape
    assert f_in == f_in_w, "module semantics require equal sentence/word input dims"
    heads, hidden = num_heads, hidden_size
    hh = heads * hidden

    # Node counts are padded to 128: node axes appear as the lane (source) axis
    # of the adjacency / attention planes and as MXU contraction dims.
    # TODO(synk): padded destination rows within the last tile are still fully
    # processed; gate them with a block-nonzero table once the sparse path lands.
    ns_p = _round_up(ns, 128)
    nw_p = _round_up(nw, 128)
    f_p = _round_up(f_in, 128)

    ops = _prepare_operands(params, heads, hidden, out_size, f_p)
    hhp, outp = ops["hhp"], ops["outp"]
    cdt = _attn_compute_dtype()

    bf16, f32 = jnp.bfloat16, jnp.float32
    xs = _pad2(sentence_feat, ns_p, f_p).astype(bf16)
    xw = _pad2(word_feat, nw_p, f_p).astype(bf16)
    adj_sim = _pad2(adjs["similarity"], ns_p, ns_p).astype(bf16)   # dst sent, src sent
    adj_pro = _pad2(adjs["pro_ant"], nw_p, ns_p).astype(bf16)      # dst word, src sent
    adj_in = _pad2(adjs["in"], ns_p, nw_p).astype(bf16)            # dst sent, src word
    adj_has = _pad2(adjs["has"], nw_p, ns_p).astype(bf16)          # dst word, src sent

    # ---- stage 1: input linears + relu + conv1 packed projections ----------
    ps = _run_proj(xs, ops["wls"], ops["bls"], ops["w1s"])   # (ns_p, 3*hhp+128) bf16
    pw = _run_proj(xw, ops["wlw"], ops["blw"], ops["w1w"])   # (nw_p, hhp+128)   bf16

    s1s = 3 * hhp                    # score-column base for sentence sources
    s1w = hhp                        # score-column base for word sources
    z_sim = ps[:, 0:hh]
    z_pro = ps[:, hhp:hhp + hh]
    z_has = ps[:, 2 * hhp:2 * hhp + hh]
    z_in = pw[:, 0:hh]
    asT_sim = ps[:, s1s + 0 * heads:s1s + 1 * heads].T.astype(f32)   # (heads, ns_p)
    asT_pro = ps[:, s1s + 1 * heads:s1s + 2 * heads].T.astype(f32)
    asT_has = ps[:, s1s + 2 * heads:s1s + 3 * heads].T.astype(f32)
    asT_in = pw[:, s1w + 0 * heads:s1w + 1 * heads].T.astype(f32)    # (heads, nw_p)
    dsc1s = ps[:, s1s + 3 * heads:s1s + 5 * heads].astype(f32)       # [a_dst sim | a_dst in]
    dsc1w = pw[:, s1w + 1 * heads:s1w + 3 * heads].astype(f32)       # [a_dst pro | a_dst has]

    # ---- stage 2: conv1 GAT per destination type, fused with the conv2 packed
    #      projection of the freshly computed tile (single lane-dense store).
    ps2 = _run_gat(adj_sim, adj_in, z_sim, z_in, asT_sim, asT_in, dsc1s,
                   ops["b1s"], ops["w2s"], heads=heads, head_dim=hidden,
                   out_dtype=bf16, cdt=cdt)                          # (ns_p, outp+128)
    pw2 = _run_gat(adj_pro, adj_has, z_pro, z_has, asT_pro, asT_has, dsc1w,
                   ops["b1w"], ops["w2w"], heads=heads, head_dim=hidden,
                   out_dtype=bf16, cdt=cdt)                          # (nw_p, outp+128)

    s2 = outp
    z2_sim = ps2[:, 0:outp]
    z2_in = pw2[:, 0:outp]
    asT2_sim = ps2[:, s2:s2 + 1].T.astype(f32)        # (1, ns_p)
    asT2_in = pw2[:, s2:s2 + 1].T.astype(f32)         # (1, nw_p)
    dsc2s = ps2[:, s2 + 1:s2 + 3].astype(f32)         # [a_dst sim | a_dst in]

    # ---- stage 3: conv2 GAT, destination 'sentence' only (module returns it)
    out_p = _run_gat(adj_sim, adj_in, z2_sim, z2_in, asT2_sim, asT2_in, dsc2s,
                     ops["b2"], None, heads=1, head_dim=outp,
                     out_dtype=f32, cdt=cdt)                          # (ns_p, outp)

    return out_p[:ns, :out_size]


# ---------------------------------------------------------------------------
# pure-JAX reference (dense-masked GATConv, eval-mode dropout = identity)
# ---------------------------------------------------------------------------
def _ref_gatconv(h_src, h_dst, adj, rel, heads, per_head):
    w, att_src, att_dst, bias = rel["w"], rel["att_src"], rel["att_dst"], rel["bias"]
    z_src = (h_src @ w).reshape(h_src.shape[0], heads, per_head)
    z_dst = (h_dst @ w).reshape(h_dst.shape[0], heads, per_head)
    a_src = jnp.einsum("nhk,hk->nh", z_src, att_src)
    a_dst = jnp.einsum("nhk,hk->nh", z_dst, att_dst)
    logits = a_dst[:, None, :] + a_src[None, :, :]
    logits = jnp.where(logits > 0, logits, 0.2 * logits)
    mask = (adj > 0)[:, :, None]
    masked = jnp.where(mask, logits, -1e30)
    m = jnp.max(masked, axis=1, keepdims=True)
    e = jnp.where(mask, jnp.exp(masked - m), 0.0)
    p = e / jnp.maximum(jnp.sum(e, axis=1, keepdims=True), 1e-20)
    msg = jnp.einsum("dsh,shk->dhk", p, z_src)
    return msg.reshape(adj.shape[0], heads * per_head) + bias


def _ref_forward(params, adjs, xs, xw, hidden, out_size, heads):
    hs = jax.nn.relu(xs @ params["lin_sent"]["w"] + params["lin_sent"]["b"])
    hw = jax.nn.relu(xw @ params["lin_word"]["w"] + params["lin_word"]["b"])
    c1 = params["conv1"]
    h_sent = (_ref_gatconv(hs, hs, adjs["similarity"], c1["similarity"], heads, hidden)
              + _ref_gatconv(hw, hs, adjs["in"], c1["in"], heads, hidden))
    h_word = (_ref_gatconv(hs, hw, adjs["pro_ant"], c1["pro_ant"], heads, hidden)
              + _ref_gatconv(hs, hw, adjs["has"], c1["has"], heads, hidden))
    c2 = params["conv2"]
    return (_ref_gatconv(h_sent, h_sent, adjs["similarity"], c2["similarity"], 1, out_size)
            + _ref_gatconv(h_word, h_sent, adjs["in"], c2["in"], 1, out_size))


# ---------------------------------------------------------------------------
# deterministic parameter / graph construction
# ---------------------------------------------------------------------------
def init_gat_params(key, in_dim, out_dim, heads):
    k1, k2, k3 = jax.random.split(key, 3)
    return {
        "w": 0.1 * jax.random.normal(k1, (in_dim, heads * out_dim), jnp.float32),
        "att_src": 0.1 * jax.random.normal(k2, (heads, out_dim), jnp.float32),
        "att_dst": 0.1 * jax.random.normal(k3, (heads, out_dim), jnp.float32),
        "bias": jnp.zeros((heads * out_dim,), jnp.float32),
    }


def init_params(key, sent_in, word_in, hidden, out_size, heads):
    keys = jax.random.split(key, 12)
    return {
        "lin_sent": {"w": 0.1 * jax.random.normal(keys[0], (sent_in, sent_in), jnp.float32),
                     "b": jnp.zeros((sent_in,), jnp.float32)},
        "lin_word": {"w": 0.1 * jax.random.normal(keys[1], (word_in, word_in), jnp.float32),
                     "b": jnp.zeros((word_in,), jnp.float32)},
        "conv1": {
            "similarity": init_gat_params(keys[2], sent_in, hidden, heads),
            "pro_ant":    init_gat_params(keys[3], sent_in, hidden, heads),
            "in":         init_gat_params(keys[4], word_in, hidden, heads),
            "has":        init_gat_params(keys[5], word_in, hidden, heads),
        },
        "conv2": {
            "similarity": init_gat_params(keys[6], hidden * heads, out_size, 1),
            "pro_ant":    init_gat_params(keys[7], hidden * heads, out_size, 1),
            "in":         init_gat_params(keys[8], hidden * heads, out_size, 1),
            "has":        init_gat_params(keys[9], hidden * heads, out_size, 1),
        },
    }


def dense_adj(n_dst, n_src, edges):
    adj = jnp.zeros((n_dst, n_src), jnp.float32)
    if edges:
        dst = jnp.array([d for d, _ in edges], jnp.int32)
        src = jnp.array([s for _, s in edges], jnp.int32)
        adj = adj.at[dst, src].set(1.0)
    return adj


if __name__ == "__main__":
    SENT_IN = 128   # sentence_in_size (small stand-in for 768)
    WORD_IN = 128   # word_in_size
    HIDDEN = 64
    HEADS = 2
    OUT = 128
    NS, NW = 16, 16  # number of sentence / word nodes

    key = jax.random.PRNGKey(0)
    k_params, k_sent, k_word = jax.random.split(key, 3)

    params = init_params(k_params, SENT_IN, WORD_IN, HIDDEN, OUT, HEADS)
    sentence_feat = jax.random.normal(k_sent, (NS, SENT_IN), jnp.float32)
    word_feat = jax.random.normal(k_word, (NW, WORD_IN), jnp.float32)

    # Deterministic small heterogeneous graph (edge_index_dict -> dense masks).
    adjs = {
        # ('sentence','similarity','sentence'): adj[dst_sent, src_sent]
        "similarity": dense_adj(NS, NS, [((i + 1) % NS, i) for i in range(NS)]
                                + [((i + 3) % NS, i) for i in range(NS)]),
        # ('sentence','pro_ant','word'): adj[dst_word, src_sent]
        "pro_ant": dense_adj(NW, NS, [(i % NW, i) for i in range(NS)]
                             + [((i + 5) % NW, i) for i in range(NS)]),
        # ('word','in','sentence'): adj[dst_sent, src_word]
        "in": dense_adj(NS, NW, [(j % NS, j) for j in range(NW)]
                        + [((j + 7) % NS, j) for j in range(NW)]),
        # ('sentence','has','word'): adj[dst_word, src_sent]
        "has": dense_adj(NW, NS, [((2 * i) % NW, i) for i in range(NS)]),
    }

    # TODO(synk): feat_drop / attn_drop treated as identity (eval-mode semantics).
    fwd = jax.jit(functools.partial(rel_het_graph_forward,
                                    hidden_size=HIDDEN, out_size=OUT, num_heads=HEADS))
    out = jax.block_until_ready(fwd(params, adjs, sentence_feat, word_feat))

    assert out.shape == (NS, OUT), out.shape
    assert bool(jnp.all(jnp.isfinite(out)))

    # Loose sanity check against a pure-f32 reference (the kernel uses bf16 MXU
    # operands, a bf16 attention plane on v6e/v7x and an approximate reciprocal).
    ref = _ref_forward(params, adjs, sentence_feat, word_feat, HIDDEN, OUT, HEADS)
    scale = float(jnp.max(jnp.abs(ref)))
    err = float(jnp.max(jnp.abs(out - ref)))
    assert err <= 0.2 * scale + 0.2, (err, scale)

    print("KERNEL_OK")
</pallas_src>

<mosaic_0001>
module attributes {stable_mosaic.version = 11 : i64} {
  func.func @_proj_kernel(%arg0: i32, %arg1: memref<128x128xbf16, #tpu.memory_space<vmem>>, %arg2: memref<128x128xbf16, #tpu.memory_space<vmem>>, %arg3: memref<1x128xf32, #tpu.memory_space<vmem>>, %arg4: memref<128x512xbf16, #tpu.memory_space<vmem>>, %arg5: memref<128x512xbf16, #tpu.memory_space<vmem>>) attributes {dimension_semantics = [#tpu.dimension_semantics<parallel>], iteration_bounds = array<i64: 1>, scalar_prefetch = 0 : i64, scratch_operands = 0 : i64, tpu.core_type = #tpu.core_type<tc>, window_params = [{transform_indices = @transform_0, window_bounds = array<i64: 128, 128>}, {pipeline_mode = #tpu.pipeline_mode<synchronous>, transform_indices = @transform_1, window_bounds = array<i64: 128, 128>}, {pipeline_mode = #tpu.pipeline_mode<synchronous>, transform_indices = @transform_2, window_bounds = array<i64: 1, 128>}, {pipeline_mode = #tpu.pipeline_mode<synchronous>, transform_indices = @transform_3, window_bounds = array<i64: 128, 512>}, {transform_indices = @transform_4, window_bounds = array<i64: 128, 512>}]} {
    %c0 = arith.constant 0 : index
    %c0_0 = arith.constant 0 : index
    %0 = vector.load %arg1[%c0, %c0_0] : memref<128x128xbf16, #tpu.memory_space<vmem>>, vector<128x128xbf16>
    %c0_1 = arith.constant 0 : index
    %c0_2 = arith.constant 0 : index
    %1 = vector.load %arg2[%c0_1, %c0_2] : memref<128x128xbf16, #tpu.memory_space<vmem>>, vector<128x128xbf16>
    %cst = arith.constant dense<0.000000e+00> : vector<128x128xf32>
    %2 = tpu.matmul %0, %1, %cst {dimension_numbers = #tpu.dot_dimension_numbers<[1], [0], [0], [1], [0, 0, 1, 1], [], []>} : vector<128x128xbf16>, vector<128x128xbf16>, vector<128x128xf32> -> vector<128x128xf32>
    %c0_3 = arith.constant 0 : index
    %c0_4 = arith.constant 0 : index
    %3 = vector.load %arg3[%c0_3, %c0_4] : memref<1x128xf32, #tpu.memory_space<vmem>>, vector<1x128xf32>
    %4 = vector.broadcast %3 : vector<1x128xf32> to vector<128x128xf32>
    %5 = arith.addf %2, %4 : vector<128x128xf32>
    %cst_5 = arith.constant 0.000000e+00 : f32
    %6 = vector.broadcast %cst_5 : f32 to vector<128x128xf32>
    %7 = arith.maximumf %5, %6 : vector<128x128xf32>
    %8 = arith.truncf %7 : vector<128x128xf32> to vector<128x128xbf16>
    %c0_6 = arith.constant 0 : index
    %c0_7 = arith.constant 0 : index
    %9 = vector.load %arg4[%c0_6, %c0_7] : memref<128x512xbf16, #tpu.memory_space<vmem>>, vector<128x512xbf16>
    %cst_8 = arith.constant dense<0.000000e+00> : vector<128x512xf32>
    %10 = tpu.matmul %8, %9, %cst_8 {dimension_numbers = #tpu.dot_dimension_numbers<[1], [0], [0], [1], [0, 0, 1, 1], [], []>} : vector<128x128xbf16>, vector<128x512xbf16>, vector<128x512xf32> -> vector<128x512xf32>
    %11 = arith.truncf %10 : vector<128x512xf32> to vector<128x512xbf16>
    %c0_9 = arith.constant 0 : index
    %c0_10 = arith.constant 0 : index
    %12 = vector.load %arg5[%c0_9, %c0_10] : memref<128x512xbf16, #tpu.memory_space<vmem>>, vector<128x512xbf16>
    tpu.vector_store %arg5[%c0_9, %c0_10], %11 {strides = array<i32>} : memref<128x512xbf16, #tpu.memory_space<vmem>>, vector<128x512xbf16>,
    return
  }
  func.func @transform_0(%arg0: i32) -> (i32, i32) {
    %c0_i32 = arith.constant 0 : i32
    %c0_i32_0 = arith.constant 0 : i32
    return %arg0, %c0_i32 : i32, i32
  }
  func.func @transform_1(%arg0: i32) -> (i32, i32) {
    %c0_i32 = arith.constant 0 : i32
    %c0_i32_0 = arith.constant 0 : i32
    %c0_i32_1 = arith.constant 0 : i32
    return %c0_i32, %c0_i32_0 : i32, i32
  }
  func.func @transform_2(%arg0: i32) -> (i32, i32) {
    %c0_i32 = arith.constant 0 : i32
    %c0_i32_0 = arith.constant 0 : i32
    %c0_i32_1 = arith.constant 0 : i32
    return %c0_i32, %c0_i32_0 : i32, i32
  }
  func.func @transform_3(%arg0: i32) -> (i32, i32) {
    %c0_i32 = arith.constant 0 : i32
    %c0_i32_0 = arith.constant 0 : i32
    %c0_i32_1 = arith.constant 0 : i32
    return %c0_i32, %c0_i32_0 : i32, i32
  }
  func.func @transform_4(%arg0: i32) -> (i32, i32) {
    %c0_i32 = arith.constant 0 : i32
    %c0_i32_0 = arith.constant 0 : i32
    return %arg0, %c0_i32 : i32, i32
  }
}

module attributes {stable_mosaic.version = 11 : i64} {
  func.func @_proj_kernel(%arg0: i32, %arg1: memref<128x128xbf16, #tpu.memory_space<vmem>>, %arg2: memref<128x128xbf16, #tpu.memory_space<vmem>>, %arg3: memref<1x128xf32, #tpu.memory_space<vmem>>, %arg4: memref<128x256xbf16, #tpu.memory_space<vmem>>, %arg5: memref<128x256xbf16, #tpu.memory_space<vmem>>) attributes {dimension_semantics = [#tpu.dimension_semantics<parallel>], iteration_bounds = array<i64: 1>, scalar_prefetch = 0 : i64, scratch_operands = 0 : i64, tpu.core_type = #tpu.core_type<tc>, window_params = [{transform_indices = @transform_0, window_bounds = array<i64: 128, 128>}, {pipeline_mode = #tpu.pipeline_mode<synchronous>, transform_indices = @transform_1, window_bounds = array<i64: 128, 128>}, {pipeline_mode = #tpu.pipeline_mode<synchronous>, transform_indices = @transform_2, window_bounds = array<i64: 1, 128>}, {pipeline_mode = #tpu.pipeline_mode<synchronous>, transform_indices = @transform_3, window_bounds = array<i64: 128, 256>}, {transform_indices = @transform_4, window_bounds = array<i64: 128, 256>}]} {
    %c0 = arith.constant 0 : index
    %c0_0 = arith.constant 0 : index
    %0 = vector.load %arg1[%c0, %c0_0] : memref<128x128xbf16, #tpu.memory_space<vmem>>, vector<128x128xbf16>
    %c0_1 = arith.constant 0 : index
    %c0_2 = arith.constant 0 : index
    %1 = vector.load %arg2[%c0_1, %c0_2] : memref<128x128xbf16, #tpu.memory_space<vmem>>, vector<128x128xbf16>
    %cst = arith.constant dense<0.000000e+00> : vector<128x128xf32>
    %2 = tpu.matmul %0, %1, %cst {dimension_numbers = #tpu.dot_dimension_numbers<[1], [0], [0], [1], [0, 0, 1, 1], [], []>} : vector<128x128xbf16>, vector<128x128xbf16>, vector<128x128xf32> -> vector<128x128xf32>
    %c0_3 = arith.constant 0 : index
    %c0_4 = arith.constant 0 : index
    %3 = vector.load %arg3[%c0_3, %c0_4] : memref<1x128xf32, #tpu.memory_space<vmem>>, vector<1x128xf32>
    %4 = vector.broadcast %3 : vector<1x128xf32> to vector<128x128xf32>
    %5 = arith.addf %2, %4 : vector<128x128xf32>
    %cst_5 = arith.constant 0.000000e+00 : f32
    %6 = vector.broadcast %cst_5 : f32 to vector<128x128xf32>
    %7 = arith.maximumf %5, %6 : vector<128x128xf32>
    %8 = arith.truncf %7 : vector<128x128xf32> to vector<128x128xbf16>
    %c0_6 = arith.constant 0 : index
    %c0_7 = arith.constant 0 : index
    %9 = vector.load %arg4[%c0_6, %c0_7] : memref<128x256xbf16, #tpu.memory_space<vmem>>, vector<128x256xbf16>
    %cst_8 = arith.constant dense<0.000000e+00> : vector<128x256xf32>
    %10 = tpu.matmul %8, %9, %cst_8 {dimension_numbers = #tpu.dot_dimension_numbers<[1], [0], [0], [1], [0, 0, 1, 1], [], []>} : vector<128x128xbf16>, vector<128x256xbf16>, vector<128x256xf32> -> vector<128x256xf32>
    %11 = arith.truncf %10 : vector<128x256xf32> to vector<128x256xbf16>
    %c0_9 = arith.constant 0 : index
    %c0_10 = arith.constant 0 : index
    %12 = vector.load %arg5[%c0_9, %c0_10] : memref<128x256xbf16, #tpu.memory_space<vmem>>, vector<128x256xbf16>
    tpu.vector_store %arg5[%c0_9, %c0_10], %11 {strides = array<i32>} : memref<128x256xbf16, #tpu.memory_space<vmem>>, vector<128x256xbf16>,
    return
  }
  func.func @transform_0(%arg0: i32) -> (i32, i32) {
    %c0_i32 = arith.constant 0 : i32
    %c0_i32_0 = arith.constant 0 : i32
    return %arg0, %c0_i32 : i32, i32
  }
  func.func @transform_1(%arg0: i32) -> (i32, i32) {
    %c0_i32 = arith.constant 0 : i32
    %c0_i32_0 = arith.constant 0 : i32
    %c0_i32_1 = arith.constant 0 : i32
    return %c0_i32, %c0_i32_0 : i32, i32
  }
  func.func @transform_2(%arg0: i32) -> (i32, i32) {
    %c0_i32 = arith.constant 0 : i32
    %c0_i32_0 = arith.constant 0 : i32
    %c0_i32_1 = arith.constant 0 : i32
    return %c0_i32, %c0_i32_0 : i32, i32
  }
  func.func @transform_3(%arg0: i32) -> (i32, i32) {
    %c0_i32 = arith.constant 0 : i32
    %c0_i32_0 = arith.constant 0 : i32
    %c0_i32_1 = arith.constant 0 : i32
    return %c0_i32, %c0_i32_0 : i32, i32
  }
  func.func @transform_4(%arg0: i32) -> (i32, i32) {
    %c0_i32 = arith.constant 0 : i32
    %c0_i32_0 = arith.constant 0 : i32
    return %arg0, %c0_i32 : i32, i32
  }
}

module attributes {stable_mosaic.version = 11 : i64} {
  func.func @_gat_proj_kernel(%arg0: i32, %arg1: memref<128x128xbf16, #tpu.memory_space<vmem>>, %arg2: memref<128x128xbf16, #tpu.memory_space<vmem>>, %arg3: memref<128x128xbf16, #tpu.memory_space<vmem>>, %arg4: memref<128x128xbf16, #tpu.memory_space<vmem>>, %arg5: memref<2x128xf32, #tpu.memory_space<vmem>>, %arg6: memref<2x128xf32, #tpu.memory_space<vmem>>, %arg7: memref<128x4xf32, #tpu.memory_space<vmem>>, %arg8: memref<1x128xf32, #tpu.memory_space<vmem>>, %arg9: memref<128x256xbf16, #tpu.memory_space<vmem>>, %arg10: memref<128x256xbf16, #tpu.memory_space<vmem>>) attributes {dimension_semantics = [#tpu.dimension_semantics<parallel>], iteration_bounds = array<i64: 1>, scalar_prefetch = 0 : i64, scratch_operands = 0 : i64, tpu.core_type = #tpu.core_type<tc>, window_params = [{transform_indices = @transform_0, window_bounds = array<i64: 128, 128>}, {transform_indices = @transform_1, window_bounds = array<i64: 128, 128>}, {pipeline_mode = #tpu.pipeline_mode<synchronous>, transform_indices = @transform_2, window_bounds = array<i64: 128, 128>}, {pipeline_mode = #tpu.pipeline_mode<synchronous>, transform_indices = @transform_3, window_bounds = array<i64: 128, 128>}, {pipeline_mode = #tpu.pipeline_mode<synchronous>, transform_indices = @transform_4, window_bounds = array<i64: 2, 128>}, {pipeline_mode = #tpu.pipeline_mode<synchronous>, transform_indices = @transform_5, window_bounds = array<i64: 2, 128>}, {transform_indices = @transform_6, window_bounds = array<i64: 128, 4>}, {pipeline_mode = #tpu.pipeline_mode<synchronous>, transform_indices = @transform_7, window_bounds = array<i64: 1, 128>}, {pipeline_mode = #tpu.pipeline_mode<synchronous>, transform_indices = @transform_8, window_bounds = array<i64: 128, 256>}, {transform_indices = @transform_9, window_bounds = array<i64: 128, 256>}]} {
    %c0 = arith.constant 0 : index
    %c0_0 = arith.constant 0 : index
    %0 = vector.load %arg1[%c0, %c0_0] : memref<128x128xbf16, #tpu.memory_space<vmem>>, vector<128x128xbf16>
    %1 = arith.extf %0 : vector<128x128xbf16> to vector<128x128xf32>
    %c0_1 = arith.constant 0 : index
    %c0_2 = arith.constant 0 : index
    %2 = vector.load %arg2[%c0_1, %c0_2] : memref<128x128xbf16, #tpu.memory_space<vmem>>, vector<128x128xbf16>
    %3 = arith.extf %2 : vector<128x128xbf16> to vector<128x128xf32>
    %c0_3 = arith.constant 0 : index
    %c0_4 = arith.constant 0 : index
    %4 = vector.load %arg7[%c0_3, %c0_4] : memref<128x4xf32, #tpu.memory_space<vmem>>, vector<128x4xf32>
    %c0_5 = arith.constant 0 : index
    %c0_6 = arith.constant 0 : index
    %5 = vector.load %arg5[%c0_5, %c0_6] : memref<2x128xf32, #tpu.memory_space<vmem>>, vector<1x128xf32>
    %c0_7 = arith.constant 0 : index
    %c0_8 = arith.constant 0 : index
    %6 = vector.load %arg6[%c0_7, %c0_8] : memref<2x128xf32, #tpu.memory_space<vmem>>, vector<1x128xf32>
    %7 = vector.extract_strided_slice %4 {offsets = [0, 0], sizes = [128, 1], strides = [1, 1]} : vector<128x4xf32> to vector<128x1xf32>
    %8 = vector.broadcast %7 : vector<128x1xf32> to vector<128x128xf32>
    %9 = vector.broadcast %5 : vector<1x128xf32> to vector<128x128xf32>
    %10 = arith.addf %8, %9 : vector<128x128xf32>
    %cst = arith.constant 0.000000e+00 : f32
    %11 = vector.broadcast %cst : f32 to vector<128x128xf32>
    %12 = arith.cmpf ogt, %10, %11 : vector<128x128xf32>
    %cst_9 = arith.constant 2.000000e-01 : f32
    %13 = vector.broadcast %cst_9 : f32 to vector<128x128xf32>
    %14 = arith.mulf %13, %10 : vector<128x128xf32>
    %15 = arith.select %12, %10, %14 : vector<128x128xi1>, vector<128x128xf32>
    %cst_10 = arith.constant 0.000000e+00 : f32
    %16 = vector.broadcast %cst_10 : f32 to vector<128x128xf32>
    %17 = arith.cmpf ogt, %1, %16 : vector<128x128xf32>
    %cst_11 = arith.constant -1.000000e+30 : f32
    %18 = vector.broadcast %cst_11 : f32 to vector<128x128xf32>
    %19 = arith.select %17, %15, %18 : vector<128x128xi1>, vector<128x128xf32>
    %cst_12 = arith.constant dense<0xFF800000> : vector<128xf32>
    %20 = vector.multi_reduction <maximumf>, %19, %cst_12 [1] : vector<128x128xf32> to vector<128xf32>
    %21 = vector.shape_cast %20 : vector<128xf32> to vector<128x1xf32>
    %22 = vector.broadcast %21 : vector<128x1xf32> to vector<128x128xf32>
    %23 = arith.subf %19, %22 : vector<128x128xf32>
    %24 = math.exp %23 : vector<128x128xf32>
    %cst_13 = arith.constant 0.000000e+00 : f32
    %25 = vector.broadcast %cst_13 : f32 to vector<128x128xf32>
    %26 = arith.select %17, %24, %25 : vector<128x128xi1>, vector<128x128xf32>
    %cst_14 = arith.constant dense<0.000000e+00> : vector<128xf32>
    %27 = vector.multi_reduction <add>, %26, %cst_14 [1] : vector<128x128xf32> to vector<128xf32>
    %28 = vector.shape_cast %27 : vector<128xf32> to vector<128x1xf32>
    %cst_15 = arith.constant 9.99999968E-21 : f32
    %29 = vector.broadcast %cst_15 : f32 to vector<128x1xf32>
    %30 = arith.maximumf %28, %29 : vector<128x1xf32>
    %31 = tpu.reciprocal %30 {approx = true} : vector<128x1xf32> -> vector<128x1xf32>
    %32 = vector.broadcast %31 : vector<128x1xf32> to vector<128x128xf32>
    %33 = arith.mulf %26, %32 : vector<128x128xf32>
    %34 = arith.truncf %33 : vector<128x128xf32> to vector<128x128xbf16>
    %c0_16 = arith.constant 0 : index
    %c0_17 = arith.constant 0 : index
    %35 = vector.load %arg3[%c0_16, %c0_17] : memref<128x128xbf16, #tpu.memory_space<vmem>>, vector<128x64xbf16>
    %cst_18 = arith.constant dense<0.000000e+00> : vector<128x64xf32>
    %36 = tpu.matmul %34, %35, %cst_18 {dimension_numbers = #tpu.dot_dimension_numbers<[1], [0], [0], [1], [0, 0, 1, 1], [], []>} : vector<128x128xbf16>, vector<128x64xbf16>, vector<128x64xf32> -> vector<128x64xf32>
    %37 = vector.extract_strided_slice %4 {offsets = [0, 2], sizes = [128, 1], strides = [1, 1]} : vector<128x4xf32> to vector<128x1xf32>
    %38 = vector.broadcast %37 : vector<128x1xf32> to vector<128x128xf32>
    %39 = vector.broadcast %6 : vector<1x128xf32> to vector<128x128xf32>
    %40 = arith.addf %38, %39 : vector<128x128xf32>
    %cst_19 = arith.constant 0.000000e+00 : f32
    %41 = vector.broadcast %cst_19 : f32 to vector<128x128xf32>
    %42 = arith.cmpf ogt, %40, %41 : vector<128x128xf32>
    %cst_20 = arith.constant 2.000000e-01 : f32
    %43 = vector.broadcast %cst_20 : f32 to vector<128x128xf32>
    %44 = arith.mulf %43, %40 : vector<128x128xf32>
    %45 = arith.select %42, %40, %44 : vector<128x128xi1>, vector<128x128xf32>
    %cst_21 = arith.constant 0.000000e+00 : f32
    %46 = vector.broadcast %cst_21 : f32 to vector<128x128xf32>
    %47 = arith.cmpf ogt, %3, %46 : vector<128x128xf32>
    %cst_22 = arith.constant -1.000000e+30 : f32
    %48 = vector.broadcast %cst_22 : f32 to vector<128x128xf32>
    %49 = arith.select %47, %45, %48 : vector<128x128xi1>, vector<128x128xf32>
    %cst_23 = arith.constant dense<0xFF800000> : vector<128xf32>
    %50 = vector.multi_reduction <maximumf>, %49, %cst_23 [1] : vector<128x128xf32> to vector<128xf32>
    %51 = vector.shape_cast %50 : vector<128xf32> to vector<128x1xf32>
    %52 = vector.broadcast %51 : vector<128x1xf32> to vector<128x128xf32>
    %53 = arith.subf %49, %52 : vector<128x128xf32>
    %54 = math.exp %53 : vector<128x128xf32>
    %cst_24 = arith.constant 0.000000e+00 : f32
    %55 = vector.broadcast %cst_24 : f32 to vector<128x128xf32>
    %56 = arith.select %47, %54, %55 : vector<128x128xi1>, vector<128x128xf32>
    %cst_25 = arith.constant dense<0.000000e+00> : vector<128xf32>
    %57 = vector.multi_reduction <add>, %56, %cst_25 [1] : vector<128x128xf32> to vector<128xf32>
    %58 = vector.shape_cast %57 : vector<128xf32> to vector<128x1xf32>
    %cst_26 = arith.constant 9.99999968E-21 : f32
    %59 = vector.broadcast %cst_26 : f32 to vector<128x1xf32>
    %60 = arith.maximumf %58, %59 : vector<128x1xf32>
    %61 = tpu.reciprocal %60 {approx = true} : vector<128x1xf32> -> vector<128x1xf32>
    %62 = vector.broadcast %61 : vector<128x1xf32> to vector<128x128xf32>
    %63 = arith.mulf %56, %62 : vector<128x128xf32>
    %64 = arith.truncf %63 : vector<128x128xf32> to vector<128x128xbf16>
    %c0_27 = arith.constant 0 : index
    %c0_28 = arith.constant 0 : index
    %65 = vector.load %arg4[%c0_27, %c0_28] : memref<128x128xbf16, #tpu.memory_space<vmem>>, vector<128x64xbf16>
    %cst_29 = arith.constant dense<0.000000e+00> : vector<128x64xf32>
    %66 = tpu.matmul %64, %65, %cst_29 {dimension_numbers = #tpu.dot_dimension_numbers<[1], [0], [0], [1], [0, 0, 1, 1], [], []>} : vector<128x128xbf16>, vector<128x64xbf16>, vector<128x64xf32> -> vector<128x64xf32>
    %67 = arith.addf %36, %66 : vector<128x64xf32>
    %c1 = arith.constant 1 : index
    %c0_30 = arith.constant 0 : index
    %68 = vector.load %arg5[%c1, %c0_30] : memref<2x128xf32, #tpu.memory_space<vmem>>, vector<1x128xf32>
    %c1_31 = arith.constant 1 : index
    %c0_32 = arith.constant 0 : index
    %69 = vector.load %arg6[%c1_31, %c0_32] : memref<2x128xf32, #tpu.memory_space<vmem>>, vector<1x128xf32>
    %70 = vector.extract_strided_slice %4 {offsets = [0, 1], sizes = [128, 1], strides = [1, 1]} : vector<128x4xf32> to vector<128x1xf32>
    %71 = vector.broadcast %70 : vector<128x1xf32> to vector<128x128xf32>
    %72 = vector.broadcast %68 : vector<1x128xf32> to vector<128x128xf32>
    %73 = arith.addf %71, %72 : vector<128x128xf32>
    %cst_33 = arith.constant 0.000000e+00 : f32
    %74 = vector.broadcast %cst_33 : f32 to vector<128x128xf32>
    %75 = arith.cmpf ogt, %73, %74 : vector<128x128xf32>
    %cst_34 = arith.constant 2.000000e-01 : f32
    %76 = vector.broadcast %cst_34 : f32 to vector<128x128xf32>
    %77 = arith.mulf %76, %73 : vector<128x128xf32>
    %78 = arith.select %75, %73, %77 : vector<128x128xi1>, vector<128x128xf32>
    %cst_35 = arith.constant 0.000000e+00 : f32
    %79 = vector.broadcast %cst_35 : f32 to vector<128x128xf32>
    %80 = arith.cmpf ogt, %1, %79 : vector<128x128xf32>
    %cst_36 = arith.constant -1.000000e+30 : f32
    %81 = vector.broadcast %cst_36 : f32 to vector<128x128xf32>
    %82 = arith.select %80, %78, %81 : vector<128x128xi1>, vector<128x128xf32>
    %cst_37 = arith.constant dense<0xFF800000> : vector<128xf32>
    %83 = vector.multi_reduction <maximumf>, %82, %cst_37 [1] : vector<128x128xf32> to vector<128xf32>
    %84 = vector.shape_cast %83 : vector<128xf32> to vector<128x1xf32>
    %85 = vector.broadcast %84 : vector<128x1xf32> to vector<128x128xf32>
    %86 = arith.subf %82, %85 : vector<128x128xf32>
    %87 = math.exp %86 : vector<128x128xf32>
    %cst_38 = arith.constant 0.000000e+00 : f32
    %88 = vector.broadcast %cst_38 : f32 to vector<128x128xf32>
    %89 = arith.select %80, %87, %88 : vector<128x128xi1>, vector<128x128xf32>
    %cst_39 = arith.constant dense<0.000000e+00> : vector<128xf32>
    %90 = vector.multi_reduction <add>, %89, %cst_39 [1] : vector<128x128xf32> to vector<128xf32>
    %91 = vector.shape_cast %90 : vector<128xf32> to vector<128x1xf32>
    %cst_40 = arith.constant 9.99999968E-21 : f32
    %92 = vector.broadcast %cst_40 : f32 to vector<128x1xf32>
    %93 = arith.maximumf %91, %92 : vector<128x1xf32>
    %94 = tpu.reciprocal %93 {approx = true} : vector<128x1xf32> -> vector<128x1xf32>
    %95 = vector.broadcast %94 : vector<128x1xf32> to vector<128x128xf32>
    %96 = arith.mulf %89, %95 : vector<128x128xf32>
    %97 = arith.truncf %96 : vector<128x128xf32> to vector<128x128xbf16>
    %c0_41 = arith.constant 0 : index
    %c64 = arith.constant 64 : index
    %98 = vector.load %arg3[%c0_41, %c64] : memref<128x128xbf16, #tpu.memory_space<vmem>>, vector<128x64xbf16>
    %cst_42 = arith.constant dense<0.000000e+00> : vector<128x64xf32>
    %99 = tpu.matmul %97, %98, %cst_42 {dimension_numbers = #tpu.dot_dimension_numbers<[1], [0], [0], [1], [0, 0, 1, 1], [], []>} : vector<128x128xbf16>, vector<128x64xbf16>, vector<128x64xf32> -> vector<128x64xf32>
    %100 = vector.extract_strided_slice %4 {offsets = [0, 3], sizes = [128, 1], strides = [1, 1]} : vector<128x4xf32> to vector<128x1xf32>
    %101 = vector.broadcast %100 : vector<128x1xf32> to vector<128x128xf32>
    %102 = vector.broadcast %69 : vector<1x128xf32> to vector<128x128xf32>
    %103 = arith.addf %101, %102 : vector<128x128xf32>
    %cst_43 = arith.constant 0.000000e+00 : f32
    %104 = vector.broadcast %cst_43 : f32 to vector<128x128xf32>
    %105 = arith.cmpf ogt, %103, %104 : vector<128x128xf32>
    %cst_44 = arith.constant 2.000000e-01 : f32
    %106 = vector.broadcast %cst_44 : f32 to vector<128x128xf32>
    %107 = arith.mulf %106, %103 : vector<128x128xf32>
    %108 = arith.select %105, %103, %107 : vector<128x128xi1>, vector<128x128xf32>
    %cst_45 = arith.constant 0.000000e+00 : f32
    %109 = vector.broadcast %cst_45 : f32 to vector<128x128xf32>
    %110 = arith.cmpf ogt, %3, %109 : vector<128x128xf32>
    %cst_46 = arith.constant -1.000000e+30 : f32
    %111 = vector.broadcast %cst_46 : f32 to vector<128x128xf32>
    %112 = arith.select %110, %108, %111 : vector<128x128xi1>, vector<128x128xf32>
    %cst_47 = arith.constant dense<0xFF800000> : vector<128xf32>
    %113 = vector.multi_reduction <maximumf>, %112, %cst_47 [1] : vector<128x128xf32> to vector<128xf32>
    %114 = vector.shape_cast %113 : vector<128xf32> to vector<128x1xf32>
    %115 = vector.broadcast %114 : vector<128x1xf32> to vector<128x128xf32>
    %116 = arith.subf %112, %115 : vector<128x128xf32>
    %117 = math.exp %116 : vector<128x128xf32>
    %cst_48 = arith.constant 0.000000e+00 : f32
    %118 = vector.broadcast %cst_48 : f32 to vector<128x128xf32>
    %119 = arith.select %110, %117, %118 : vector<128x128xi1>, vector<128x128xf32>
    %cst_49 = arith.constant dense<0.000000e+00> : vector<128xf32>
    %120 = vector.multi_reduction <add>, %119, %cst_49 [1] : vector<128x128xf32> to vector<128xf32>
    %121 = vector.shape_cast %120 : vector<128xf32> to vector<128x1xf32>
    %cst_50 = arith.constant 9.99999968E-21 : f32
    %122 = vector.broadcast %cst_50 : f32 to vector<128x1xf32>
    %123 = arith.maximumf %121, %122 : vector<128x1xf32>
    %124 = tpu.reciprocal %123 {approx = true} : vector<128x1xf32> -> vector<128x1xf32>
    %125 = vector.broadcast %124 : vector<128x1xf32> to vector<128x128xf32>
    %126 = arith.mulf %119, %125 : vector<128x128xf32>
    %127 = arith.truncf %126 : vector<128x128xf32> to vector<128x128xbf16>
    %c0_51 = arith.constant 0 : index
    %c64_52 = arith.constant 64 : index
    %128 = vector.load %arg4[%c0_51, %c64_52] : memref<128x128xbf16, #tpu.memory_space<vmem>>, vector<128x64xbf16>
    %cst_53 = arith.constant dense<0.000000e+00> : vector<128x64xf32>
    %129 = tpu.matmul %127, %128, %cst_53 {dimension_numbers = #tpu.dot_dimension_numbers<[1], [0], [0], [1], [0, 0, 1, 1], [], []>} : vector<128x128xbf16>, vector<128x64xbf16>, vector<128x64xf32> -> vector<128x64xf32>
    %130 = arith.addf %99, %129 : vector<128x64xf32>
    %131 = tpu.concatenate %67, %130 in 1 : vector<128x64xf32>, vector<128x64xf32> -> vector<128x128xf32>
    %c0_54 = arith.constant 0 : index
    %c0_55 = arith.constant 0 : index
    %132 = vector.load %arg8[%c0_54, %c0_55] : memref<1x128xf32, #tpu.memory_space<vmem>>, vector<1x128xf32>
    %133 = vector.broadcast %132 : vector<1x128xf32> to vector<128x128xf32>
    %134 = arith.addf %131, %133 : vector<128x128xf32>
    %135 = arith.truncf %134 : vector<128x128xf32> to vector<128x128xbf16>
    %c0_56 = arith.constant 0 : index
    %c0_57 = arith.constant 0 : index
    %136 = vector.load %arg9[%c0_56, %c0_57] : memref<128x256xbf16, #tpu.memory_space<vmem>>, vector<128x256xbf16>
    %cst_58 = arith.constant dense<0.000000e+00> : vector<128x256xf32>
    %137 = tpu.matmul %135, %136, %cst_58 {dimension_numbers = #tpu.dot_dimension_numbers<[1], [0], [0], [1], [0, 0, 1, 1], [], []>} : vector<128x128xbf16>, vector<128x256xbf16>, vector<128x256xf32> -> vector<128x256xf32>
    %138 = arith.truncf %137 : vector<128x256xf32> to vector<128x256xbf16>
    %c0_59 = arith.constant 0 : index
    %c0_60 = arith.constant 0 : index
    %139 = vector.load %arg10[%c0_59, %c0_60] : memref<128x256xbf16, #tpu.memory_space<vmem>>, vector<128x256xbf16>
    tpu.vector_store %arg10[%c0_59, %c0_60], %138 {strides = array<i32>} : memref<128x256xbf16, #tpu.memory_space<vmem>>, vector<128x256xbf16>,
    return
  }
  func.func @transform_0(%arg0: i32) -> (i32, i32) {
    %c0_i32 = arith.constant 0 : i32
    %c0_i32_0 = arith.constant 0 : i32
    return %arg0, %c0_i32 : i32, i32
  }
  func.func @transform_1(%arg0: i32) -> (i32, i32) {
    %c0_i32 = arith.constant 0 : i32
    %c0_i32_0 = arith.constant 0 : i32
    return %arg0, %c0_i32 : i32, i32
  }
  func.func @transform_2(%arg0: i32) -> (i32, i32) {
    %c0_i32 = arith.constant 0 : i32
    %c0_i32_0 = arith.constant 0 : i32
    %c0_i32_1 = arith.constant 0 : i32
    return %c0_i32, %c0_i32_0 : i32, i32
  }
  func.func @transform_3(%arg0: i32) -> (i32, i32) {
    %c0_i32 = arith.constant 0 : i32
    %c0_i32_0 = arith.constant 0 : i32
    %c0_i32_1 = arith.constant 0 : i32
    return %c0_i32, %c0_i32_0 : i32, i32
  }
  func.func @transform_4(%arg0: i32) -> (i32, i32) {
    %c0_i32 = arith.constant 0 : i32
    %c0_i32_0 = arith.constant 0 : i32
    %c0_i32_1 = arith.constant 0 : i32
    return %c0_i32, %c0_i32_0 : i32, i32
  }
  func.func @transform_5(%arg0: i32) -> (i32, i32) {
    %c0_i32 = arith.constant 0 : i32
    %c0_i32_0 = arith.constant 0 : i32
    %c0_i32_1 = arith.constant 0 : i32
    return %c0_i32, %c0_i32_0 : i32, i32
  }
  func.func @transform_6(%arg0: i32) -> (i32, i32) {
    %c0_i32 = arith.constant 0 : i32
    %c0_i32_0 = arith.constant 0 : i32
    return %arg0, %c0_i32 : i32, i32
  }
  func.func @transform_7(%arg0: i32) -> (i32, i32) {
    %c0_i32 = arith.constant 0 : i32
    %c0_i32_0 = arith.constant 0 : i32
    %c0_i32_1 = arith.constant 0 : i32
    return %c0_i32, %c0_i32_0 : i32, i32
  }
  func.func @transform_8(%arg0: i32) -> (i32, i32) {
    %c0_i32 = arith.constant 0 : i32
    %c0_i32_0 = arith.constant 0 : i32
    %c0_i32_1 = arith.constant 0 : i32
    return %c0_i32, %c0_i32_0 : i32, i32
  }
  func.func @transform_9(%arg0: i32) -> (i32, i32) {
    %c0_i32 = arith.constant 0 : i32
    %c0_i32_0 = arith.constant 0 : i32
    return %arg0, %c0_i32 : i32, i32
  }
}

module attributes {stable_mosaic.version = 11 : i64} {
  func.func @_gat_out_kernel(%arg0: i32, %arg1: memref<128x128xbf16, #tpu.memory_space<vmem>>, %arg2: memref<128x128xbf16, #tpu.memory_space<vmem>>, %arg3: memref<128x128xbf16, #tpu.memory_space<vmem>>, %arg4: memref<128x128xbf16, #tpu.memory_space<vmem>>, %arg5: memref<1x128xf32, #tpu.memory_space<vmem>>, %arg6: memref<1x128xf32, #tpu.memory_space<vmem>>, %arg7: memref<128x2xf32, #tpu.memory_space<vmem>>, %arg8: memref<1x128xf32, #tpu.memory_space<vmem>>, %arg9: memref<128x128xf32, #tpu.memory_space<vmem>>) attributes {dimension_semantics = [#tpu.dimension_semantics<parallel>], iteration_bounds = array<i64: 1>, scalar_prefetch = 0 : i64, scratch_operands = 0 : i64, tpu.core_type = #tpu.core_type<tc>, window_params = [{transform_indices = @transform_0, window_bounds = array<i64: 128, 128>}, {transform_indices = @transform_1, window_bounds = array<i64: 128, 128>}, {pipeline_mode = #tpu.pipeline_mode<synchronous>, transform_indices = @transform_2, window_bounds = array<i64: 128, 128>}, {pipeline_mode = #tpu.pipeline_mode<synchronous>, transform_indices = @transform_3, window_bounds = array<i64: 128, 128>}, {pipeline_mode = #tpu.pipeline_mode<synchronous>, transform_indices = @transform_4, window_bounds = array<i64: 1, 128>}, {pipeline_mode = #tpu.pipeline_mode<synchronous>, transform_indices = @transform_5, window_bounds = array<i64: 1, 128>}, {transform_indices = @transform_6, window_bounds = array<i64: 128, 2>}, {pipeline_mode = #tpu.pipeline_mode<synchronous>, transform_indices = @transform_7, window_bounds = array<i64: 1, 128>}, {transform_indices = @transform_8, window_bounds = array<i64: 128, 128>}]} {
    %c0 = arith.constant 0 : index
    %c0_0 = arith.constant 0 : index
    %0 = vector.load %arg1[%c0, %c0_0] : memref<128x128xbf16, #tpu.memory_space<vmem>>, vector<128x128xbf16>
    %1 = arith.extf %0 : vector<128x128xbf16> to vector<128x128xf32>
    %c0_1 = arith.constant 0 : index
    %c0_2 = arith.constant 0 : index
    %2 = vector.load %arg2[%c0_1, %c0_2] : memref<128x128xbf16, #tpu.memory_space<vmem>>, vector<128x128xbf16>
    %3 = arith.extf %2 : vector<128x128xbf16> to vector<128x128xf32>
    %c0_3 = arith.constant 0 : index
    %c0_4 = arith.constant 0 : index
    %4 = vector.load %arg7[%c0_3, %c0_4] : memref<128x2xf32, #tpu.memory_space<vmem>>, vector<128x2xf32>
    %c0_5 = arith.constant 0 : index
    %c0_6 = arith.constant 0 : index
    %5 = vector.load %arg5[%c0_5, %c0_6] : memref<1x128xf32, #tpu.memory_space<vmem>>, vector<1x128xf32>
    %c0_7 = arith.constant 0 : index
    %c0_8 = arith.constant 0 : index
    %6 = vector.load %arg6[%c0_7, %c0_8] : memref<1x128xf32, #tpu.memory_space<vmem>>, vector<1x128xf32>
    %7 = vector.extract_strided_slice %4 {offsets = [0, 0], sizes = [128, 1], strides = [1, 1]} : vector<128x2xf32> to vector<128x1xf32>
    %8 = vector.broadcast %7 : vector<128x1xf32> to vector<128x128xf32>
    %9 = vector.broadcast %5 : vector<1x128xf32> to vector<128x128xf32>
    %10 = arith.addf %8, %9 : vector<128x128xf32>
    %cst = arith.constant 0.000000e+00 : f32
    %11 = vector.broadcast %cst : f32 to vector<128x128xf32>
    %12 = arith.cmpf ogt, %10, %11 : vector<128x128xf32>
    %cst_9 = arith.constant 2.000000e-01 : f32
    %13 = vector.broadcast %cst_9 : f32 to vector<128x128xf32>
    %14 = arith.mulf %13, %10 : vector<128x128xf32>
    %15 = arith.select %12, %10, %14 : vector<128x128xi1>, vector<128x128xf32>
    %cst_10 = arith.constant 0.000000e+00 : f32
    %16 = vector.broadcast %cst_10 : f32 to vector<128x128xf32>
    %17 = arith.cmpf ogt, %1, %16 : vector<128x128xf32>
    %cst_11 = arith.constant -1.000000e+30 : f32
    %18 = vector.broadcast %cst_11 : f32 to vector<128x128xf32>
    %19 = arith.select %17, %15, %18 : vector<128x128xi1>, vector<128x128xf32>
    %cst_12 = arith.constant dense<0xFF800000> : vector<128xf32>
    %20 = vector.multi_reduction <maximumf>, %19, %cst_12 [1] : vector<128x128xf32> to vector<128xf32>
    %21 = vector.shape_cast %20 : vector<128xf32> to vector<128x1xf32>
    %22 = vector.broadcast %21 : vector<128x1xf32> to vector<128x128xf32>
    %23 = arith.subf %19, %22 : vector<128x128xf32>
    %24 = math.exp %23 : vector<128x128xf32>
    %cst_13 = arith.constant 0.000000e+00 : f32
    %25 = vector.broadcast %cst_13 : f32 to vector<128x128xf32>
    %26 = arith.select %17, %24, %25 : vector<128x128xi1>, vector<128x128xf32>
    %cst_14 = arith.constant dense<0.000000e+00> : vector<128xf32>
    %27 = vector.multi_reduction <add>, %26, %cst_14 [1] : vector<128x128xf32> to vector<128xf32>
    %28 = vector.shape_cast %27 : vector<128xf32> to vector<128x1xf32>
    %cst_15 = arith.constant 9.99999968E-21 : f32
    %29 = vector.broadcast %cst_15 : f32 to vector<128x1xf32>
    %30 = arith.maximumf %28, %29 : vector<128x1xf32>
    %31 = tpu.reciprocal %30 {approx = true} : vector<128x1xf32> -> vector<128x1xf32>
    %32 = vector.broadcast %31 : vector<128x1xf32> to vector<128x128xf32>
    %33 = arith.mulf %26, %32 : vector<128x128xf32>
    %34 = arith.truncf %33 : vector<128x128xf32> to vector<128x128xbf16>
    %c0_16 = arith.constant 0 : index
    %c0_17 = arith.constant 0 : index
    %35 = vector.load %arg3[%c0_16, %c0_17] : memref<128x128xbf16, #tpu.memory_space<vmem>>, vector<128x128xbf16>
    %cst_18 = arith.constant dense<0.000000e+00> : vector<128x128xf32>
    %36 = tpu.matmul %34, %35, %cst_18 {dimension_numbers = #tpu.dot_dimension_numbers<[1], [0], [0], [1], [0, 0, 1, 1], [], []>} : vector<128x128xbf16>, vector<128x128xbf16>, vector<128x128xf32> -> vector<128x128xf32>
    %37 = vector.extract_strided_slice %4 {offsets = [0, 1], sizes = [128, 1], strides = [1, 1]} : vector<128x2xf32> to vector<128x1xf32>
    %38 = vector.broadcast %37 : vector<128x1xf32> to vector<128x128xf32>
    %39 = vector.broadcast %6 : vector<1x128xf32> to vector<128x128xf32>
    %40 = arith.addf %38, %39 : vector<128x128xf32>
    %cst_19 = arith.constant 0.000000e+00 : f32
    %41 = vector.broadcast %cst_19 : f32 to vector<128x128xf32>
    %42 = arith.cmpf ogt, %40, %41 : vector<128x128xf32>
    %cst_20 = arith.constant 2.000000e-01 : f32
    %43 = vector.broadcast %cst_20 : f32 to vector<128x128xf32>
    %44 = arith.mulf %43, %40 : vector<128x128xf32>
    %45 = arith.select %42, %40, %44 : vector<128x128xi1>, vector<128x128xf32>
    %cst_21 = arith.constant 0.000000e+00 : f32
    %46 = vector.broadcast %cst_21 : f32 to vector<128x128xf32>
    %47 = arith.cmpf ogt, %3, %46 : vector<128x128xf32>
    %cst_22 = arith.constant -1.000000e+30 : f32
    %48 = vector.broadcast %cst_22 : f32 to vector<128x128xf32>
    %49 = arith.select %47, %45, %48 : vector<128x128xi1>, vector<128x128xf32>
    %cst_23 = arith.constant dense<0xFF800000> : vector<128xf32>
    %50 = vector.multi_reduction <maximumf>, %49, %cst_23 [1] : vector<128x128xf32> to vector<128xf32>
    %51 = vector.shape_cast %50 : vector<128xf32> to vector<128x1xf32>
    %52 = vector.broadcast %51 : vector<128x1xf32> to vector<128x128xf32>
    %53 = arith.subf %49, %52 : vector<128x128xf32>
    %54 = math.exp %53 : vector<128x128xf32>
    %cst_24 = arith.constant 0.000000e+00 : f32
    %55 = vector.broadcast %cst_24 : f32 to vector<128x128xf32>
    %56 = arith.select %47, %54, %55 : vector<128x128xi1>, vector<128x128xf32>
    %cst_25 = arith.constant dense<0.000000e+00> : vector<128xf32>
    %57 = vector.multi_reduction <add>, %56, %cst_25 [1] : vector<128x128xf32> to vector<128xf32>
    %58 = vector.shape_cast %57 : vector<128xf32> to vector<128x1xf32>
    %cst_26 = arith.constant 9.99999968E-21 : f32
    %59 = vector.broadcast %cst_26 : f32 to vector<128x1xf32>
    %60 = arith.maximumf %58, %59 : vector<128x1xf32>
    %61 = tpu.reciprocal %60 {approx = true} : vector<128x1xf32> -> vector<128x1xf32>
    %62 = vector.broadcast %61 : vector<128x1xf32> to vector<128x128xf32>
    %63 = arith.mulf %56, %62 : vector<128x128xf32>
    %64 = arith.truncf %63 : vector<128x128xf32> to vector<128x128xbf16>
    %c0_27 = arith.constant 0 : index
    %c0_28 = arith.constant 0 : index
    %65 = vector.load %arg4[%c0_27, %c0_28] : memref<128x128xbf16, #tpu.memory_space<vmem>>, vector<128x128xbf16>
    %cst_29 = arith.constant dense<0.000000e+00> : vector<128x128xf32>
    %66 = tpu.matmul %64, %65, %cst_29 {dimension_numbers = #tpu.dot_dimension_numbers<[1], [0], [0], [1], [0, 0, 1, 1], [], []>} : vector<128x128xbf16>, vector<128x128xbf16>, vector<128x128xf32> -> vector<128x128xf32>
    %67 = arith.addf %36, %66 : vector<128x128xf32>
    %c0_30 = arith.constant 0 : index
    %c0_31 = arith.constant 0 : index
    %68 = vector.load %arg8[%c0_30, %c0_31] : memref<1x128xf32, #tpu.memory_space<vmem>>, vector<1x128xf32>
    %69 = vector.broadcast %68 : vector<1x128xf32> to vector<128x128xf32>
    %70 = arith.addf %67, %69 : vector<128x128xf32>
    %c0_32 = arith.constant 0 : index
    %c0_33 = arith.constant 0 : index
    %71 = vector.load %arg9[%c0_32, %c0_33] : memref<128x128xf32, #tpu.memory_space<vmem>>, vector<128x128xf32>
    tpu.vector_store %arg9[%c0_32, %c0_33], %70 {strides = array<i32>} : memref<128x128xf32, #tpu.memory_space<vmem>>, vector<128x128xf32>,
    return
  }
  func.func @transform_0(%arg0: i32) -> (i32, i32) {
    %c0_i32 = arith.constant 0 : i32
    %c0_i32_0 = arith.constant 0 : i32
    return %arg0, %c0_i32 : i32, i32
  }
  func.func @transform_1(%arg0: i32) -> (i32, i32) {
    %c0_i32 = arith.constant 0 : i32
    %c0_i32_0 = arith.constant 0 : i32
    return %arg0, %c0_i32 : i32, i32
  }
  func.func @transform_2(%arg0: i32) -> (i32, i32) {
    %c0_i32 = arith.constant 0 : i32
    %c0_i32_0 = arith.constant 0 : i32
    %c0_i32_1 = arith.constant 0 : i32
    return %c0_i32, %c0_i32_0 : i32, i32
  }
  func.func @transform_3(%arg0: i32) -> (i32, i32) {
    %c0_i32 = arith.constant 0 : i32
    %c0_i32_0 = arith.constant 0 : i32
    %c0_i32_1 = arith.constant 0 : i32
    return %c0_i32, %c0_i32_0 : i32, i32
  }
  func.func @transform_4(%arg0: i32) -> (i32, i32) {
    %c0_i32 = arith.constant 0 : i32
    %c0_i32_0 = arith.constant 0 : i32
    %c0_i32_1 = arith.constant 0 : i32
    return %c0_i32, %c0_i32_0 : i32, i32
  }
  func.func @transform_5(%arg0: i32) -> (i32, i32) {
    %c0_i32 = arith.constant 0 : i32
    %c0_i32_0 = arith.constant 0 : i32
    %c0_i32_1 = arith.constant 0 : i32
    return %c0_i32, %c0_i32_0 : i32, i32
  }
  func.func @transform_6(%arg0: i32) -> (i32, i32) {
    %c0_i32 = arith.constant 0 : i32
    %c0_i32_0 = arith.constant 0 : i32
    return %arg0, %c0_i32 : i32, i32
  }
  func.func @transform_7(%arg0: i32) -> (i32, i32) {
    %c0_i32 = arith.constant 0 : i32
    %c0_i32_0 = arith.constant 0 : i32
    %c0_i32_1 = arith.constant 0 : i32
    return %c0_i32, %c0_i32_0 : i32, i32
  }
  func.func @transform_8(%arg0: i32) -> (i32, i32) {
    %c0_i32 = arith.constant 0 : i32
    %c0_i32_0 = arith.constant 0 : i32
    return %arg0, %c0_i32 : i32, i32
  }
}

</mosaic_0001>

<llo_original>
// kernel: rel_het_graph_forward.5
$region0: #{rel_het_graph_forward.5}
  #allocation0 [shape = 'u32[]', space=smem, size = 0x4, offset = 0x4, fixed_abs, tag = 'smem constant byte address 0x4 - core index']
  #allocation1 [shape = 'u32[72,128]{1,0:T(1,128)}', space=vmem, size = 0x9000, scoped, tag = 'internal scratch']
  %s0 = inlined_call_operand.vmem [shape: bf16[128,128], index: 0, kind: input, shape index: {}]
  %s1 = inlined_call_operand.vmem [shape: bf16[128,128], index: 1, kind: input, shape index: {}]
  %s2 = inlined_call_operand.vmem [shape: f32[1,128], index: 2, kind: input, shape index: {}]
  %s3 = inlined_call_operand.vmem [shape: bf16[128,512], index: 3, kind: input, shape index: {}]
  %s4 = inlined_call_operand.vmem [shape: bf16[128,512], index: 4, kind: output, shape index: {}]
  %s5 = sld [smem:[#allocation0]]
  $region26: #{rel_het_graph_forward.5} parent=0
    _
  %s7 = ssub.s32 1, %s5
  %s8 = scalar_select 0, %s7, %s5
  // Predicated region
  $region2: #{rel_het_graph_forward.5} parent=0 // pred_check
    _
  $region3: #{rel_het_graph_forward.5} parent=0 // pred_check_branch
    %10 = sbr.rel (0) target = $region5
  $region4: #{rel_het_graph_forward.5} parent=0 // pred_region
    _
  $region5: #{rel_het_graph_forward.5} parent=0 // pred_fallthru
    _
  // Predicated region
  $region6: #{rel_het_graph_forward.5} parent=0 // pred_check
    _
  $region7: #{rel_het_graph_forward.5} parent=0 // pred_check_branch
    %12 = sbr.rel (0) target = $region9
  $region8: #{rel_het_graph_forward.5} parent=0 // pred_region
    _
  $region9: #{rel_het_graph_forward.5} parent=0 // pred_fallthru
    _
  // Predicated region
  $region10: #{rel_het_graph_forward.5} parent=0 // pred_check
    _
  $region11: #{rel_het_graph_forward.5} parent=0 // pred_check_branch
    %14 = sbr.rel (0) target = $region13
  $region12: #{rel_het_graph_forward.5} parent=0 // pred_region
    _
  $region13: #{rel_het_graph_forward.5} parent=0 // pred_fallthru
    _
  // Predicated region
  $region14: #{rel_het_graph_forward.5} parent=0 // pred_check
    _
  $region15: #{rel_het_graph_forward.5} parent=0 // pred_check_branch
    %16 = sbr.rel (0) target = $region17
  $region16: #{rel_het_graph_forward.5} parent=0 // pred_region
    _
  $region17: #{rel_het_graph_forward.5} parent=0 // pred_fallthru
    _
  %v17 = vld [vmem:[%s0] sm:$0xf]
  %v18 = vld [vmem:[%s0 + $0x4] sm:$0xf]
  %v19 = vld [vmem:[%s0 + $0x8] sm:$0xf]
  %v20 = vld [vmem:[%s0 + $0xc] sm:$0xf]
  %v21 = vld [vmem:[%s0 + $0x10] sm:$0xf]
  %v22 = vld [vmem:[%s0 + $0x14] sm:$0xf]
  %v23 = vld [vmem:[%s0 + $0x18] sm:$0xf]
  %v24 = vld [vmem:[%s0 + $0x1c] sm:$0xf]
  %v25 = vld [vmem:[%s0 + $0x20] sm:$0xf]
  %v26 = vld [vmem:[%s0 + $0x24] sm:$0xf]
  %v27 = vld [vmem:[%s0 + $0x28] sm:$0xf]
  %v28 = vld [vmem:[%s0 + $0x2c] sm:$0xf]
  %v29 = vld [vmem:[%s0 + $0x30] sm:$0xf]
  %v30 = vld [vmem:[%s0 + $0x34] sm:$0xf]
  %v31 = vld [vmem:[%s0 + $0x38] sm:$0xf]
  %v32 = vld [vmem:[%s0 + $0x3c] sm:$0xf]
  %v33 = vld [vmem:[%s1] sm:$0xf]
  %v34 = vld [vmem:[%s1 + $0x4] sm:$0xf]
  %v35 = vld [vmem:[%s1 + $0x8] sm:$0xf]
  %v36 = vld [vmem:[%s1 + $0xc] sm:$0xf]
  %v37 = vld [vmem:[%s1 + $0x10] sm:$0xf]
  %v38 = vld [vmem:[%s1 + $0x14] sm:$0xf]
  %v39 = vld [vmem:[%s1 + $0x18] sm:$0xf]
  %v40 = vld [vmem:[%s1 + $0x1c] sm:$0xf]
  %v41 = vld [vmem:[%s1 + $0x20] sm:$0xf]
  %v42 = vld [vmem:[%s1 + $0x24] sm:$0xf]
  %v43 = vld [vmem:[%s1 + $0x28] sm:$0xf]
  %v44 = vld [vmem:[%s1 + $0x2c] sm:$0xf]
  %v45 = vld [vmem:[%s1 + $0x30] sm:$0xf]
  %v46 = vld [vmem:[%s1 + $0x34] sm:$0xf]
  %v47 = vld [vmem:[%s1 + $0x38] sm:$0xf]
  %v48 = vld [vmem:[%s1 + $0x3c] sm:$0xf]
  %v49 = vld [vmem:[%s2] sm:$0x1]
  %v51 = vperm.slane %v49, 0
  %v69 = vunpack.c.l.b16 %v17
  %v70 = vunpack.c.l.b16 %v18
  %v71 = vunpack.c.l.b16 %v19
  %v72 = vunpack.c.l.b16 %v20
  %v73 = vunpack.c.l.b16 %v21
  %v74 = vunpack.c.l.b16 %v22
  %v75 = vunpack.c.l.b16 %v23
  %v76 = vunpack.c.l.b16 %v24
  %v77 = vunpack.c.l.b16 %v25
  %v78 = vunpack.c.l.b16 %v26
  %v79 = vunpack.c.l.b16 %v27
  %v80 = vunpack.c.l.b16 %v28
  %v81 = vunpack.c.l.b16 %v29
  %v82 = vunpack.c.l.b16 %v30
  %v83 = vunpack.c.l.b16 %v31
  %v84 = vunpack.c.l.b16 %v32
  %v85 = vpack.c.b16 %v70, %v69
  %v86 = vpack.c.b16 %v72, %v71
  %v87 = vpack.c.b16 %v74, %v73
  %v88 = vpack.c.b16 %v76, %v75
  %v89 = vpack.c.b16 %v78, %v77
  %v90 = vpack.c.b16 %v80, %v79
  %v91 = vpack.c.b16 %v82, %v81
  %v92 = vpack.c.b16 %v84, %v83
  %v117 = vunpack.c.l.b16 %v33
  %v118 = vunpack.c.l.b16 %v34
  %v119 = vunpack.c.l.b16 %v35
  %v120 = vunpack.c.l.b16 %v36
  %v121 = vunpack.c.l.b16 %v37
  %v122 = vunpack.c.l.b16 %v38
  %v123 = vunpack.c.l.b16 %v39
  %v124 = vunpack.c.l.b16 %v40
  %v125 = vunpack.c.l.b16 %v41
  %v126 = vunpack.c.l.b16 %v42
  %v127 = vunpack.c.l.b16 %v43
  %v128 = vunpack.c.l.b16 %v44
  %v129 = vunpack.c.l.b16 %v45
  %v130 = vunpack.c.l.b16 %v46
  %v131 = vunpack.c.l.b16 %v47
  %v132 = vunpack.c.l.b16 %v48
  %v133 = vpack.c.b16 %v118, %v117
  %v134 = vpack.c.b16 %v120, %v119
  %v135 = vpack.c.b16 %v122, %v121
  %v136 = vpack.c.b16 %v124, %v123
  %v137 = vpack.c.b16 %v126, %v125
  %v138 = vpack.c.b16 %v128, %v127
  %v139 = vpack.c.b16 %v130, %v129
  %v140 = vpack.c.b16 %v132, %v131
  %149 = vmatpush.bf16.msra.mxu0 %v140
  %150 = vmatpush.bf16.msra.mxu0 %v139
  %151 = vmatpush.bf16.msra.mxu0 %v138
  %152 = vmatpush.bf16.msra.mxu0 %v137
  %153 = vmatpush.bf16.msra.mxu0 %v136
  %154 = vmatpush.bf16.msra.mxu0 %v135
  %155 = vmatpush.bf16.msra.mxu0 %v134
  %156 = vmatpush.bf16.msra.mxu0 %v133
  %157 = vmatmul.bf16.gmra.mxu0 %v85
  %v158 = vpop.f32.mrf.mxu0
  %v159 = vadd.f32 %v51, %v158
  %v160 = vpop.f32.mrf.mxu0
  %v161 = vadd.f32 %v51, %v160
  %162 = vmatmul.bf16.gmra.mxu0 %v86
  %v163 = vpop.f32.mrf.mxu0
  %v164 = vadd.f32 %v51, %v163
  %v165 = vpop.f32.mrf.mxu0
  %v166 = vadd.f32 %v51, %v165
  %167 = vmatmul.bf16.gmra.mxu0 %v87
  %v168 = vpop.f32.mrf.mxu0
  %v169 = vadd.f32 %v51, %v168
  %v170 = vpop.f32.mrf.mxu0
  %v171 = vadd.f32 %v51, %v170
  %172 = vmatmul.bf16.gmra.mxu0 %v88
  %v173 = vpop.f32.mrf.mxu0
  %v174 = vadd.f32 %v51, %v173
  %v175 = vpop.f32.mrf.mxu0
  %v176 = vadd.f32 %v51, %v175
  %177 = vmatmul.bf16.gmra.mxu0 %v89
  %v178 = vpop.f32.mrf.mxu0
  %v179 = vadd.f32 %v51, %v178
  %v180 = vpop.f32.mrf.mxu0
  %v181 = vadd.f32 %v51, %v180
  %182 = vmatmul.bf16.gmra.mxu0 %v90
  %v183 = vpop.f32.mrf.mxu0
  %v184 = vadd.f32 %v51, %v183
  %v185 = vpop.f32.mrf.mxu0
  %v186 = vadd.f32 %v51, %v185
  %187 = vmatmul.bf16.gmra.mxu0 %v91
  %v188 = vpop.f32.mrf.mxu0
  %v189 = vadd.f32 %v51, %v188
  %v190 = vpop.f32.mrf.mxu0
  %v191 = vadd.f32 %v51, %v190
  %192 = vmatmul.bf16.gmra.mxu0 %v92
  %v193 = vpop.f32.mrf.mxu0
  %v194 = vadd.f32 %v51, %v193
  %v195 = vpop.f32.mrf.mxu0
  %v196 = vadd.f32 %v51, %v195
  %197 = vdwg.mxu0
  %v198 = vmax.f32 %v159, 0.0
  %v199 = vmax.f32 %v161, 0.0
  %v200 = vmax.f32 %v164, 0.0
  %v201 = vmax.f32 %v166, 0.0
  %v202 = vmax.f32 %v169, 0.0
  %v203 = vmax.f32 %v171, 0.0
  %v204 = vmax.f32 %v174, 0.0
  %v205 = vmax.f32 %v176, 0.0
  %v206 = vmax.f32 %v179, 0.0
  %v207 = vmax.f32 %v181, 0.0
  %v208 = vmax.f32 %v184, 0.0
  %v209 = vmax.f32 %v186, 0.0
  %v210 = vmax.f32 %v189, 0.0
  %v211 = vmax.f32 %v191, 0.0
  %v212 = vmax.f32 %v194, 0.0
  %v213 = vmax.f32 %v196, 0.0
  %v214 = vpack.c.bf16 %v199, %v198
  %v215 = vpack.c.bf16 %v201, %v200
  %v216 = vpack.c.bf16 %v203, %v202
  %v217 = vpack.c.bf16 %v205, %v204
  %v218 = vpack.c.bf16 %v207, %v206
  %v219 = vpack.c.bf16 %v209, %v208
  %v220 = vpack.c.bf16 %v211, %v210
  %v221 = vpack.c.bf16 %v213, %v212
  %v222 = vld [vmem:[%s3] sm:$0xff]
  %v223 = vld [vmem:[%s3 + $0x8] sm:$0xff]
  %v224 = vld [vmem:[%s3 + $0x10] sm:$0xff]
  %v225 = vld [vmem:[%s3 + $0x18] sm:$0xff]
  %v226 = vld [vmem:[%s3 + $0x20] sm:$0xff]
  %v227 = vld [vmem:[%s3 + $0x28] sm:$0xff]
  %v228 = vld [vmem:[%s3 + $0x30] sm:$0xff]
  %v229 = vld [vmem:[%s3 + $0x38] sm:$0xff]
  %v230 = vld [vmem:[%s3 + $0x40] sm:$0xff]
  %v231 = vld [vmem:[%s3 + $0x48] sm:$0xff]
  %v232 = vld [vmem:[%s3 + $0x50] sm:$0xff]
  %v233 = vld [vmem:[%s3 + $0x58] sm:$0xff]
  %v234 = vld [vmem:[%s3 + $0x60] sm:$0xff]
  %v235 = vld [vmem:[%s3 + $0x68] sm:$0xff]
  %v236 = vld [vmem:[%s3 + $0x70] sm:$0xff]
  %v237 = vld [vmem:[%s3 + $0x78] sm:$0xff]
  %v238 = vld [vmem:[%s3 + $0x80] sm:$0xff]
  %v239 = vld [vmem:[%s3 + $0x88] sm:$0xff]
  %v240 = vld [vmem:[%s3 + $0x90] sm:$0xff]
  %v241 = vld [vmem:[%s3 + $0x98] sm:$0xff]
  %v242 = vld [vmem:[%s3 + $0xa0] sm:$0xff]
  %v243 = vld [vmem:[%s3 + $0xa8] sm:$0xff]
  %v244 = vld [vmem:[%s3 + $0xb0] sm:$0xff]
  %v245 = vld [vmem:[%s3 + $0xb8] sm:$0xff]
  %v246 = vld [vmem:[%s3 + $0xc0] sm:$0xff]
  %v247 = vld [vmem:[%s3 + $0xc8] sm:$0xff]
  %v248 = vld [vmem:[%s3 + $0xd0] sm:$0xff]
  %v249 = vld [vmem:[%s3 + $0xd8] sm:$0xff]
  %v250 = vld [vmem:[%s3 + $0xe0] sm:$0xff]
  %v251 = vld [vmem:[%s3 + $0xe8] sm:$0xff]
  %v252 = vld [vmem:[%s3 + $0xf0] sm:$0xff]
  %v253 = vld [vmem:[%s3 + $0xf8] sm:$0xff]
  %v286 = vunpack.c.l.b16 %v222
  %v287 = vunpack.c.h.b16 %v222
  %v288 = vunpack.c.l.b16 %v223
  %v289 = vunpack.c.h.b16 %v223
  %v290 = vunpack.c.l.b16 %v224
  %v291 = vunpack.c.h.b16 %v224
  %v292 = vunpack.c.l.b16 %v225
  %v293 = vunpack.c.h.b16 %v225
  %v294 = vunpack.c.l.b16 %v226
  %v295 = vunpack.c.h.b16 %v226
  %v296 = vunpack.c.l.b16 %v227
  %v297 = vunpack.c.h.b16 %v227
  %v298 = vunpack.c.l.b16 %v228
  %v299 = vunpack.c.h.b16 %v228
  %v300 = vunpack.c.l.b16 %v229
  %v301 = vunpack.c.h.b16 %v229
  %v302 = vunpack.c.l.b16 %v230
  %v303 = vunpack.c.h.b16 %v230
  %v304 = vunpack.c.l.b16 %v231
  %v305 = vunpack.c.h.b16 %v231
  %v306 = vunpack.c.l.b16 %v232
  %v307 = vunpack.c.h.b16 %v232
  %v308 = vunpack.c.l.b16 %v233
  %v309 = vunpack.c.h.b16 %v233
  %v310 = vunpack.c.l.b16 %v234
  %v311 = vunpack.c.h.b16 %v234
  %v312 = vunpack.c.l.b16 %v235
  %v313 = vunpack.c.h.b16 %v235
  %v314 = vunpack.c.l.b16 %v236
  %v315 = vunpack.c.h.b16 %v236
  %v316 = vunpack.c.l.b16 %v237
  %v317 = vunpack.c.h.b16 %v237
  %v318 = vunpack.c.l.b16 %v238
  %v319 = vunpack.c.h.b16 %v238
  %v320 = vunpack.c.l.b16 %v239
  %v321 = vunpack.c.h.b16 %v239
  %v322 = vunpack.c.l.b16 %v240
  %v323 = vunpack.c.h.b16 %v240
  %v324 = vunpack.c.l.b16 %v241
  %v325 = vunpack.c.h.b16 %v241
  %v326 = vunpack.c.l.b16 %v242
  %v327 = vunpack.c.h.b16 %v242
  %v328 = vunpack.c.l.b16 %v243
  %v329 = vunpack.c.h.b16 %v243
  %v330 = vunpack.c.l.b16 %v244
  %v331 = vunpack.c.h.b16 %v244
  %v332 = vunpack.c.l.b16 %v245
  %v333 = vunpack.c.h.b16 %v245
  %v334 = vunpack.c.l.b16 %v246
  %v335 = vunpack.c.h.b16 %v246
  %v336 = vunpack.c.l.b16 %v247
  %v337 = vunpack.c.h.b16 %v247
  %v338 = vunpack.c.l.b16 %v248
  %v339 = vunpack.c.h.b16 %v248
  %v340 = vunpack.c.l.b16 %v249
  %v341 = vunpack.c.h.b16 %v249
  %v342 = vunpack.c.l.b16 %v250
  %v343 = vunpack.c.h.b16 %v250
  %v344 = vunpack.c.l.b16 %v251
  %v345 = vunpack.c.h.b16 %v251
  %v346 = vunpack.c.l.b16 %v252
  %v347 = vunpack.c.h.b16 %v252
  %v348 = vunpack.c.l.b16 %v253
  %v349 = vunpack.c.h.b16 %v253
  %v350 = vpack.c.b16 %v290, %v286
  %v351 = vpack.c.b16 %v291, %v287
  %v352 = vpack.c.b16 %v292, %v288
  %v353 = vpack.c.b16 %v293, %v289
  %v354 = vpack.c.b16 %v298, %v294
  %v355 = vpack.c.b16 %v299, %v295
  %v356 = vpack.c.b16 %v300, %v296
  %v357 = vpack.c.b16 %v301, %v297
  %v358 = vpack.c.b16 %v306, %v302
  %v359 = vpack.c.b16 %v307, %v303
  %v360 = vpack.c.b16 %v308, %v304
  %v361 = vpack.c.b16 %v309, %v305
  %v362 = vpack.c.b16 %v314, %v310
  %v363 = vpack.c.b16 %v315, %v311
  %v364 = vpack.c.b16 %v316, %v312
  %v365 = vpack.c.b16 %v317, %v313
  %v366 = vpack.c.b16 %v322, %v318
  %v367 = vpack.c.b16 %v323, %v319
  %v368 = vpack.c.b16 %v324, %v320
  %v369 = vpack.c.b16 %v325, %v321
  %v370 = vpack.c.b16 %v330, %v326
  %v371 = vpack.c.b16 %v331, %v327
  %v372 = vpack.c.b16 %v332, %v328
  %v373 = vpack.c.b16 %v333, %v329
  %v374 = vpack.c.b16 %v338, %v334
  %v375 = vpack.c.b16 %v339, %v335
  %v376 = vpack.c.b16 %v340, %v336
  %v377 = vpack.c.b16 %v341, %v337
  %v378 = vpack.c.b16 %v346, %v342
  %v379 = vpack.c.b16 %v347, %v343
  %v380 = vpack.c.b16 %v348, %v344
  %v381 = vpack.c.b16 %v349, %v345
  %414 = vmatpush.bf16.msra.mxu0 %v378
  %415 = vmatpush.bf16.msra.mxu0 %v374
  %416 = vmatpush.bf16.msra.mxu0 %v370
  %417 = vmatpush.bf16.msra.mxu0 %v366
  %418 = vmatpush.bf16.msra.mxu0 %v362
  %419 = vmatpush.bf16.msra.mxu0 %v358
  %420 = vmatpush.bf16.msra.mxu0 %v354
  %421 = vmatpush.bf16.msra.mxu0 %v350
  %422 = vmatmul.bf16.gmra.mxu0 %v214
  %v423 = vpop.f32.mrf.mxu0
  %v424 = vadd.f32 0.0, %v423
  %v425 = vpop.f32.mrf.mxu0
  %v426 = vadd.f32 0.0, %v425
  %427 = vmatmul.bf16.gmra.mxu0 %v215
  %v428 = vpop.f32.mrf.mxu0
  %v429 = vadd.f32 0.0, %v428
  %v430 = vpop.f32.mrf.mxu0
  %v431 = vadd.f32 0.0, %v430
  %432 = vmatmul.bf16.gmra.mxu0 %v216
  %v433 = vpop.f32.mrf.mxu0
  %v434 = vadd.f32 0.0, %v433
  %v435 = vpop.f32.mrf.mxu0
  %v436 = vadd.f32 0.0, %v435
  %437 = vmatmul.bf16.gmra.mxu0 %v217
  %v438 = vpop.f32.mrf.mxu0
  %v439 = vadd.f32 0.0, %v438
  %v440 = vpop.f32.mrf.mxu0
  %v441 = vadd.f32 0.0, %v440
  %442 = vmatmul.bf16.gmra.mxu0 %v218
  %v443 = vpop.f32.mrf.mxu0
  %v444 = vadd.f32 0.0, %v443
  %v445 = vpop.f32.mrf.mxu0
  %v446 = vadd.f32 0.0, %v445
  %447 = vmatmul.bf16.gmra.mxu0 %v219
  %v448 = vpop.f32.mrf.mxu0
  %v449 = vadd.f32 0.0, %v448
  %v450 = vpop.f32.mrf.mxu0
  %v451 = vadd.f32 0.0, %v450
  %452 = vmatmul.bf16.gmra.mxu0 %v220
  %v453 = vpop.f32.mrf.mxu0
  %v454 = vadd.f32 0.0, %v453
  %v455 = vpop.f32.mrf.mxu0
  %v456 = vadd.f32 0.0, %v455
  %457 = vmatmul.bf16.gmra.mxu0 %v221
  %v458 = vpop.f32.mrf.mxu0
  %v459 = vadd.f32 0.0, %v458
  %v460 = vpop.f32.mrf.mxu0
  %v461 = vadd.f32 0.0, %v460
  %462 = vdwg.mxu0
  %463 = vmatpush.bf16.msra.mxu0 %v379
  %464 = vmatpush.bf16.msra.mxu0 %v375
  %465 = vmatpush.bf16.msra.mxu0 %v371
  %466 = vmatpush.bf16.msra.mxu0 %v367
  %467 = vmatpush.bf16.msra.mxu0 %v363
  %468 = vmatpush.bf16.msra.mxu0 %v359
  %469 = vmatpush.bf16.msra.mxu0 %v355
  %470 = vmatpush.bf16.msra.mxu0 %v351
  %471 = vmatmul.bf16.gmra.mxu0 %v214
  %v472 = vpop.f32.mrf.mxu0
  %v473 = vadd.f32 0.0, %v472
  %v474 = vpop.f32.mrf.mxu0
  %v475 = vadd.f32 0.0, %v474
  %476 = vmatmul.bf16.gmra.mxu0 %v215
  %v477 = vpop.f32.mrf.mxu0
  %v478 = vadd.f32 0.0, %v477
  %v479 = vpop.f32.mrf.mxu0
  %v480 = vadd.f32 0.0, %v479
  %481 = vmatmul.bf16.gmra.mxu0 %v216
  %v482 = vpop.f32.mrf.mxu0
  %v483 = vadd.f32 0.0, %v482
  %v484 = vpop.f32.mrf.mxu0
  %v485 = vadd.f32 0.0, %v484
  %486 = vmatmul.bf16.gmra.mxu0 %v217
  %v487 = vpop.f32.mrf.mxu0
  %v488 = vadd.f32 0.0, %v487
  %v489 = vpop.f32.mrf.mxu0
  %v490 = vadd.f32 0.0, %v489
  %491 = vmatmul.bf16.gmra.mxu0 %v218
  %v492 = vpop.f32.mrf.mxu0
  %v493 = vadd.f32 0.0, %v492
  %v494 = vpop.f32.mrf.mxu0
  %v495 = vadd.f32 0.0, %v494
  %496 = vmatmul.bf16.gmra.mxu0 %v219
  %v497 = vpop.f32.mrf.mxu0
  %v498 = vadd.f32 0.0, %v497
  %v499 = vpop.f32.mrf.mxu0
  %v500 = vadd.f32 0.0, %v499
  %501 = vmatmul.bf16.gmra.mxu0 %v220
  %v502 = vpop.f32.mrf.mxu0
  %v503 = vadd.f32 0.0, %v502
  %v504 = vpop.f32.mrf.mxu0
  %v505 = vadd.f32 0.0, %v504
  %506 = vmatmul.bf16.gmra.mxu0 %v221
  %v507 = vpop.f32.mrf.mxu0
  %v508 = vadd.f32 0.0, %v507
  %v509 = vpop.f32.mrf.mxu0
  %v510 = vadd.f32 0.0, %v509
  %511 = vdwg.mxu0
  %512 = vmatpush.bf16.msra.mxu0 %v380
  %513 = vmatpush.bf16.msra.mxu0 %v376
  %514 = vmatpush.bf16.msra.mxu0 %v372
  %515 = vmatpush.bf16.msra.mxu0 %v368
  %516 = vmatpush.bf16.msra.mxu0 %v364
  %517 = vmatpush.bf16.msra.mxu0 %v360
  %518 = vmatpush.bf16.msra.mxu0 %v356
  %519 = vmatpush.bf16.msra.mxu0 %v352
  %520 = vmatmul.bf16.gmra.mxu0 %v214
  %v521 = vpop.f32.mrf.mxu0
  %v522 = vadd.f32 0.0, %v521
  %v523 = vpop.f32.mrf.mxu0
  %v524 = vadd.f32 0.0, %v523
  %525 = vmatmul.bf16.gmra.mxu0 %v215
  %v526 = vpop.f32.mrf.mxu0
  %v527 = vadd.f32 0.0, %v526
  %v528 = vpop.f32.mrf.mxu0
  %v529 = vadd.f32 0.0, %v528
  %530 = vmatmul.bf16.gmra.mxu0 %v216
  %v531 = vpop.f32.mrf.mxu0
  %v532 = vadd.f32 0.0, %v531
  %v533 = vpop.f32.mrf.mxu0
  %v534 = vadd.f32 0.0, %v533
  %535 = vmatmul.bf16.gmra.mxu0 %v217
  %v536 = vpop.f32.mrf.mxu0
  %v537 = vadd.f32 0.0, %v536
  %v538 = vpop.f32.mrf.mxu0
  %v539 = vadd.f32 0.0, %v538
  %540 = vmatmul.bf16.gmra.mxu0 %v218
  %v541 = vpop.f32.mrf.mxu0
  %v542 = vadd.f32 0.0, %v541
  %v543 = vpop.f32.mrf.mxu0
  %v544 = vadd.f32 0.0, %v543
  %545 = vmatmul.bf16.gmra.mxu0 %v219
  %v546 = vpop.f32.mrf.mxu0
  %v547 = vadd.f32 0.0, %v546
  %v548 = vpop.f32.mrf.mxu0
  %v549 = vadd.f32 0.0, %v548
  %550 = vmatmul.bf16.gmra.mxu0 %v220
  %v551 = vpop.f32.mrf.mxu0
  %v552 = vadd.f32 0.0, %v551
  %v553 = vpop.f32.mrf.mxu0
  %v554 = vadd.f32 0.0, %v553
  %555 = vmatmul.bf16.gmra.mxu0 %v221
  %v556 = vpop.f32.mrf.mxu0
  %v557 = vadd.f32 0.0, %v556
  %v558 = vpop.f32.mrf.mxu0
  %v559 = vadd.f32 0.0, %v558
  %560 = vdwg.mxu0
  %561 = vmatpush.bf16.msra.mxu0 %v381
  %562 = vmatpush.bf16.msra.mxu0 %v377
  %563 = vmatpush.bf16.msra.mxu0 %v373
  %564 = vmatpush.bf16.msra.mxu0 %v369
  %565 = vmatpush.bf16.msra.mxu0 %v365
  %566 = vmatpush.bf16.msra.mxu0 %v361
  %567 = vmatpush.bf16.msra.mxu0 %v357
  %568 = vmatpush.bf16.msra.mxu0 %v353
  %569 = vmatmul.bf16.gmra.mxu0 %v214
  %v570 = vpop.f32.mrf.mxu0
  %v571 = vadd.f32 0.0, %v570
  %v572 = vpop.f32.mrf.mxu0
  %v573 = vadd.f32 0.0, %v572
  %574 = vmatmul.bf16.gmra.mxu0 %v215
  %v575 = vpop.f32.mrf.mxu0
  %v576 = vadd.f32 0.0, %v575
  %v577 = vpop.f32.mrf.mxu0
  %v578 = vadd.f32 0.0, %v577
  %579 = vmatmul.bf16.gmra.mxu0 %v216
  %v580 = vpop.f32.mrf.mxu0
  %v581 = vadd.f32 0.0, %v580
  %v582 = vpop.f32.mrf.mxu0
  %v583 = vadd.f32 0.0, %v582
  %584 = vmatmul.bf16.gmra.mxu0 %v217
  %v585 = vpop.f32.mrf.mxu0
  %v586 = vadd.f32 0.0, %v585
  %v587 = vpop.f32.mrf.mxu0
  %v588 = vadd.f32 0.0, %v587
  %589 = vmatmul.bf16.gmra.mxu0 %v218
  %v590 = vpop.f32.mrf.mxu0
  %v591 = vadd.f32 0.0, %v590
  %v592 = vpop.f32.mrf.mxu0
  %v593 = vadd.f32 0.0, %v592
  %594 = vmatmul.bf16.gmra.mxu0 %v219
  %v595 = vpop.f32.mrf.mxu0
  %v596 = vadd.f32 0.0, %v595
  %v597 = vpop.f32.mrf.mxu0
  %v598 = vadd.f32 0.0, %v597
  %599 = vmatmul.bf16.gmra.mxu0 %v220
  %v600 = vpop.f32.mrf.mxu0
  %v601 = vadd.f32 0.0, %v600
  %v602 = vpop.f32.mrf.mxu0
  %v603 = vadd.f32 0.0, %v602
  %604 = vmatmul.bf16.gmra.mxu0 %v221
  %v605 = vpop.f32.mrf.mxu0
  %v606 = vadd.f32 0.0, %v605
  %v607 = vpop.f32.mrf.mxu0
  %v608 = vadd.f32 0.0, %v607
  %609 = vdwg.mxu0
  %v610 = vpack.c.bf16 %v473, %v424
  %v611 = vpack.c.bf16 %v571, %v522
  %v612 = vpack.c.bf16 %v475, %v426
  %v613 = vpack.c.bf16 %v573, %v524
  %v614 = vpack.c.bf16 %v478, %v429
  %v615 = vpack.c.bf16 %v576, %v527
  %v616 = vpack.c.bf16 %v480, %v431
  %v617 = vpack.c.bf16 %v578, %v529
  %v618 = vpack.c.bf16 %v483, %v434
  %v619 = vpack.c.bf16 %v581, %v532
  %v620 = vpack.c.bf16 %v485, %v436
  %v621 = vpack.c.bf16 %v583, %v534
  %v622 = vpack.c.bf16 %v488, %v439
  %v623 = vpack.c.bf16 %v586, %v537
  %v624 = vpack.c.bf16 %v490, %v441
  %v625 = vpack.c.bf16 %v588, %v539
  %v626 = vpack.c.bf16 %v493, %v444
  %v627 = vpack.c.bf16 %v591, %v542
  %v628 = vpack.c.bf16 %v495, %v446
  %v629 = vpack.c.bf16 %v593, %v544
  %v630 = vpack.c.bf16 %v498, %v449
  %v631 = vpack.c.bf16 %v596, %v547
  %v632 = vpack.c.bf16 %v500, %v451
  %v633 = vpack.c.bf16 %v598, %v549
  %v634 = vpack.c.bf16 %v503, %v454
  %v635 = vpack.c.bf16 %v601, %v552
  %v636 = vpack.c.bf16 %v505, %v456
  %v637 = vpack.c.bf16 %v603, %v554
  %v638 = vpack.c.bf16 %v508, %v459
  %v639 = vpack.c.bf16 %v606, %v557
  %v640 = vpack.c.bf16 %v510, %v461
  %v641 = vpack.c.bf16 %v608, %v559
  %642 = vst [vmem:[%s4] sm:$0xff] %v610
  %643 = vst [vmem:[%s4 + $0x8] sm:$0xff] %v611
  %644 = vst [vmem:[%s4 + $0x10] sm:$0xff] %v612
  %645 = vst [vmem:[%s4 + $0x18] sm:$0xff] %v613
  %646 = vst [vmem:[%s4 + $0x20] sm:$0xff] %v614
  %647 = vst [vmem:[%s4 + $0x28] sm:$0xff] %v615
  %648 = vst [vmem:[%s4 + $0x30] sm:$0xff] %v616
  %649 = vst [vmem:[%s4 + $0x38] sm:$0xff] %v617
  %650 = vst [vmem:[%s4 + $0x40] sm:$0xff] %v618
  %651 = vst [vmem:[%s4 + $0x48] sm:$0xff] %v619
  %652 = vst [vmem:[%s4 + $0x50] sm:$0xff] %v620
  %653 = vst [vmem:[%s4 + $0x58] sm:$0xff] %v621
  %654 = vst [vmem:[%s4 + $0x60] sm:$0xff] %v622
  %655 = vst [vmem:[%s4 + $0x68] sm:$0xff] %v623
  %656 = vst [vmem:[%s4 + $0x70] sm:$0xff] %v624
  %657 = vst [vmem:[%s4 + $0x78] sm:$0xff] %v625
  %658 = vst [vmem:[%s4 + $0x80] sm:$0xff] %v626
  %659 = vst [vmem:[%s4 + $0x88] sm:$0xff] %v627
  %660 = vst [vmem:[%s4 + $0x90] sm:$0xff] %v628
  %661 = vst [vmem:[%s4 + $0x98] sm:$0xff] %v629
  %662 = vst [vmem:[%s4 + $0xa0] sm:$0xff] %v630
  %663 = vst [vmem:[%s4 + $0xa8] sm:$0xff] %v631
  %664 = vst [vmem:[%s4 + $0xb0] sm:$0xff] %v632
  %665 = vst [vmem:[%s4 + $0xb8] sm:$0xff] %v633
  %666 = vst [vmem:[%s4 + $0xc0] sm:$0xff] %v634
  %667 = vst [vmem:[%s4 + $0xc8] sm:$0xff] %v635
  %668 = vst [vmem:[%s4 + $0xd0] sm:$0xff] %v636
  %669 = vst [vmem:[%s4 + $0xd8] sm:$0xff] %v637
  %670 = vst [vmem:[%s4 + $0xe0] sm:$0xff] %v638
  %671 = vst [vmem:[%s4 + $0xe8] sm:$0xff] %v639
  %672 = vst [vmem:[%s4 + $0xf0] sm:$0xff] %v640
  %673 = vst [vmem:[%s4 + $0xf8] sm:$0xff] %v641
  // Predicated region
  $region18: #{rel_het_graph_forward.5} parent=0 // pred_check
    _
  $region19: #{rel_het_graph_forward.5} parent=0 // pred_check_branch
    %675 = sbr.rel (0) target = $region21
  $region20: #{rel_het_graph_forward.5} parent=0 // pred_region
    _
  $region21: #{rel_het_graph_forward.5} parent=0 // pred_fallthru
    _
  // Predicated region
  $region22: #{rel_het_graph_forward.5} parent=0 // pred_check
    _
  $region23: #{rel_het_graph_forward.5} parent=0 // pred_check_branch
    %677 = sbr.rel (0) target = $region25
  $region24: #{rel_het_graph_forward.5} parent=0 // pred_region
    _
  $region25: #{rel_het_graph_forward.5} parent=0 // pred_fallthru
    _

// kernel: rel_het_graph_forward.6
$region0: #{rel_het_graph_forward.6}
  #allocation0 [shape = 'u32[]', space=smem, size = 0x4, offset = 0x4, fixed_abs, tag = 'smem constant byte address 0x4 - core index']
  #allocation1 [shape = 'u32[72,128]{1,0:T(1,128)}', space=vmem, size = 0x9000, scoped, tag = 'internal scratch']
  %s0 = inlined_call_operand.vmem [shape: bf16[128,128], index: 0, kind: input, shape index: {}]
  %s1 = inlined_call_operand.vmem [shape: bf16[128,128], index: 1, kind: input, shape index: {}]
  %s2 = inlined_call_operand.vmem [shape: f32[1,128], index: 2, kind: input, shape index: {}]
  %s3 = inlined_call_operand.vmem [shape: bf16[128,256], index: 3, kind: input, shape index: {}]
  %s4 = inlined_call_operand.vmem [shape: bf16[128,256], index: 4, kind: output, shape index: {}]
  %s5 = sld [smem:[#allocation0]]
  $region26: #{rel_het_graph_forward.6} parent=0
    _
  %s7 = ssub.s32 1, %s5
  %s8 = scalar_select 0, %s7, %s5
  // Predicated region
  $region2: #{rel_het_graph_forward.6} parent=0 // pred_check
    _
  $region3: #{rel_het_graph_forward.6} parent=0 // pred_check_branch
    %10 = sbr.rel (0) target = $region5
  $region4: #{rel_het_graph_forward.6} parent=0 // pred_region
    _
  $region5: #{rel_het_graph_forward.6} parent=0 // pred_fallthru
    _
  // Predicated region
  $region6: #{rel_het_graph_forward.6} parent=0 // pred_check
    _
  $region7: #{rel_het_graph_forward.6} parent=0 // pred_check_branch
    %12 = sbr.rel (0) target = $region9
  $region8: #{rel_het_graph_forward.6} parent=0 // pred_region
    _
  $region9: #{rel_het_graph_forward.6} parent=0 // pred_fallthru
    _
  // Predicated region
  $region10: #{rel_het_graph_forward.6} parent=0 // pred_check
    _
  $region11: #{rel_het_graph_forward.6} parent=0 // pred_check_branch
    %14 = sbr.rel (0) target = $region13
  $region12: #{rel_het_graph_forward.6} parent=0 // pred_region
    _
  $region13: #{rel_het_graph_forward.6} parent=0 // pred_fallthru
    _
  // Predicated region
  $region14: #{rel_het_graph_forward.6} parent=0 // pred_check
    _
  $region15: #{rel_het_graph_forward.6} parent=0 // pred_check_branch
    %16 = sbr.rel (0) target = $region17
  $region16: #{rel_het_graph_forward.6} parent=0 // pred_region
    _
  $region17: #{rel_het_graph_forward.6} parent=0 // pred_fallthru
    _
  %v17 = vld [vmem:[%s0] sm:$0xf]
  %v18 = vld [vmem:[%s0 + $0x4] sm:$0xf]
  %v19 = vld [vmem:[%s0 + $0x8] sm:$0xf]
  %v20 = vld [vmem:[%s0 + $0xc] sm:$0xf]
  %v21 = vld [vmem:[%s0 + $0x10] sm:$0xf]
  %v22 = vld [vmem:[%s0 + $0x14] sm:$0xf]
  %v23 = vld [vmem:[%s0 + $0x18] sm:$0xf]
  %v24 = vld [vmem:[%s0 + $0x1c] sm:$0xf]
  %v25 = vld [vmem:[%s0 + $0x20] sm:$0xf]
  %v26 = vld [vmem:[%s0 + $0x24] sm:$0xf]
  %v27 = vld [vmem:[%s0 + $0x28] sm:$0xf]
  %v28 = vld [vmem:[%s0 + $0x2c] sm:$0xf]
  %v29 = vld [vmem:[%s0 + $0x30] sm:$0xf]
  %v30 = vld [vmem:[%s0 + $0x34] sm:$0xf]
  %v31 = vld [vmem:[%s0 + $0x38] sm:$0xf]
  %v32 = vld [vmem:[%s0 + $0x3c] sm:$0xf]
  %v33 = vld [vmem:[%s1] sm:$0xf]
  %v34 = vld [vmem:[%s1 + $0x4] sm:$0xf]
  %v35 = vld [vmem:[%s1 + $0x8] sm:$0xf]
  %v36 = vld [vmem:[%s1 + $0xc] sm:$0xf]
  %v37 = vld [vmem:[%s1 + $0x10] sm:$0xf]
  %v38 = vld [vmem:[%s1 + $0x14] sm:$0xf]
  %v39 = vld [vmem:[%s1 + $0x18] sm:$0xf]
  %v40 = vld [vmem:[%s1 + $0x1c] sm:$0xf]
  %v41 = vld [vmem:[%s1 + $0x20] sm:$0xf]
  %v42 = vld [vmem:[%s1 + $0x24] sm:$0xf]
  %v43 = vld [vmem:[%s1 + $0x28] sm:$0xf]
  %v44 = vld [vmem:[%s1 + $0x2c] sm:$0xf]
  %v45 = vld [vmem:[%s1 + $0x30] sm:$0xf]
  %v46 = vld [vmem:[%s1 + $0x34] sm:$0xf]
  %v47 = vld [vmem:[%s1 + $0x38] sm:$0xf]
  %v48 = vld [vmem:[%s1 + $0x3c] sm:$0xf]
  %v49 = vld [vmem:[%s2] sm:$0x1]
  %v51 = vperm.slane %v49, 0
  %v69 = vunpack.c.l.b16 %v17
  %v70 = vunpack.c.l.b16 %v18
  %v71 = vunpack.c.l.b16 %v19
  %v72 = vunpack.c.l.b16 %v20
  %v73 = vunpack.c.l.b16 %v21
  %v74 = vunpack.c.l.b16 %v22
  %v75 = vunpack.c.l.b16 %v23
  %v76 = vunpack.c.l.b16 %v24
  %v77 = vunpack.c.l.b16 %v25
  %v78 = vunpack.c.l.b16 %v26
  %v79 = vunpack.c.l.b16 %v27
  %v80 = vunpack.c.l.b16 %v28
  %v81 = vunpack.c.l.b16 %v29
  %v82 = vunpack.c.l.b16 %v30
  %v83 = vunpack.c.l.b16 %v31
  %v84 = vunpack.c.l.b16 %v32
  %v85 = vpack.c.b16 %v70, %v69
  %v86 = vpack.c.b16 %v72, %v71
  %v87 = vpack.c.b16 %v74, %v73
  %v88 = vpack.c.b16 %v76, %v75
  %v89 = vpack.c.b16 %v78, %v77
  %v90 = vpack.c.b16 %v80, %v79
  %v91 = vpack.c.b16 %v82, %v81
  %v92 = vpack.c.b16 %v84, %v83
  %v117 = vunpack.c.l.b16 %v33
  %v118 = vunpack.c.l.b16 %v34
  %v119 = vunpack.c.l.b16 %v35
  %v120 = vunpack.c.l.b16 %v36
  %v121 = vunpack.c.l.b16 %v37
  %v122 = vunpack.c.l.b16 %v38
  %v123 = vunpack.c.l.b16 %v39
  %v124 = vunpack.c.l.b16 %v40
  %v125 = vunpack.c.l.b16 %v41
  %v126 = vunpack.c.l.b16 %v42
  %v127 = vunpack.c.l.b16 %v43
  %v128 = vunpack.c.l.b16 %v44
  %v129 = vunpack.c.l.b16 %v45
  %v130 = vunpack.c.l.b16 %v46
  %v131 = vunpack.c.l.b16 %v47
  %v132 = vunpack.c.l.b16 %v48
  %v133 = vpack.c.b16 %v118, %v117
  %v134 = vpack.c.b16 %v120, %v119
  %v135 = vpack.c.b16 %v122, %v121
  %v136 = vpack.c.b16 %v124, %v123
  %v137 = vpack.c.b16 %v126, %v125
  %v138 = vpack.c.b16 %v128, %v127
  %v139 = vpack.c.b16 %v130, %v129
  %v140 = vpack.c.b16 %v132, %v131
  %149 = vmatpush.bf16.msra.mxu0 %v140
  %150 = vmatpush.bf16.msra.mxu0 %v139
  %151 = vmatpush.bf16.msra.mxu0 %v138
  %152 = vmatpush.bf16.msra.mxu0 %v137
  %153 = vmatpush.bf16.msra.mxu0 %v136
  %154 = vmatpush.bf16.msra.mxu0 %v135
  %155 = vmatpush.bf16.msra.mxu0 %v134
  %156 = vmatpush.bf16.msra.mxu0 %v133
  %157 = vmatmul.bf16.gmra.mxu0 %v85
  %v158 = vpop.f32.mrf.mxu0
  %v159 = vadd.f32 %v51, %v158
  %v160 = vpop.f32.mrf.mxu0
  %v161 = vadd.f32 %v51, %v160
  %162 = vmatmul.bf16.gmra.mxu0 %v86
  %v163 = vpop.f32.mrf.mxu0
  %v164 = vadd.f32 %v51, %v163
  %v165 = vpop.f32.mrf.mxu0
  %v166 = vadd.f32 %v51, %v165
  %167 = vmatmul.bf16.gmra.mxu0 %v87
  %v168 = vpop.f32.mrf.mxu0
  %v169 = vadd.f32 %v51, %v168
  %v170 = vpop.f32.mrf.mxu0
  %v171 = vadd.f32 %v51, %v170
  %172 = vmatmul.bf16.gmra.mxu0 %v88
  %v173 = vpop.f32.mrf.mxu0
  %v174 = vadd.f32 %v51, %v173
  %v175 = vpop.f32.mrf.mxu0
  %v176 = vadd.f32 %v51, %v175
  %177 = vmatmul.bf16.gmra.mxu0 %v89
  %v178 = vpop.f32.mrf.mxu0
  %v179 = vadd.f32 %v51, %v178
  %v180 = vpop.f32.mrf.mxu0
  %v181 = vadd.f32 %v51, %v180
  %182 = vmatmul.bf16.gmra.mxu0 %v90
  %v183 = vpop.f32.mrf.mxu0
  %v184 = vadd.f32 %v51, %v183
  %v185 = vpop.f32.mrf.mxu0
  %v186 = vadd.f32 %v51, %v185
  %187 = vmatmul.bf16.gmra.mxu0 %v91
  %v188 = vpop.f32.mrf.mxu0
  %v189 = vadd.f32 %v51, %v188
  %v190 = vpop.f32.mrf.mxu0
  %v191 = vadd.f32 %v51, %v190
  %192 = vmatmul.bf16.gmra.mxu0 %v92
  %v193 = vpop.f32.mrf.mxu0
  %v194 = vadd.f32 %v51, %v193
  %v195 = vpop.f32.mrf.mxu0
  %v196 = vadd.f32 %v51, %v195
  %197 = vdwg.mxu0
  %v198 = vmax.f32 %v159, 0.0
  %v199 = vmax.f32 %v161, 0.0
  %v200 = vmax.f32 %v164, 0.0
  %v201 = vmax.f32 %v166, 0.0
  %v202 = vmax.f32 %v169, 0.0
  %v203 = vmax.f32 %v171, 0.0
  %v204 = vmax.f32 %v174, 0.0
  %v205 = vmax.f32 %v176, 0.0
  %v206 = vmax.f32 %v179, 0.0
  %v207 = vmax.f32 %v181, 0.0
  %v208 = vmax.f32 %v184, 0.0
  %v209 = vmax.f32 %v186, 0.0
  %v210 = vmax.f32 %v189, 0.0
  %v211 = vmax.f32 %v191, 0.0
  %v212 = vmax.f32 %v194, 0.0
  %v213 = vmax.f32 %v196, 0.0
  %v214 = vpack.c.bf16 %v199, %v198
  %v215 = vpack.c.bf16 %v201, %v200
  %v216 = vpack.c.bf16 %v203, %v202
  %v217 = vpack.c.bf16 %v205, %v204
  %v218 = vpack.c.bf16 %v207, %v206
  %v219 = vpack.c.bf16 %v209, %v208
  %v220 = vpack.c.bf16 %v211, %v210
  %v221 = vpack.c.bf16 %v213, %v212
  %v222 = vld [vmem:[%s3] sm:$0xff]
  %v223 = vld [vmem:[%s3 + $0x8] sm:$0xff]
  %v224 = vld [vmem:[%s3 + $0x10] sm:$0xff]
  %v225 = vld [vmem:[%s3 + $0x18] sm:$0xff]
  %v226 = vld [vmem:[%s3 + $0x20] sm:$0xff]
  %v227 = vld [vmem:[%s3 + $0x28] sm:$0xff]
  %v228 = vld [vmem:[%s3 + $0x30] sm:$0xff]
  %v229 = vld [vmem:[%s3 + $0x38] sm:$0xff]
  %v230 = vld [vmem:[%s3 + $0x40] sm:$0xff]
  %v231 = vld [vmem:[%s3 + $0x48] sm:$0xff]
  %v232 = vld [vmem:[%s3 + $0x50] sm:$0xff]
  %v233 = vld [vmem:[%s3 + $0x58] sm:$0xff]
  %v234 = vld [vmem:[%s3 + $0x60] sm:$0xff]
  %v235 = vld [vmem:[%s3 + $0x68] sm:$0xff]
  %v236 = vld [vmem:[%s3 + $0x70] sm:$0xff]
  %v237 = vld [vmem:[%s3 + $0x78] sm:$0xff]
  %v254 = vunpack.c.l.b16 %v222
  %v255 = vunpack.c.h.b16 %v222
  %v256 = vunpack.c.l.b16 %v223
  %v257 = vunpack.c.h.b16 %v223
  %v258 = vunpack.c.l.b16 %v224
  %v259 = vunpack.c.h.b16 %v224
  %v260 = vunpack.c.l.b16 %v225
  %v261 = vunpack.c.h.b16 %v225
  %v262 = vunpack.c.l.b16 %v226
  %v263 = vunpack.c.h.b16 %v226
  %v264 = vunpack.c.l.b16 %v227
  %v265 = vunpack.c.h.b16 %v227
  %v266 = vunpack.c.l.b16 %v228
  %v267 = vunpack.c.h.b16 %v228
  %v268 = vunpack.c.l.b16 %v229
  %v269 = vunpack.c.h.b16 %v229
  %v270 = vunpack.c.l.b16 %v230
  %v271 = vunpack.c.h.b16 %v230
  %v272 = vunpack.c.l.b16 %v231
  %v273 = vunpack.c.h.b16 %v231
  %v274 = vunpack.c.l.b16 %v232
  %v275 = vunpack.c.h.b16 %v232
  %v276 = vunpack.c.l.b16 %v233
  %v277 = vunpack.c.h.b16 %v233
  %v278 = vunpack.c.l.b16 %v234
  %v279 = vunpack.c.h.b16 %v234
  %v280 = vunpack.c.l.b16 %v235
  %v281 = vunpack.c.h.b16 %v235
  %v282 = vunpack.c.l.b16 %v236
  %v283 = vunpack.c.h.b16 %v236
  %v284 = vunpack.c.l.b16 %v237
  %v285 = vunpack.c.h.b16 %v237
  %v286 = vpack.c.b16 %v256, %v254
  %v287 = vpack.c.b16 %v257, %v255
  %v288 = vpack.c.b16 %v260, %v258
  %v289 = vpack.c.b16 %v261, %v259
  %v290 = vpack.c.b16 %v264, %v262
  %v291 = vpack.c.b16 %v265, %v263
  %v292 = vpack.c.b16 %v268, %v266
  %v293 = vpack.c.b16 %v269, %v267
  %v294 = vpack.c.b16 %v272, %v270
  %v295 = vpack.c.b16 %v273, %v271
  %v296 = vpack.c.b16 %v276, %v274
  %v297 = vpack.c.b16 %v277, %v275
  %v298 = vpack.c.b16 %v280, %v278
  %v299 = vpack.c.b16 %v281, %v279
  %v300 = vpack.c.b16 %v284, %v282
  %v301 = vpack.c.b16 %v285, %v283
  %318 = vmatpush.bf16.msra.mxu0 %v300
  %319 = vmatpush.bf16.msra.mxu0 %v298
  %320 = vmatpush.bf16.msra.mxu0 %v296
  %321 = vmatpush.bf16.msra.mxu0 %v294
  %322 = vmatpush.bf16.msra.mxu0 %v292
  %323 = vmatpush.bf16.msra.mxu0 %v290
  %324 = vmatpush.bf16.msra.mxu0 %v288
  %325 = vmatpush.bf16.msra.mxu0 %v286
  %326 = vmatmul.bf16.gmra.mxu0 %v214
  %v327 = vpop.f32.mrf.mxu0
  %v328 = vadd.f32 0.0, %v327
  %v329 = vpop.f32.mrf.mxu0
  %v330 = vadd.f32 0.0, %v329
  %331 = vmatmul.bf16.gmra.mxu0 %v215
  %v332 = vpop.f32.mrf.mxu0
  %v333 = vadd.f32 0.0, %v332
  %v334 = vpop.f32.mrf.mxu0
  %v335 = vadd.f32 0.0, %v334
  %336 = vmatmul.bf16.gmra.mxu0 %v216
  %v337 = vpop.f32.mrf.mxu0
  %v338 = vadd.f32 0.0, %v337
  %v339 = vpop.f32.mrf.mxu0
  %v340 = vadd.f32 0.0, %v339
  %341 = vmatmul.bf16.gmra.mxu0 %v217
  %v342 = vpop.f32.mrf.mxu0
  %v343 = vadd.f32 0.0, %v342
  %v344 = vpop.f32.mrf.mxu0
  %v345 = vadd.f32 0.0, %v344
  %346 = vmatmul.bf16.gmra.mxu0 %v218
  %v347 = vpop.f32.mrf.mxu0
  %v348 = vadd.f32 0.0, %v347
  %v349 = vpop.f32.mrf.mxu0
  %v350 = vadd.f32 0.0, %v349
  %351 = vmatmul.bf16.gmra.mxu0 %v219
  %v352 = vpop.f32.mrf.mxu0
  %v353 = vadd.f32 0.0, %v352
  %v354 = vpop.f32.mrf.mxu0
  %v355 = vadd.f32 0.0, %v354
  %356 = vmatmul.bf16.gmra.mxu0 %v220
  %v357 = vpop.f32.mrf.mxu0
  %v358 = vadd.f32 0.0, %v357
  %v359 = vpop.f32.mrf.mxu0
  %v360 = vadd.f32 0.0, %v359
  %361 = vmatmul.bf16.gmra.mxu0 %v221
  %v362 = vpop.f32.mrf.mxu0
  %v363 = vadd.f32 0.0, %v362
  %v364 = vpop.f32.mrf.mxu0
  %v365 = vadd.f32 0.0, %v364
  %366 = vdwg.mxu0
  %367 = vmatpush.bf16.msra.mxu0 %v301
  %368 = vmatpush.bf16.msra.mxu0 %v299
  %369 = vmatpush.bf16.msra.mxu0 %v297
  %370 = vmatpush.bf16.msra.mxu0 %v295
  %371 = vmatpush.bf16.msra.mxu0 %v293
  %372 = vmatpush.bf16.msra.mxu0 %v291
  %373 = vmatpush.bf16.msra.mxu0 %v289
  %374 = vmatpush.bf16.msra.mxu0 %v287
  %375 = vmatmul.bf16.gmra.mxu0 %v214
  %v376 = vpop.f32.mrf.mxu0
  %v377 = vadd.f32 0.0, %v376
  %v378 = vpop.f32.mrf.mxu0
  %v379 = vadd.f32 0.0, %v378
  %380 = vmatmul.bf16.gmra.mxu0 %v215
  %v381 = vpop.f32.mrf.mxu0
  %v382 = vadd.f32 0.0, %v381
  %v383 = vpop.f32.mrf.mxu0
  %v384 = vadd.f32 0.0, %v383
  %385 = vmatmul.bf16.gmra.mxu0 %v216
  %v386 = vpop.f32.mrf.mxu0
  %v387 = vadd.f32 0.0, %v386
  %v388 = vpop.f32.mrf.mxu0
  %v389 = vadd.f32 0.0, %v388
  %390 = vmatmul.bf16.gmra.mxu0 %v217
  %v391 = vpop.f32.mrf.mxu0
  %v392 = vadd.f32 0.0, %v391
  %v393 = vpop.f32.mrf.mxu0
  %v394 = vadd.f32 0.0, %v393
  %395 = vmatmul.bf16.gmra.mxu0 %v218
  %v396 = vpop.f32.mrf.mxu0
  %v397 = vadd.f32 0.0, %v396
  %v398 = vpop.f32.mrf.mxu0
  %v399 = vadd.f32 0.0, %v398
  %400 = vmatmul.bf16.gmra.mxu0 %v219
  %v401 = vpop.f32.mrf.mxu0
  %v402 = vadd.f32 0.0, %v401
  %v403 = vpop.f32.mrf.mxu0
  %v404 = vadd.f32 0.0, %v403
  %405 = vmatmul.bf16.gmra.mxu0 %v220
  %v406 = vpop.f32.mrf.mxu0
  %v407 = vadd.f32 0.0, %v406
  %v408 = vpop.f32.mrf.mxu0
  %v409 = vadd.f32 0.0, %v408
  %410 = vmatmul.bf16.gmra.mxu0 %v221
  %v411 = vpop.f32.mrf.mxu0
  %v412 = vadd.f32 0.0, %v411
  %v413 = vpop.f32.mrf.mxu0
  %v414 = vadd.f32 0.0, %v413
  %415 = vdwg.mxu0
  %v416 = vpack.c.bf16 %v377, %v328
  %v417 = vpack.c.bf16 %v379, %v330
  %v418 = vpack.c.bf16 %v382, %v333
  %v419 = vpack.c.bf16 %v384, %v335
  %v420 = vpack.c.bf16 %v387, %v338
  %v421 = vpack.c.bf16 %v389, %v340
  %v422 = vpack.c.bf16 %v392, %v343
  %v423 = vpack.c.bf16 %v394, %v345
  %v424 = vpack.c.bf16 %v397, %v348
  %v425 = vpack.c.bf16 %v399, %v350
  %v426 = vpack.c.bf16 %v402, %v353
  %v427 = vpack.c.bf16 %v404, %v355
  %v428 = vpack.c.bf16 %v407, %v358
  %v429 = vpack.c.bf16 %v409, %v360
  %v430 = vpack.c.bf16 %v412, %v363
  %v431 = vpack.c.bf16 %v414, %v365
  %432 = vst [vmem:[%s4] sm:$0xff] %v416
  %433 = vst [vmem:[%s4 + $0x8] sm:$0xff] %v417
  %434 = vst [vmem:[%s4 + $0x10] sm:$0xff] %v418
  %435 = vst [vmem:[%s4 + $0x18] sm:$0xff] %v419
  %436 = vst [vmem:[%s4 + $0x20] sm:$0xff] %v420
  %437 = vst [vmem:[%s4 + $0x28] sm:$0xff] %v421
  %438 = vst [vmem:[%s4 + $0x30] sm:$0xff] %v422
  %439 = vst [vmem:[%s4 + $0x38] sm:$0xff] %v423
  %440 = vst [vmem:[%s4 + $0x40] sm:$0xff] %v424
  %441 = vst [vmem:[%s4 + $0x48] sm:$0xff] %v425
  %442 = vst [vmem:[%s4 + $0x50] sm:$0xff] %v426
  %443 = vst [vmem:[%s4 + $0x58] sm:$0xff] %v427
  %444 = vst [vmem:[%s4 + $0x60] sm:$0xff] %v428
  %445 = vst [vmem:[%s4 + $0x68] sm:$0xff] %v429
  %446 = vst [vmem:[%s4 + $0x70] sm:$0xff] %v430
  %447 = vst [vmem:[%s4 + $0x78] sm:$0xff] %v431
  // Predicated region
  $region18: #{rel_het_graph_forward.6} parent=0 // pred_check
    _
  $region19: #{rel_het_graph_forward.6} parent=0 // pred_check_branch
    %449 = sbr.rel (0) target = $region21
  $region20: #{rel_het_graph_forward.6} parent=0 // pred_region
    _
  $region21: #{rel_het_graph_forward.6} parent=0 // pred_fallthru
    _
  // Predicated region
  $region22: #{rel_het_graph_forward.6} parent=0 // pred_check
    _
  $region23: #{rel_het_graph_forward.6} parent=0 // pred_check_branch
    %451 = sbr.rel (0) target = $region25
  $region24: #{rel_het_graph_forward.6} parent=0 // pred_region
    _
  $region25: #{rel_het_graph_forward.6} parent=0 // pred_fallthru
    _

// kernel: rel_het_graph_forward.9
$region0: #{rel_het_graph_forward.9}
  #allocation0 [shape = 'u32[]', space=smem, size = 0x4, offset = 0x4, fixed_abs, tag = 'smem constant byte address 0x4 - core index']
  #allocation1 [shape = 'u32[72,128]{1,0:T(1,128)}', space=vmem, size = 0x9000, scoped, tag = 'internal scratch']
  %s0 = inlined_call_operand.vmem [shape: bf16[128,128], index: 0, kind: input, shape index: {}]
  %s1 = inlined_call_operand.vmem [shape: bf16[128,128], index: 1, kind: input, shape index: {}]
  %s2 = inlined_call_operand.vmem [shape: bf16[128,128], index: 2, kind: input, shape index: {}]
  %s3 = inlined_call_operand.vmem [shape: bf16[128,128], index: 3, kind: input, shape index: {}]
  %s4 = inlined_call_operand.vmem [shape: f32[1,128], index: 4, kind: input, shape index: {}]
  %s5 = inlined_call_operand.vmem [shape: f32[1,128], index: 5, kind: input, shape index: {}]
  %s6 = inlined_call_operand.vmem [shape: f32[128,2], index: 6, kind: input, shape index: {}]
  %s7 = inlined_call_operand.vmem [shape: f32[1,128], index: 7, kind: input, shape index: {}]
  %s8 = inlined_call_operand.vmem [shape: f32[128,128], index: 8, kind: output, shape index: {}]
  %s9 = sld [smem:[#allocation0]]
  $region42: #{rel_het_graph_forward.9} parent=0
    _
  %s11 = ssub.s32 1, %s9
  %s12 = scalar_select 0, %s11, %s9
  // Predicated region
  $region2: #{rel_het_graph_forward.9} parent=0 // pred_check
    _
  $region3: #{rel_het_graph_forward.9} parent=0 // pred_check_branch
    %14 = sbr.rel (0) target = $region5
  $region4: #{rel_het_graph_forward.9} parent=0 // pred_region
    _
  $region5: #{rel_het_graph_forward.9} parent=0 // pred_fallthru
    _
  // Predicated region
  $region6: #{rel_het_graph_forward.9} parent=0 // pred_check
    _
  $region7: #{rel_het_graph_forward.9} parent=0 // pred_check_branch
    %16 = sbr.rel (0) target = $region9
  $region8: #{rel_het_graph_forward.9} parent=0 // pred_region
    _
  $region9: #{rel_het_graph_forward.9} parent=0 // pred_fallthru
    _
  // Predicated region
  $region10: #{rel_het_graph_forward.9} parent=0 // pred_check
    _
  $region11: #{rel_het_graph_forward.9} parent=0 // pred_check_branch
    %18 = sbr.rel (0) target = $region13
  $region12: #{rel_het_graph_forward.9} parent=0 // pred_region
    _
  $region13: #{rel_het_graph_forward.9} parent=0 // pred_fallthru
    _
  // Predicated region
  $region14: #{rel_het_graph_forward.9} parent=0 // pred_check
    _
  $region15: #{rel_het_graph_forward.9} parent=0 // pred_check_branch
    %20 = sbr.rel (0) target = $region17
  $region16: #{rel_het_graph_forward.9} parent=0 // pred_region
    _
  $region17: #{rel_het_graph_forward.9} parent=0 // pred_fallthru
    _
  // Predicated region
  $region18: #{rel_het_graph_forward.9} parent=0 // pred_check
    _
  $region19: #{rel_het_graph_forward.9} parent=0 // pred_check_branch
    %22 = sbr.rel (0) target = $region21
  $region20: #{rel_het_graph_forward.9} parent=0 // pred_region
    _
  $region21: #{rel_het_graph_forward.9} parent=0 // pred_fallthru
    _
  // Predicated region
  $region22: #{rel_het_graph_forward.9} parent=0 // pred_check
    _
  $region23: #{rel_het_graph_forward.9} parent=0 // pred_check_branch
    %24 = sbr.rel (0) target = $region25
  $region24: #{rel_het_graph_forward.9} parent=0 // pred_region
    _
  $region25: #{rel_het_graph_forward.9} parent=0 // pred_fallthru
    _
  // Predicated region
  $region26: #{rel_het_graph_forward.9} parent=0 // pred_check
    _
  $region27: #{rel_het_graph_forward.9} parent=0 // pred_check_branch
    %26 = sbr.rel (0) target = $region29
  $region28: #{rel_het_graph_forward.9} parent=0 // pred_region
    _
  $region29: #{rel_het_graph_forward.9} parent=0 // pred_fallthru
    _
  // Predicated region
  $region30: #{rel_het_graph_forward.9} parent=0 // pred_check
    _
  $region31: #{rel_het_graph_forward.9} parent=0 // pred_check_branch
    %28 = sbr.rel (0) target = $region33
  $region32: #{rel_het_graph_forward.9} parent=0 // pred_region
    _
  $region33: #{rel_het_graph_forward.9} parent=0 // pred_fallthru
    _
  %v29 = vld [vmem:[%s0] sm:$0xf]
  %v30 = vld [vmem:[%s0 + $0x4] sm:$0xf]
  %v31 = vld [vmem:[%s0 + $0x8] sm:$0xf]
  %v32 = vld [vmem:[%s0 + $0xc] sm:$0xf]
  %v33 = vld [vmem:[%s0 + $0x10] sm:$0xf]
  %v34 = vld [vmem:[%s0 + $0x14] sm:$0xf]
  %v35 = vld [vmem:[%s0 + $0x18] sm:$0xf]
  %v36 = vld [vmem:[%s0 + $0x1c] sm:$0xf]
  %v37 = vld [vmem:[%s0 + $0x20] sm:$0xf]
  %v38 = vld [vmem:[%s0 + $0x24] sm:$0xf]
  %v39 = vld [vmem:[%s0 + $0x28] sm:$0xf]
  %v40 = vld [vmem:[%s0 + $0x2c] sm:$0xf]
  %v41 = vld [vmem:[%s0 + $0x30] sm:$0xf]
  %v42 = vld [vmem:[%s0 + $0x34] sm:$0xf]
  %v43 = vld [vmem:[%s0 + $0x38] sm:$0xf]
  %v44 = vld [vmem:[%s0 + $0x3c] sm:$0xf]
  %v45 = vunpack.c.l.bf16 %v29
  %v46 = vunpack.c.l.bf16 %v30
  %v47 = vunpack.c.l.bf16 %v31
  %v48 = vunpack.c.l.bf16 %v32
  %v49 = vunpack.c.l.bf16 %v33
  %v50 = vunpack.c.l.bf16 %v34
  %v51 = vunpack.c.l.bf16 %v35
  %v52 = vunpack.c.l.bf16 %v36
  %v53 = vunpack.c.l.bf16 %v37
  %v54 = vunpack.c.l.bf16 %v38
  %v55 = vunpack.c.l.bf16 %v39
  %v56 = vunpack.c.l.bf16 %v40
  %v57 = vunpack.c.l.bf16 %v41
  %v58 = vunpack.c.l.bf16 %v42
  %v59 = vunpack.c.l.bf16 %v43
  %v60 = vunpack.c.l.bf16 %v44
  %v61 = vld [vmem:[%s1] sm:$0xf]
  %v62 = vld [vmem:[%s1 + $0x4] sm:$0xf]
  %v63 = vld [vmem:[%s1 + $0x8] sm:$0xf]
  %v64 = vld [vmem:[%s1 + $0xc] sm:$0xf]
  %v65 = vld [vmem:[%s1 + $0x10] sm:$0xf]
  %v66 = vld [vmem:[%s1 + $0x14] sm:$0xf]
  %v67 = vld [vmem:[%s1 + $0x18] sm:$0xf]
  %v68 = vld [vmem:[%s1 + $0x1c] sm:$0xf]
  %v69 = vld [vmem:[%s1 + $0x20] sm:$0xf]
  %v70 = vld [vmem:[%s1 + $0x24] sm:$0xf]
  %v71 = vld [vmem:[%s1 + $0x28] sm:$0xf]
  %v72 = vld [vmem:[%s1 + $0x2c] sm:$0xf]
  %v73 = vld [vmem:[%s1 + $0x30] sm:$0xf]
  %v74 = vld [vmem:[%s1 + $0x34] sm:$0xf]
  %v75 = vld [vmem:[%s1 + $0x38] sm:$0xf]
  %v76 = vld [vmem:[%s1 + $0x3c] sm:$0xf]
  %v77 = vunpack.c.l.bf16 %v61
  %v78 = vunpack.c.l.bf16 %v62
  %v79 = vunpack.c.l.bf16 %v63
  %v80 = vunpack.c.l.bf16 %v64
  %v81 = vunpack.c.l.bf16 %v65
  %v82 = vunpack.c.l.bf16 %v66
  %v83 = vunpack.c.l.bf16 %v67
  %v84 = vunpack.c.l.bf16 %v68
  %v85 = vunpack.c.l.bf16 %v69
  %v86 = vunpack.c.l.bf16 %v70
  %v87 = vunpack.c.l.bf16 %v71
  %v88 = vunpack.c.l.bf16 %v72
  %v89 = vunpack.c.l.bf16 %v73
  %v90 = vunpack.c.l.bf16 %v74
  %v91 = vunpack.c.l.bf16 %v75
  %v92 = vunpack.c.l.bf16 %v76
  %v93 = vld [vmem:[%s6] sm:$0xff]
  %v94 = vld [vmem:[%s6 + $0x8] sm:$0xff]
  %v95 = vld [vmem:[%s6 + $0x10] sm:$0xff]
  %v96 = vld [vmem:[%s6 + $0x18] sm:$0xff]
  %v97 = vld [vmem:[%s6 + $0x20] sm:$0xff]
  %v98 = vld [vmem:[%s6 + $0x28] sm:$0xff]
  %v99 = vld [vmem:[%s6 + $0x30] sm:$0xff]
  %v100 = vld [vmem:[%s6 + $0x38] sm:$0xff]
  %v101 = vld [vmem:[%s6 + $0x40] sm:$0xff]
  %v102 = vld [vmem:[%s6 + $0x48] sm:$0xff]
  %v103 = vld [vmem:[%s6 + $0x50] sm:$0xff]
  %v104 = vld [vmem:[%s6 + $0x58] sm:$0xff]
  %v105 = vld [vmem:[%s6 + $0x60] sm:$0xff]
  %v106 = vld [vmem:[%s6 + $0x68] sm:$0xff]
  %v107 = vld [vmem:[%s6 + $0x70] sm:$0xff]
  %v108 = vld [vmem:[%s6 + $0x78] sm:$0xff]
  %v109 = vld [vmem:[%s4] sm:$0x1]
  %v110 = vld [vmem:[%s5] sm:$0x1]
  %112 = vset.pattern.permute.xlu0 0
  %113 = vperm.xlu0 %112, %v93
  %v114 = vpop.permute.xlu0 %113
  %117 = vset.pattern.permute.xlu0 0
  %118 = vperm.xlu0 %117, %v94
  %v119 = vpop.permute.xlu0 %118
  %122 = vset.pattern.permute.xlu0 0
  %123 = vperm.xlu0 %122, %v95
  %v124 = vpop.permute.xlu0 %123
  %127 = vset.pattern.permute.xlu0 0
  %128 = vperm.xlu0 %127, %v96
  %v129 = vpop.permute.xlu0 %128
  %132 = vset.pattern.permute.xlu0 0
  %133 = vperm.xlu0 %132, %v97
  %v134 = vpop.permute.xlu0 %133
  %137 = vset.pattern.permute.xlu0 0
  %138 = vperm.xlu0 %137, %v98
  %v139 = vpop.permute.xlu0 %138
  %142 = vset.pattern.permute.xlu0 0
  %143 = vperm.xlu0 %142, %v99
  %v144 = vpop.permute.xlu0 %143
  %147 = vset.pattern.permute.xlu0 0
  %148 = vperm.xlu0 %147, %v100
  %v149 = vpop.permute.xlu0 %148
  %152 = vset.pattern.permute.xlu0 0
  %153 = vperm.xlu0 %152, %v101
  %v154 = vpop.permute.xlu0 %153
  %157 = vset.pattern.permute.xlu0 0
  %158 = vperm.xlu0 %157, %v102
  %v159 = vpop.permute.xlu0 %158
  %162 = vset.pattern.permute.xlu0 0
  %163 = vperm.xlu0 %162, %v103
  %v164 = vpop.permute.xlu0 %163
  %167 = vset.pattern.permute.xlu0 0
  %168 = vperm.xlu0 %167, %v104
  %v169 = vpop.permute.xlu0 %168
  %172 = vset.pattern.permute.xlu0 0
  %173 = vperm.xlu0 %172, %v105
  %v174 = vpop.permute.xlu0 %173
  %177 = vset.pattern.permute.xlu0 0
  %178 = vperm.xlu0 %177, %v106
  %v179 = vpop.permute.xlu0 %178
  %182 = vset.pattern.permute.xlu0 0
  %183 = vperm.xlu0 %182, %v107
  %v184 = vpop.permute.xlu0 %183
  %187 = vset.pattern.permute.xlu0 0
  %188 = vperm.xlu0 %187, %v108
  %v189 = vpop.permute.xlu0 %188
  %v192 = vperm.slane %v109, 0
  %v194 = vadd.f32 %v114, %v192
  %v195 = vadd.f32 %v119, %v192
  %v196 = vadd.f32 %v124, %v192
  %v197 = vadd.f32 %v129, %v192
  %v198 = vadd.f32 %v134, %v192
  %v199 = vadd.f32 %v139, %v192
  %v200 = vadd.f32 %v144, %v192
  %v201 = vadd.f32 %v149, %v192
  %v202 = vadd.f32 %v154, %v192
  %v203 = vadd.f32 %v159, %v192
  %v204 = vadd.f32 %v164, %v192
  %v205 = vadd.f32 %v169, %v192
  %v206 = vadd.f32 %v174, %v192
  %v207 = vadd.f32 %v179, %v192
  %v208 = vadd.f32 %v184, %v192
  %v209 = vadd.f32 %v189, %v192
  %vm210 = vcmp.gt.f32.partialorder %v194, 0.0
  %vm211 = vcmp.gt.f32.partialorder %v195, 0.0
  %vm212 = vcmp.gt.f32.partialorder %v196, 0.0
  %vm213 = vcmp.gt.f32.partialorder %v197, 0.0
  %vm214 = vcmp.gt.f32.partialorder %v198, 0.0
  %vm215 = vcmp.gt.f32.partialorder %v199, 0.0
  %vm216 = vcmp.gt.f32.partialorder %v200, 0.0
  %vm217 = vcmp.gt.f32.partialorder %v201, 0.0
  %vm218 = vcmp.gt.f32.partialorder %v202, 0.0
  %vm219 = vcmp.gt.f32.partialorder %v203, 0.0
  %vm220 = vcmp.gt.f32.partialorder %v204, 0.0
  %vm221 = vcmp.gt.f32.partialorder %v205, 0.0
  %vm222 = vcmp.gt.f32.partialorder %v206, 0.0
  %vm223 = vcmp.gt.f32.partialorder %v207, 0.0
  %vm224 = vcmp.gt.f32.partialorder %v208, 0.0
  %vm225 = vcmp.gt.f32.partialorder %v209, 0.0
  %v226 = vmul.f32 %v194, 0.2
  %v227 = vmul.f32 %v195, 0.2
  %v228 = vmul.f32 %v196, 0.2
  %v229 = vmul.f32 %v197, 0.2
  %v230 = vmul.f32 %v198, 0.2
  %v231 = vmul.f32 %v199, 0.2
  %v232 = vmul.f32 %v200, 0.2
  %v233 = vmul.f32 %v201, 0.2
  %v234 = vmul.f32 %v202, 0.2
  %v235 = vmul.f32 %v203, 0.2
  %v236 = vmul.f32 %v204, 0.2
  %v237 = vmul.f32 %v205, 0.2
  %v238 = vmul.f32 %v206, 0.2
  %v239 = vmul.f32 %v207, 0.2
  %v240 = vmul.f32 %v208, 0.2
  %v241 = vmul.f32 %v209, 0.2
  %v242 = vsel %vm210, %v194, %v226
  %v243 = vsel %vm211, %v195, %v227
  %v244 = vsel %vm212, %v196, %v228
  %v245 = vsel %vm213, %v197, %v229
  %v246 = vsel %vm214, %v198, %v230
  %v247 = vsel %vm215, %v199, %v231
  %v248 = vsel %vm216, %v200, %v232
  %v249 = vsel %vm217, %v201, %v233
  %v250 = vsel %vm218, %v202, %v234
  %v251 = vsel %vm219, %v203, %v235
  %v252 = vsel %vm220, %v204, %v236
  %v253 = vsel %vm221, %v205, %v237
  %v254 = vsel %vm222, %v206, %v238
  %v255 = vsel %vm223, %v207, %v239
  %v256 = vsel %vm224, %v208, %v240
  %v257 = vsel %vm225, %v209, %v241
  %vm258 = vcmp.gt.f32.partialorder %v45, 0.0
  %vm259 = vcmp.gt.f32.partialorder %v46, 0.0
  %vm260 = vcmp.gt.f32.partialorder %v47, 0.0
  %vm261 = vcmp.gt.f32.partialorder %v48, 0.0
  %vm262 = vcmp.gt.f32.partialorder %v49, 0.0
  %vm263 = vcmp.gt.f32.partialorder %v50, 0.0
  %vm264 = vcmp.gt.f32.partialorder %v51, 0.0
  %vm265 = vcmp.gt.f32.partialorder %v52, 0.0
  %vm266 = vcmp.gt.f32.partialorder %v53, 0.0
  %vm267 = vcmp.gt.f32.partialorder %v54, 0.0
  %vm268 = vcmp.gt.f32.partialorder %v55, 0.0
  %vm269 = vcmp.gt.f32.partialorder %v56, 0.0
  %vm270 = vcmp.gt.f32.partialorder %v57, 0.0
  %vm271 = vcmp.gt.f32.partialorder %v58, 0.0
  %vm272 = vcmp.gt.f32.partialorder %v59, 0.0
  %vm273 = vcmp.gt.f32.partialorder %v60, 0.0
  %v274 = vsel %vm258, %v242, -1e+30
  %v275 = vsel %vm259, %v243, -1e+30
  %v276 = vsel %vm260, %v244, -1e+30
  %v277 = vsel %vm261, %v245, -1e+30
  %v278 = vsel %vm262, %v246, -1e+30
  %v279 = vsel %vm263, %v247, -1e+30
  %v280 = vsel %vm264, %v248, -1e+30
  %v281 = vsel %vm265, %v249, -1e+30
  %v282 = vsel %vm266, %v250, -1e+30
  %v283 = vsel %vm267, %v251, -1e+30
  %v284 = vsel %vm268, %v252, -1e+30
  %v285 = vsel %vm269, %v253, -1e+30
  %v286 = vsel %vm270, %v254, -1e+30
  %v287 = vsel %vm271, %v255, -1e+30
  %v288 = vsel %vm272, %v256, -1e+30
  %v289 = vsel %vm273, %v257, -1e+30
  %290 = vmax.xlane.f32.xlu0 %v274
  %v291 = vpop.xlane.xlu0 %290
  %292 = vmax.xlane.f32.xlu0 %v275
  %v293 = vpop.xlane.xlu0 %292
  %294 = vmax.xlane.f32.xlu0 %v276
  %v295 = vpop.xlane.xlu0 %294
  %296 = vmax.xlane.f32.xlu0 %v277
  %v297 = vpop.xlane.xlu0 %296
  %298 = vmax.xlane.f32.xlu0 %v278
  %v299 = vpop.xlane.xlu0 %298
  %300 = vmax.xlane.f32.xlu0 %v279
  %v301 = vpop.xlane.xlu0 %300
  %302 = vmax.xlane.f32.xlu0 %v280
  %v303 = vpop.xlane.xlu0 %302
  %304 = vmax.xlane.f32.xlu0 %v281
  %v305 = vpop.xlane.xlu0 %304
  %306 = vmax.xlane.f32.xlu0 %v282
  %v307 = vpop.xlane.xlu0 %306
  %308 = vmax.xlane.f32.xlu0 %v283
  %v309 = vpop.xlane.xlu0 %308
  %310 = vmax.xlane.f32.xlu0 %v284
  %v311 = vpop.xlane.xlu0 %310
  %312 = vmax.xlane.f32.xlu0 %v285
  %v313 = vpop.xlane.xlu0 %312
  %314 = vmax.xlane.f32.xlu0 %v286
  %v315 = vpop.xlane.xlu0 %314
  %316 = vmax.xlane.f32.xlu0 %v287
  %v317 = vpop.xlane.xlu0 %316
  %318 = vmax.xlane.f32.xlu0 %v288
  %v319 = vpop.xlane.xlu0 %318
  %320 = vmax.xlane.f32.xlu0 %v289
  %v321 = vpop.xlane.xlu0 %320
  %v322 = vsub.f32 %v274, %v291
  %v323 = vsub.f32 %v275, %v293
  %v324 = vsub.f32 %v276, %v295
  %v325 = vsub.f32 %v277, %v297
  %v326 = vsub.f32 %v278, %v299
  %v327 = vsub.f32 %v279, %v301
  %v328 = vsub.f32 %v280, %v303
  %v329 = vsub.f32 %v281, %v305
  %v330 = vsub.f32 %v282, %v307
  %v331 = vsub.f32 %v283, %v309
  %v332 = vsub.f32 %v284, %v311
  %v333 = vsub.f32 %v285, %v313
  %v334 = vsub.f32 %v286, %v315
  %v335 = vsub.f32 %v287, %v317
  %v336 = vsub.f32 %v288, %v319
  %v337 = vsub.f32 %v289, %v321
  %v338 = vmul.f32 %v322, 1.442695
  %v339 = vpow.pop %v338
  %v340 = vmul.f32 %v323, 1.442695
  %v341 = vpow.pop %v340
  %v342 = vmul.f32 %v324, 1.442695
  %v343 = vpow.pop %v342
  %v344 = vmul.f32 %v325, 1.442695
  %v345 = vpow.pop %v344
  %v346 = vmul.f32 %v326, 1.442695
  %v347 = vpow.pop %v346
  %v348 = vmul.f32 %v327, 1.442695
  %v349 = vpow.pop %v348
  %v350 = vmul.f32 %v328, 1.442695
  %v351 = vpow.pop %v350
  %v352 = vmul.f32 %v329, 1.442695
  %v353 = vpow.pop %v352
  %v354 = vmul.f32 %v330, 1.442695
  %v355 = vpow.pop %v354
  %v356 = vmul.f32 %v331, 1.442695
  %v357 = vpow.pop %v356
  %v358 = vmul.f32 %v332, 1.442695
  %v359 = vpow.pop %v358
  %v360 = vmul.f32 %v333, 1.442695
  %v361 = vpow.pop %v360
  %v362 = vmul.f32 %v334, 1.442695
  %v363 = vpow.pop %v362
  %v364 = vmul.f32 %v335, 1.442695
  %v365 = vpow.pop %v364
  %v366 = vmul.f32 %v336, 1.442695
  %v367 = vpow.pop %v366
  %v368 = vmul.f32 %v337, 1.442695
  %v369 = vpow.pop %v368
  %v370 = vsel %vm258, %v339, 0.0
  %v371 = vsel %vm259, %v341, 0.0
  %v372 = vsel %vm260, %v343, 0.0
  %v373 = vsel %vm261, %v345, 0.0
  %v374 = vsel %vm262, %v347, 0.0
  %v375 = vsel %vm263, %v349, 0.0
  %v376 = vsel %vm264, %v351, 0.0
  %v377 = vsel %vm265, %v353, 0.0
  %v378 = vsel %vm266, %v355, 0.0
  %v379 = vsel %vm267, %v357, 0.0
  %v380 = vsel %vm268, %v359, 0.0
  %v381 = vsel %vm269, %v361, 0.0
  %v382 = vsel %vm270, %v363, 0.0
  %v383 = vsel %vm271, %v365, 0.0
  %v384 = vsel %vm272, %v367, 0.0
  %v385 = vsel %vm273, %v369, 0.0
  %386 = vadd.xlane.f32.xlu0 %v370
  %v387 = vpop.xlane.xlu0 %386
  %388 = vadd.xlane.f32.xlu0 %v371
  %v389 = vpop.xlane.xlu0 %388
  %390 = vadd.xlane.f32.xlu0 %v372
  %v391 = vpop.xlane.xlu0 %390
  %392 = vadd.xlane.f32.xlu0 %v373
  %v393 = vpop.xlane.xlu0 %392
  %394 = vadd.xlane.f32.xlu0 %v374
  %v395 = vpop.xlane.xlu0 %394
  %396 = vadd.xlane.f32.xlu0 %v375
  %v397 = vpop.xlane.xlu0 %396
  %398 = vadd.xlane.f32.xlu0 %v376
  %v399 = vpop.xlane.xlu0 %398
  %400 = vadd.xlane.f32.xlu0 %v377
  %v401 = vpop.xlane.xlu0 %400
  %402 = vadd.xlane.f32.xlu0 %v378
  %v403 = vpop.xlane.xlu0 %402
  %404 = vadd.xlane.f32.xlu0 %v379
  %v405 = vpop.xlane.xlu0 %404
  %406 = vadd.xlane.f32.xlu0 %v380
  %v407 = vpop.xlane.xlu0 %406
  %408 = vadd.xlane.f32.xlu0 %v381
  %v409 = vpop.xlane.xlu0 %408
  %410 = vadd.xlane.f32.xlu0 %v382
  %v411 = vpop.xlane.xlu0 %410
  %412 = vadd.xlane.f32.xlu0 %v383
  %v413 = vpop.xlane.xlu0 %412
  %414 = vadd.xlane.f32.xlu0 %v384
  %v415 = vpop.xlane.xlu0 %414
  %416 = vadd.xlane.f32.xlu0 %v385
  %v417 = vpop.xlane.xlu0 %416
  %v418 = vmax.f32 %v387, 1e-20
  %v419 = vmax.f32 %v389, 1e-20
  %v420 = vmax.f32 %v391, 1e-20
  %v421 = vmax.f32 %v393, 1e-20
  %v422 = vmax.f32 %v395, 1e-20
  %v423 = vmax.f32 %v397, 1e-20
  %v424 = vmax.f32 %v399, 1e-20
  %v425 = vmax.f32 %v401, 1e-20
  %v426 = vmax.f32 %v403, 1e-20
  %v427 = vmax.f32 %v405, 1e-20
  %v428 = vmax.f32 %v407, 1e-20
  %v429 = vmax.f32 %v409, 1e-20
  %v430 = vmax.f32 %v411, 1e-20
  %v431 = vmax.f32 %v413, 1e-20
  %v432 = vmax.f32 %v415, 1e-20
  %v433 = vmax.f32 %v417, 1e-20
  %v434 = vrcp.pop %v418
  %v435 = vrcp.pop %v419
  %v436 = vrcp.pop %v420
  %v437 = vrcp.pop %v421
  %v438 = vrcp.pop %v422
  %v439 = vrcp.pop %v423
  %v440 = vrcp.pop %v424
  %v441 = vrcp.pop %v425
  %v442 = vrcp.pop %v426
  %v443 = vrcp.pop %v427
  %v444 = vrcp.pop %v428
  %v445 = vrcp.pop %v429
  %v446 = vrcp.pop %v430
  %v447 = vrcp.pop %v431
  %v448 = vrcp.pop %v432
  %v449 = vrcp.pop %v433
  %v450 = vmul.f32 %v370, %v434
  %v451 = vmul.f32 %v371, %v435
  %v452 = vmul.f32 %v372, %v436
  %v453 = vmul.f32 %v373, %v437
  %v454 = vmul.f32 %v374, %v438
  %v455 = vmul.f32 %v375, %v439
  %v456 = vmul.f32 %v376, %v440
  %v457 = vmul.f32 %v377, %v441
  %v458 = vmul.f32 %v378, %v442
  %v459 = vmul.f32 %v379, %v443
  %v460 = vmul.f32 %v380, %v444
  %v461 = vmul.f32 %v381, %v445
  %v462 = vmul.f32 %v382, %v446
  %v463 = vmul.f32 %v383, %v447
  %v464 = vmul.f32 %v384, %v448
  %v465 = vmul.f32 %v385, %v449
  %v466 = vpack.c.bf16 %v451, %v450
  %v467 = vpack.c.bf16 %v453, %v452
  %v468 = vpack.c.bf16 %v455, %v454
  %v469 = vpack.c.bf16 %v457, %v456
  %v470 = vpack.c.bf16 %v459, %v458
  %v471 = vpack.c.bf16 %v461, %v460
  %v472 = vpack.c.bf16 %v463, %v462
  %v473 = vpack.c.bf16 %v465, %v464
  %v474 = vld [vmem:[%s2] sm:$0xf]
  %v475 = vld [vmem:[%s2 + $0x4] sm:$0xf]
  %v476 = vld [vmem:[%s2 + $0x8] sm:$0xf]
  %v477 = vld [vmem:[%s2 + $0xc] sm:$0xf]
  %v478 = vld [vmem:[%s2 + $0x10] sm:$0xf]
  %v479 = vld [vmem:[%s2 + $0x14] sm:$0xf]
  %v480 = vld [vmem:[%s2 + $0x18] sm:$0xf]
  %v481 = vld [vmem:[%s2 + $0x1c] sm:$0xf]
  %v482 = vld [vmem:[%s2 + $0x20] sm:$0xf]
  %v483 = vld [vmem:[%s2 + $0x24] sm:$0xf]
  %v484 = vld [vmem:[%s2 + $0x28] sm:$0xf]
  %v485 = vld [vmem:[%s2 + $0x2c] sm:$0xf]
  %v486 = vld [vmem:[%s2 + $0x30] sm:$0xf]
  %v487 = vld [vmem:[%s2 + $0x34] sm:$0xf]
  %v488 = vld [vmem:[%s2 + $0x38] sm:$0xf]
  %v489 = vld [vmem:[%s2 + $0x3c] sm:$0xf]
  %490 = vset.pattern.permute.xlu0 1
  %491 = vperm.xlu0 %490, %v93
  %v492 = vpop.permute.xlu0 %491
  %494 = vset.pattern.permute.xlu0 1
  %495 = vperm.xlu0 %494, %v94
  %v496 = vpop.permute.xlu0 %495
  %498 = vset.pattern.permute.xlu0 1
  %499 = vperm.xlu0 %498, %v95
  %v500 = vpop.permute.xlu0 %499
  %502 = vset.pattern.permute.xlu0 1
  %503 = vperm.xlu0 %502, %v96
  %v504 = vpop.permute.xlu0 %503
  %506 = vset.pattern.permute.xlu0 1
  %507 = vperm.xlu0 %506, %v97
  %v508 = vpop.permute.xlu0 %507
  %510 = vset.pattern.permute.xlu0 1
  %511 = vperm.xlu0 %510, %v98
  %v512 = vpop.permute.xlu0 %511
  %514 = vset.pattern.permute.xlu0 1
  %515 = vperm.xlu0 %514, %v99
  %v516 = vpop.permute.xlu0 %515
  %518 = vset.pattern.permute.xlu0 1
  %519 = vperm.xlu0 %518, %v100
  %v520 = vpop.permute.xlu0 %519
  %522 = vset.pattern.permute.xlu0 1
  %523 = vperm.xlu0 %522, %v101
  %v524 = vpop.permute.xlu0 %523
  %526 = vset.pattern.permute.xlu0 1
  %527 = vperm.xlu0 %526, %v102
  %v528 = vpop.permute.xlu0 %527
  %530 = vset.pattern.permute.xlu0 1
  %531 = vperm.xlu0 %530, %v103
  %v532 = vpop.permute.xlu0 %531
  %534 = vset.pattern.permute.xlu0 1
  %535 = vperm.xlu0 %534, %v104
  %v536 = vpop.permute.xlu0 %535
  %538 = vset.pattern.permute.xlu0 1
  %539 = vperm.xlu0 %538, %v105
  %v540 = vpop.permute.xlu0 %539
  %542 = vset.pattern.permute.xlu0 1
  %543 = vperm.xlu0 %542, %v106
  %v544 = vpop.permute.xlu0 %543
  %546 = vset.pattern.permute.xlu0 1
  %547 = vperm.xlu0 %546, %v107
  %v548 = vpop.permute.xlu0 %547
  %550 = vset.pattern.permute.xlu0 1
  %551 = vperm.xlu0 %550, %v108
  %v552 = vpop.permute.xlu0 %551
  %v555 = vperm.slane %v110, 0
  %v557 = vadd.f32 %v492, %v555
  %v558 = vadd.f32 %v496, %v555
  %v559 = vadd.f32 %v500, %v555
  %v560 = vadd.f32 %v504, %v555
  %v561 = vadd.f32 %v508, %v555
  %v562 = vadd.f32 %v512, %v555
  %v563 = vadd.f32 %v516, %v555
  %v564 = vadd.f32 %v520, %v555
  %v565 = vadd.f32 %v524, %v555
  %v566 = vadd.f32 %v528, %v555
  %v567 = vadd.f32 %v532, %v555
  %v568 = vadd.f32 %v536, %v555
  %v569 = vadd.f32 %v540, %v555
  %v570 = vadd.f32 %v544, %v555
  %v571 = vadd.f32 %v548, %v555
  %v572 = vadd.f32 %v552, %v555
  %vm573 = vcmp.gt.f32.partialorder %v557, 0.0
  %vm574 = vcmp.gt.f32.partialorder %v558, 0.0
  %vm575 = vcmp.gt.f32.partialorder %v559, 0.0
  %vm576 = vcmp.gt.f32.partialorder %v560, 0.0
  %vm577 = vcmp.gt.f32.partialorder %v561, 0.0
  %vm578 = vcmp.gt.f32.partialorder %v562, 0.0
  %vm579 = vcmp.gt.f32.partialorder %v563, 0.0
  %vm580 = vcmp.gt.f32.partialorder %v564, 0.0
  %vm581 = vcmp.gt.f32.partialorder %v565, 0.0
  %vm582 = vcmp.gt.f32.partialorder %v566, 0.0
  %vm583 = vcmp.gt.f32.partialorder %v567, 0.0
  %vm584 = vcmp.gt.f32.partialorder %v568, 0.0
  %vm585 = vcmp.gt.f32.partialorder %v569, 0.0
  %vm586 = vcmp.gt.f32.partialorder %v570, 0.0
  %vm587 = vcmp.gt.f32.partialorder %v571, 0.0
  %vm588 = vcmp.gt.f32.partialorder %v572, 0.0
  %v589 = vmul.f32 %v557, 0.2
  %v590 = vmul.f32 %v558, 0.2
  %v591 = vmul.f32 %v559, 0.2
  %v592 = vmul.f32 %v560, 0.2
  %v593 = vmul.f32 %v561, 0.2
  %v594 = vmul.f32 %v562, 0.2
  %v595 = vmul.f32 %v563, 0.2
  %v596 = vmul.f32 %v564, 0.2
  %v597 = vmul.f32 %v565, 0.2
  %v598 = vmul.f32 %v566, 0.2
  %v599 = vmul.f32 %v567, 0.2
  %v600 = vmul.f32 %v568, 0.2
  %v601 = vmul.f32 %v569, 0.2
  %v602 = vmul.f32 %v570, 0.2
  %v603 = vmul.f32 %v571, 0.2
  %v604 = vmul.f32 %v572, 0.2
  %v605 = vsel %vm573, %v557, %v589
  %v606 = vsel %vm574, %v558, %v590
  %v607 = vsel %vm575, %v559, %v591
  %v608 = vsel %vm576, %v560, %v592
  %v609 = vsel %vm577, %v561, %v593
  %v610 = vsel %vm578, %v562, %v594
  %v611 = vsel %vm579, %v563, %v595
  %v612 = vsel %vm580, %v564, %v596
  %v613 = vsel %vm581, %v565, %v597
  %v614 = vsel %vm582, %v566, %v598
  %v615 = vsel %vm583, %v567, %v599
  %v616 = vsel %vm584, %v568, %v600
  %v617 = vsel %vm585, %v569, %v601
  %v618 = vsel %vm586, %v570, %v602
  %v619 = vsel %vm587, %v571, %v603
  %v620 = vsel %vm588, %v572, %v604
  %vm621 = vcmp.gt.f32.partialorder %v77, 0.0
  %vm622 = vcmp.gt.f32.partialorder %v78, 0.0
  %vm623 = vcmp.gt.f32.partialorder %v79, 0.0
  %vm624 = vcmp.gt.f32.partialorder %v80, 0.0
  %vm625 = vcmp.gt.f32.partialorder %v81, 0.0
  %vm626 = vcmp.gt.f32.partialorder %v82, 0.0
  %vm627 = vcmp.gt.f32.partialorder %v83, 0.0
  %vm628 = vcmp.gt.f32.partialorder %v84, 0.0
  %vm629 = vcmp.gt.f32.partialorder %v85, 0.0
  %vm630 = vcmp.gt.f32.partialorder %v86, 0.0
  %vm631 = vcmp.gt.f32.partialorder %v87, 0.0
  %vm632 = vcmp.gt.f32.partialorder %v88, 0.0
  %vm633 = vcmp.gt.f32.partialorder %v89, 0.0
  %vm634 = vcmp.gt.f32.partialorder %v90, 0.0
  %vm635 = vcmp.gt.f32.partialorder %v91, 0.0
  %vm636 = vcmp.gt.f32.partialorder %v92, 0.0
  %v637 = vsel %vm621, %v605, -1e+30
  %v638 = vsel %vm622, %v606, -1e+30
  %v639 = vsel %vm623, %v607, -1e+30
  %v640 = vsel %vm624, %v608, -1e+30
  %v641 = vsel %vm625, %v609, -1e+30
  %v642 = vsel %vm626, %v610, -1e+30
  %v643 = vsel %vm627, %v611, -1e+30
  %v644 = vsel %vm628, %v612, -1e+30
  %v645 = vsel %vm629, %v613, -1e+30
  %v646 = vsel %vm630, %v614, -1e+30
  %v647 = vsel %vm631, %v615, -1e+30
  %v648 = vsel %vm632, %v616, -1e+30
  %v649 = vsel %vm633, %v617, -1e+30
  %v650 = vsel %vm634, %v618, -1e+30
  %v651 = vsel %vm635, %v619, -1e+30
  %v652 = vsel %vm636, %v620, -1e+30
  %653 = vmax.xlane.f32.xlu0 %v637
  %v654 = vpop.xlane.xlu0 %653
  %655 = vmax.xlane.f32.xlu0 %v638
  %v656 = vpop.xlane.xlu0 %655
  %657 = vmax.xlane.f32.xlu0 %v639
  %v658 = vpop.xlane.xlu0 %657
  %659 = vmax.xlane.f32.xlu0 %v640
  %v660 = vpop.xlane.xlu0 %659
  %661 = vmax.xlane.f32.xlu0 %v641
  %v662 = vpop.xlane.xlu0 %661
  %663 = vmax.xlane.f32.xlu0 %v642
  %v664 = vpop.xlane.xlu0 %663
  %665 = vmax.xlane.f32.xlu0 %v643
  %v666 = vpop.xlane.xlu0 %665
  %667 = vmax.xlane.f32.xlu0 %v644
  %v668 = vpop.xlane.xlu0 %667
  %669 = vmax.xlane.f32.xlu0 %v645
  %v670 = vpop.xlane.xlu0 %669
  %671 = vmax.xlane.f32.xlu0 %v646
  %v672 = vpop.xlane.xlu0 %671
  %673 = vmax.xlane.f32.xlu0 %v647
  %v674 = vpop.xlane.xlu0 %673
  %675 = vmax.xlane.f32.xlu0 %v648
  %v676 = vpop.xlane.xlu0 %675
  %677 = vmax.xlane.f32.xlu0 %v649
  %v678 = vpop.xlane.xlu0 %677
  %679 = vmax.xlane.f32.xlu0 %v650
  %v680 = vpop.xlane.xlu0 %679
  %681 = vmax.xlane.f32.xlu0 %v651
  %v682 = vpop.xlane.xlu0 %681
  %683 = vmax.xlane.f32.xlu0 %v652
  %v684 = vpop.xlane.xlu0 %683
  %v685 = vsub.f32 %v637, %v654
  %v686 = vsub.f32 %v638, %v656
  %v687 = vsub.f32 %v639, %v658
  %v688 = vsub.f32 %v640, %v660
  %v689 = vsub.f32 %v641, %v662
  %v690 = vsub.f32 %v642, %v664
  %v691 = vsub.f32 %v643, %v666
  %v692 = vsub.f32 %v644, %v668
  %v693 = vsub.f32 %v645, %v670
  %v694 = vsub.f32 %v646, %v672
  %v695 = vsub.f32 %v647, %v674
  %v696 = vsub.f32 %v648, %v676
  %v697 = vsub.f32 %v649, %v678
  %v698 = vsub.f32 %v650, %v680
  %v699 = vsub.f32 %v651, %v682
  %v700 = vsub.f32 %v652, %v684
  %v701 = vmul.f32 %v685, 1.442695
  %v702 = vpow.pop %v701
  %v703 = vmul.f32 %v686, 1.442695
  %v704 = vpow.pop %v703
  %v705 = vmul.f32 %v687, 1.442695
  %v706 = vpow.pop %v705
  %v707 = vmul.f32 %v688, 1.442695
  %v708 = vpow.pop %v707
  %v709 = vmul.f32 %v689, 1.442695
  %v710 = vpow.pop %v709
  %v711 = vmul.f32 %v690, 1.442695
  %v712 = vpow.pop %v711
  %v713 = vmul.f32 %v691, 1.442695
  %v714 = vpow.pop %v713
  %v715 = vmul.f32 %v692, 1.442695
  %v716 = vpow.pop %v715
  %v717 = vmul.f32 %v693, 1.442695
  %v718 = vpow.pop %v717
  %v719 = vmul.f32 %v694, 1.442695
  %v720 = vpow.pop %v719
  %v721 = vmul.f32 %v695, 1.442695
  %v722 = vpow.pop %v721
  %v723 = vmul.f32 %v696, 1.442695
  %v724 = vpow.pop %v723
  %v725 = vmul.f32 %v697, 1.442695
  %v726 = vpow.pop %v725
  %v727 = vmul.f32 %v698, 1.442695
  %v728 = vpow.pop %v727
  %v729 = vmul.f32 %v699, 1.442695
  %v730 = vpow.pop %v729
  %v731 = vmul.f32 %v700, 1.442695
  %v732 = vpow.pop %v731
  %v733 = vsel %vm621, %v702, 0.0
  %v734 = vsel %vm622, %v704, 0.0
  %v735 = vsel %vm623, %v706, 0.0
  %v736 = vsel %vm624, %v708, 0.0
  %v737 = vsel %vm625, %v710, 0.0
  %v738 = vsel %vm626, %v712, 0.0
  %v739 = vsel %vm627, %v714, 0.0
  %v740 = vsel %vm628, %v716, 0.0
  %v741 = vsel %vm629, %v718, 0.0
  %v742 = vsel %vm630, %v720, 0.0
  %v743 = vsel %vm631, %v722, 0.0
  %v744 = vsel %vm632, %v724, 0.0
  %v745 = vsel %vm633, %v726, 0.0
  %v746 = vsel %vm634, %v728, 0.0
  %v747 = vsel %vm635, %v730, 0.0
  %v748 = vsel %vm636, %v732, 0.0
  %749 = vadd.xlane.f32.xlu0 %v733
  %v750 = vpop.xlane.xlu0 %749
  %751 = vadd.xlane.f32.xlu0 %v734
  %v752 = vpop.xlane.xlu0 %751
  %753 = vadd.xlane.f32.xlu0 %v735
  %v754 = vpop.xlane.xlu0 %753
  %755 = vadd.xlane.f32.xlu0 %v736
  %v756 = vpop.xlane.xlu0 %755
  %757 = vadd.xlane.f32.xlu0 %v737
  %v758 = vpop.xlane.xlu0 %757
  %759 = vadd.xlane.f32.xlu0 %v738
  %v760 = vpop.xlane.xlu0 %759
  %761 = vadd.xlane.f32.xlu0 %v739
  %v762 = vpop.xlane.xlu0 %761
  %763 = vadd.xlane.f32.xlu0 %v740
  %v764 = vpop.xlane.xlu0 %763
  %765 = vadd.xlane.f32.xlu0 %v741
  %v766 = vpop.xlane.xlu0 %765
  %767 = vadd.xlane.f32.xlu0 %v742
  %v768 = vpop.xlane.xlu0 %767
  %769 = vadd.xlane.f32.xlu0 %v743
  %v770 = vpop.xlane.xlu0 %769
  %771 = vadd.xlane.f32.xlu0 %v744
  %v772 = vpop.xlane.xlu0 %771
  %773 = vadd.xlane.f32.xlu0 %v745
  %v774 = vpop.xlane.xlu0 %773
  %775 = vadd.xlane.f32.xlu0 %v746
  %v776 = vpop.xlane.xlu0 %775
  %777 = vadd.xlane.f32.xlu0 %v747
  %v778 = vpop.xlane.xlu0 %777
  %779 = vadd.xlane.f32.xlu0 %v748
  %v780 = vpop.xlane.xlu0 %779
  %v781 = vmax.f32 %v750, 1e-20
  %v782 = vmax.f32 %v752, 1e-20
  %v783 = vmax.f32 %v754, 1e-20
  %v784 = vmax.f32 %v756, 1e-20
  %v785 = vmax.f32 %v758, 1e-20
  %v786 = vmax.f32 %v760, 1e-20
  %v787 = vmax.f32 %v762, 1e-20
  %v788 = vmax.f32 %v764, 1e-20
  %v789 = vmax.f32 %v766, 1e-20
  %v790 = vmax.f32 %v768, 1e-20
  %v791 = vmax.f32 %v770, 1e-20
  %v792 = vmax.f32 %v772, 1e-20
  %v793 = vmax.f32 %v774, 1e-20
  %v794 = vmax.f32 %v776, 1e-20
  %v795 = vmax.f32 %v778, 1e-20
  %v796 = vmax.f32 %v780, 1e-20
  %v797 = vrcp.pop %v781
  %v798 = vrcp.pop %v782
  %v799 = vrcp.pop %v783
  %v800 = vrcp.pop %v784
  %v801 = vrcp.pop %v785
  %v802 = vrcp.pop %v786
  %v803 = vrcp.pop %v787
  %v804 = vrcp.pop %v788
  %v805 = vrcp.pop %v789
  %v806 = vrcp.pop %v790
  %v807 = vrcp.pop %v791
  %v808 = vrcp.pop %v792
  %v809 = vrcp.pop %v793
  %v810 = vrcp.pop %v794
  %v811 = vrcp.pop %v795
  %v812 = vrcp.pop %v796
  %v813 = vmul.f32 %v733, %v797
  %v814 = vmul.f32 %v734, %v798
  %v815 = vmul.f32 %v735, %v799
  %v816 = vmul.f32 %v736, %v800
  %v817 = vmul.f32 %v737, %v801
  %v818 = vmul.f32 %v738, %v802
  %v819 = vmul.f32 %v739, %v803
  %v820 = vmul.f32 %v740, %v804
  %v821 = vmul.f32 %v741, %v805
  %v822 = vmul.f32 %v742, %v806
  %v823 = vmul.f32 %v743, %v807
  %v824 = vmul.f32 %v744, %v808
  %v825 = vmul.f32 %v745, %v809
  %v826 = vmul.f32 %v746, %v810
  %v827 = vmul.f32 %v747, %v811
  %v828 = vmul.f32 %v748, %v812
  %v829 = vpack.c.bf16 %v814, %v813
  %v830 = vpack.c.bf16 %v816, %v815
  %v831 = vpack.c.bf16 %v818, %v817
  %v832 = vpack.c.bf16 %v820, %v819
  %v833 = vpack.c.bf16 %v822, %v821
  %v834 = vpack.c.bf16 %v824, %v823
  %v835 = vpack.c.bf16 %v826, %v825
  %v836 = vpack.c.bf16 %v828, %v827
  %v837 = vld [vmem:[%s3] sm:$0xf]
  %v838 = vld [vmem:[%s3 + $0x4] sm:$0xf]
  %v839 = vld [vmem:[%s3 + $0x8] sm:$0xf]
  %v840 = vld [vmem:[%s3 + $0xc] sm:$0xf]
  %v841 = vld [vmem:[%s3 + $0x10] sm:$0xf]
  %v842 = vld [vmem:[%s3 + $0x14] sm:$0xf]
  %v843 = vld [vmem:[%s3 + $0x18] sm:$0xf]
  %v844 = vld [vmem:[%s3 + $0x1c] sm:$0xf]
  %v845 = vld [vmem:[%s3 + $0x20] sm:$0xf]
  %v846 = vld [vmem:[%s3 + $0x24] sm:$0xf]
  %v847 = vld [vmem:[%s3 + $0x28] sm:$0xf]
  %v848 = vld [vmem:[%s3 + $0x2c] sm:$0xf]
  %v849 = vld [vmem:[%s3 + $0x30] sm:$0xf]
  %v850 = vld [vmem:[%s3 + $0x34] sm:$0xf]
  %v851 = vld [vmem:[%s3 + $0x38] sm:$0xf]
  %v852 = vld [vmem:[%s3 + $0x3c] sm:$0xf]
  %v869 = vunpack.c.l.b16 %v837
  %v870 = vunpack.c.l.b16 %v838
  %v871 = vunpack.c.l.b16 %v839
  %v872 = vunpack.c.l.b16 %v840
  %v873 = vunpack.c.l.b16 %v841
  %v874 = vunpack.c.l.b16 %v842
  %v875 = vunpack.c.l.b16 %v843
  %v876 = vunpack.c.l.b16 %v844
  %v877 = vunpack.c.l.b16 %v845
  %v878 = vunpack.c.l.b16 %v846
  %v879 = vunpack.c.l.b16 %v847
  %v880 = vunpack.c.l.b16 %v848
  %v881 = vunpack.c.l.b16 %v849
  %v882 = vunpack.c.l.b16 %v850
  %v883 = vunpack.c.l.b16 %v851
  %v884 = vunpack.c.l.b16 %v852
  %v885 = vpack.c.b16 %v870, %v869
  %v886 = vpack.c.b16 %v872, %v871
  %v887 = vpack.c.b16 %v874, %v873
  %v888 = vpack.c.b16 %v876, %v875
  %v889 = vpack.c.b16 %v878, %v877
  %v890 = vpack.c.b16 %v880, %v879
  %v891 = vpack.c.b16 %v882, %v881
  %v892 = vpack.c.b16 %v884, %v883
  %901 = vmatpush.bf16.msra.mxu0 %v892
  %902 = vmatpush.bf16.msra.mxu0 %v891
  %903 = vmatpush.bf16.msra.mxu0 %v890
  %904 = vmatpush.bf16.msra.mxu0 %v889
  %905 = vmatpush.bf16.msra.mxu0 %v888
  %906 = vmatpush.bf16.msra.mxu0 %v887
  %907 = vmatpush.bf16.msra.mxu0 %v886
  %908 = vmatpush.bf16.msra.mxu0 %v885
  %909 = vmatmul.bf16.gmra.mxu0 %v829
  %v910 = vpop.f32.mrf.mxu0
  %v911 = vadd.f32 0.0, %v910
  %v912 = vpop.f32.mrf.mxu0
  %v913 = vadd.f32 0.0, %v912
  %914 = vmatmul.bf16.gmra.mxu0 %v830
  %v915 = vpop.f32.mrf.mxu0
  %v916 = vadd.f32 0.0, %v915
  %v917 = vpop.f32.mrf.mxu0
  %v918 = vadd.f32 0.0, %v917
  %919 = vmatmul.bf16.gmra.mxu0 %v831
  %v920 = vpop.f32.mrf.mxu0
  %v921 = vadd.f32 0.0, %v920
  %v922 = vpop.f32.mrf.mxu0
  %v923 = vadd.f32 0.0, %v922
  %924 = vmatmul.bf16.gmra.mxu0 %v832
  %v925 = vpop.f32.mrf.mxu0
  %v926 = vadd.f32 0.0, %v925
  %v927 = vpop.f32.mrf.mxu0
  %v928 = vadd.f32 0.0, %v927
  %929 = vmatmul.bf16.gmra.mxu0 %v833
  %v930 = vpop.f32.mrf.mxu0
  %v931 = vadd.f32 0.0, %v930
  %v932 = vpop.f32.mrf.mxu0
  %v933 = vadd.f32 0.0, %v932
  %934 = vmatmul.bf16.gmra.mxu0 %v834
  %v935 = vpop.f32.mrf.mxu0
  %v936 = vadd.f32 0.0, %v935
  %v937 = vpop.f32.mrf.mxu0
  %v938 = vadd.f32 0.0, %v937
  %939 = vmatmul.bf16.gmra.mxu0 %v835
  %v940 = vpop.f32.mrf.mxu0
  %v941 = vadd.f32 0.0, %v940
  %v942 = vpop.f32.mrf.mxu0
  %v943 = vadd.f32 0.0, %v942
  %944 = vmatmul.bf16.gmra.mxu0 %v836
  %v945 = vpop.f32.mrf.mxu0
  %v946 = vadd.f32 0.0, %v945
  %v947 = vpop.f32.mrf.mxu0
  %v948 = vadd.f32 0.0, %v947
  %949 = vdwg.mxu0
  %v966 = vunpack.c.l.b16 %v474
  %v967 = vunpack.c.l.b16 %v475
  %v968 = vunpack.c.l.b16 %v476
  %v969 = vunpack.c.l.b16 %v477
  %v970 = vunpack.c.l.b16 %v478
  %v971 = vunpack.c.l.b16 %v479
  %v972 = vunpack.c.l.b16 %v480
  %v973 = vunpack.c.l.b16 %v481
  %v974 = vunpack.c.l.b16 %v482
  %v975 = vunpack.c.l.b16 %v483
  %v976 = vunpack.c.l.b16 %v484
  %v977 = vunpack.c.l.b16 %v485
  %v978 = vunpack.c.l.b16 %v486
  %v979 = vunpack.c.l.b16 %v487
  %v980 = vunpack.c.l.b16 %v488
  %v981 = vunpack.c.l.b16 %v489
  %v982 = vpack.c.b16 %v967, %v966
  %v983 = vpack.c.b16 %v969, %v968
  %v984 = vpack.c.b16 %v971, %v970
  %v985 = vpack.c.b16 %v973, %v972
  %v986 = vpack.c.b16 %v975, %v974
  %v987 = vpack.c.b16 %v977, %v976
  %v988 = vpack.c.b16 %v979, %v978
  %v989 = vpack.c.b16 %v981, %v980
  %998 = vmatpush.bf16.msra.mxu0 %v989
  %999 = vmatpush.bf16.msra.mxu0 %v988
  %1000 = vmatpush.bf16.msra.mxu0 %v987
  %1001 = vmatpush.bf16.msra.mxu0 %v986
  %1002 = vmatpush.bf16.msra.mxu0 %v985
  %1003 = vmatpush.bf16.msra.mxu0 %v984
  %1004 = vmatpush.bf16.msra.mxu0 %v983
  %1005 = vmatpush.bf16.msra.mxu0 %v982
  %1006 = vmatmul.bf16.gmra.mxu0 %v466
  %v1007 = vpop.f32.mrf.mxu0
  %v1008 = vadd.f32 %v911, %v1007
  %v1009 = vpop.f32.mrf.mxu0
  %v1010 = vadd.f32 %v913, %v1009
  %1011 = vmatmul.bf16.gmra.mxu0 %v467
  %v1012 = vpop.f32.mrf.mxu0
  %v1013 = vadd.f32 %v916, %v1012
  %v1014 = vpop.f32.mrf.mxu0
  %v1015 = vadd.f32 %v918, %v1014
  %1016 = vmatmul.bf16.gmra.mxu0 %v468
  %v1017 = vpop.f32.mrf.mxu0
  %v1018 = vadd.f32 %v921, %v1017
  %v1019 = vpop.f32.mrf.mxu0
  %v1020 = vadd.f32 %v923, %v1019
  %1021 = vmatmul.bf16.gmra.mxu0 %v469
  %v1022 = vpop.f32.mrf.mxu0
  %v1023 = vadd.f32 %v926, %v1022
  %v1024 = vpop.f32.mrf.mxu0
  %v1025 = vadd.f32 %v928, %v1024
  %1026 = vmatmul.bf16.gmra.mxu0 %v470
  %v1027 = vpop.f32.mrf.mxu0
  %v1028 = vadd.f32 %v931, %v1027
  %v1029 = vpop.f32.mrf.mxu0
  %v1030 = vadd.f32 %v933, %v1029
  %1031 = vmatmul.bf16.gmra.mxu0 %v471
  %v1032 = vpop.f32.mrf.mxu0
  %v1033 = vadd.f32 %v936, %v1032
  %v1034 = vpop.f32.mrf.mxu0
  %v1035 = vadd.f32 %v938, %v1034
  %1036 = vmatmul.bf16.gmra.mxu0 %v472
  %v1037 = vpop.f32.mrf.mxu0
  %v1038 = vadd.f32 %v941, %v1037
  %v1039 = vpop.f32.mrf.mxu0
  %v1040 = vadd.f32 %v943, %v1039
  %1041 = vmatmul.bf16.gmra.mxu0 %v473
  %v1042 = vpop.f32.mrf.mxu0
  %v1043 = vadd.f32 %v946, %v1042
  %v1044 = vpop.f32.mrf.mxu0
  %v1045 = vadd.f32 %v948, %v1044
  %1046 = vdwg.mxu0
  %v1047 = vld [vmem:[%s7] sm:$0x1]
  %v1049 = vperm.slane %v1047, 0
  %v1051 = vadd.f32 %v1008, %v1049
  %v1052 = vadd.f32 %v1010, %v1049
  %v1053 = vadd.f32 %v1013, %v1049
  %v1054 = vadd.f32 %v1015, %v1049
  %v1055 = vadd.f32 %v1018, %v1049
  %v1056 = vadd.f32 %v1020, %v1049
  %v1057 = vadd.f32 %v1023, %v1049
  %v1058 = vadd.f32 %v1025, %v1049
  %v1059 = vadd.f32 %v1028, %v1049
  %v1060 = vadd.f32 %v1030, %v1049
  %v1061 = vadd.f32 %v1033, %v1049
  %v1062 = vadd.f32 %v1035, %v1049
  %v1063 = vadd.f32 %v1038, %v1049
  %v1064 = vadd.f32 %v1040, %v1049
  %v1065 = vadd.f32 %v1043, %v1049
  %v1066 = vadd.f32 %v1045, %v1049
  %1067 = vst [vmem:[%s8] sm:$0xff] %v1051
  %1068 = vst [vmem:[%s8 + $0x8] sm:$0xff] %v1052
  %1069 = vst [vmem:[%s8 + $0x10] sm:$0xff] %v1053
  %1070 = vst [vmem:[%s8 + $0x18] sm:$0xff] %v1054
  %1071 = vst [vmem:[%s8 + $0x20] sm:$0xff] %v1055
  %1072 = vst [vmem:[%s8 + $0x28] sm:$0xff] %v1056
  %1073 = vst [vmem:[%s8 + $0x30] sm:$0xff] %v1057
  %1074 = vst [vmem:[%s8 + $0x38] sm:$0xff] %v1058
  %1075 = vst [vmem:[%s8 + $0x40] sm:$0xff] %v1059
  %1076 = vst [vmem:[%s8 + $0x48] sm:$0xff] %v1060
  %1077 = vst [vmem:[%s8 + $0x50] sm:$0xff] %v1061
  %1078 = vst [vmem:[%s8 + $0x58] sm:$0xff] %v1062
  %1079 = vst [vmem:[%s8 + $0x60] sm:$0xff] %v1063
  %1080 = vst [vmem:[%s8 + $0x68] sm:$0xff] %v1064
  %1081 = vst [vmem:[%s8 + $0x70] sm:$0xff] %v1065
  %1082 = vst [vmem:[%s8 + $0x78] sm:$0xff] %v1066
  // Predicated region
  $region34: #{rel_het_graph_forward.9} parent=0 // pred_check
    _
  $region35: #{rel_het_graph_forward.9} parent=0 // pred_check_branch
    %1084 = sbr.rel (0) target = $region37
  $region36: #{rel_het_graph_forward.9} parent=0 // pred_region
    _
  $region37: #{rel_het_graph_forward.9} parent=0 // pred_fallthru
    _
  // Predicated region
  $region38: #{rel_het_graph_forward.9} parent=0 // pred_check
    _
  $region39: #{rel_het_graph_forward.9} parent=0 // pred_check_branch
    %1086 = sbr.rel (0) target = $region41
  $region40: #{rel_het_graph_forward.9} parent=0 // pred_region
    _
  $region41: #{rel_het_graph_forward.9} parent=0 // pred_fallthru
    _

// kernel: rel_het_graph_forward.7
$region0: #{rel_het_graph_forward.7}
  #allocation0 [shape = 'u32[]', space=smem, size = 0x4, offset = 0x4, fixed_abs, tag = 'smem constant byte address 0x4 - core index']
  #allocation1 [shape = 'u32[72,128]{1,0:T(1,128)}', space=vmem, size = 0x9000, scoped, tag = 'internal scratch']
  %s0 = inlined_call_operand.vmem [shape: bf16[128,128], index: 0, kind: input, shape index: {}]
  %s1 = inlined_call_operand.vmem [shape: bf16[128,128], index: 1, kind: input, shape index: {}]
  %s2 = inlined_call_operand.vmem [shape: bf16[128,128], index: 2, kind: input, shape index: {}]
  %s3 = inlined_call_operand.vmem [shape: bf16[128,128], index: 3, kind: input, shape index: {}]
  %s4 = inlined_call_operand.vmem [shape: f32[2,128], index: 4, kind: input, shape index: {}]
  %s5 = inlined_call_operand.vmem [shape: f32[2,128], index: 5, kind: input, shape index: {}]
  %s6 = inlined_call_operand.vmem [shape: f32[128,4], index: 6, kind: input, shape index: {}]
  %s7 = inlined_call_operand.vmem [shape: f32[1,128], index: 7, kind: input, shape index: {}]
  %s8 = inlined_call_operand.vmem [shape: bf16[128,256], index: 8, kind: input, shape index: {}]
  %s9 = inlined_call_operand.vmem [shape: bf16[128,256], index: 9, kind: output, shape index: {}]
  %s10 = sld [smem:[#allocation0]]
  $region46: #{rel_het_graph_forward.7} parent=0
    _
  %s12 = ssub.s32 1, %s10
  %s13 = scalar_select 0, %s12, %s10
  // Predicated region
  $region2: #{rel_het_graph_forward.7} parent=0 // pred_check
    _
  $region3: #{rel_het_graph_forward.7} parent=0 // pred_check_branch
    %15 = sbr.rel (0) target = $region5
  $region4: #{rel_het_graph_forward.7} parent=0 // pred_region
    _
  $region5: #{rel_het_graph_forward.7} parent=0 // pred_fallthru
    _
  // Predicated region
  $region6: #{rel_het_graph_forward.7} parent=0 // pred_check
    _
  $region7: #{rel_het_graph_forward.7} parent=0 // pred_check_branch
    %17 = sbr.rel (0) target = $region9
  $region8: #{rel_het_graph_forward.7} parent=0 // pred_region
    _
  $region9: #{rel_het_graph_forward.7} parent=0 // pred_fallthru
    _
  // Predicated region
  $region10: #{rel_het_graph_forward.7} parent=0 // pred_check
    _
  $region11: #{rel_het_graph_forward.7} parent=0 // pred_check_branch
    %19 = sbr.rel (0) target = $region13
  $region12: #{rel_het_graph_forward.7} parent=0 // pred_region
    _
  $region13: #{rel_het_graph_forward.7} parent=0 // pred_fallthru
    _
  // Predicated region
  $region14: #{rel_het_graph_forward.7} parent=0 // pred_check
    _
  $region15: #{rel_het_graph_forward.7} parent=0 // pred_check_branch
    %21 = sbr.rel (0) target = $region17
  $region16: #{rel_het_graph_forward.7} parent=0 // pred_region
    _
  $region17: #{rel_het_graph_forward.7} parent=0 // pred_fallthru
    _
  // Predicated region
  $region18: #{rel_het_graph_forward.7} parent=0 // pred_check
    _
  $region19: #{rel_het_graph_forward.7} parent=0 // pred_check_branch
    %23 = sbr.rel (0) target = $region21
  $region20: #{rel_het_graph_forward.7} parent=0 // pred_region
    _
  $region21: #{rel_het_graph_forward.7} parent=0 // pred_fallthru
    _
  // Predicated region
  $region22: #{rel_het_graph_forward.7} parent=0 // pred_check
    _
  $region23: #{rel_het_graph_forward.7} parent=0 // pred_check_branch
    %25 = sbr.rel (0) target = $region25
  $region24: #{rel_het_graph_forward.7} parent=0 // pred_region
    _
  $region25: #{rel_het_graph_forward.7} parent=0 // pred_fallthru
    _
  // Predicated region
  $region26: #{rel_het_graph_forward.7} parent=0 // pred_check
    _
  $region27: #{rel_het_graph_forward.7} parent=0 // pred_check_branch
    %27 = sbr.rel (0) target = $region29
  $region28: #{rel_het_graph_forward.7} parent=0 // pred_region
    _
  $region29: #{rel_het_graph_forward.7} parent=0 // pred_fallthru
    _
  // Predicated region
  $region30: #{rel_het_graph_forward.7} parent=0 // pred_check
    _
  $region31: #{rel_het_graph_forward.7} parent=0 // pred_check_branch
    %29 = sbr.rel (0) target = $region33
  $region32: #{rel_het_graph_forward.7} parent=0 // pred_region
    _
  $region33: #{rel_het_graph_forward.7} parent=0 // pred_fallthru
    _
  // Predicated region
  $region34: #{rel_het_graph_forward.7} parent=0 // pred_check
    _
  $region35: #{rel_het_graph_forward.7} parent=0 // pred_check_branch
    %31 = sbr.rel (0) target = $region37
  $region36: #{rel_het_graph_forward.7} parent=0 // pred_region
    _
  $region37: #{rel_het_graph_forward.7} parent=0 // pred_fallthru
    _
  %v32 = vld [vmem:[%s0] sm:$0xf]
  %v33 = vld [vmem:[%s0 + $0x4] sm:$0xf]
  %v34 = vld [vmem:[%s0 + $0x8] sm:$0xf]
  %v35 = vld [vmem:[%s0 + $0xc] sm:$0xf]
  %v36 = vld [vmem:[%s0 + $0x10] sm:$0xf]
  %v37 = vld [vmem:[%s0 + $0x14] sm:$0xf]
  %v38 = vld [vmem:[%s0 + $0x18] sm:$0xf]
  %v39 = vld [vmem:[%s0 + $0x1c] sm:$0xf]
  %v40 = vld [vmem:[%s0 + $0x20] sm:$0xf]
  %v41 = vld [vmem:[%s0 + $0x24] sm:$0xf]
  %v42 = vld [vmem:[%s0 + $0x28] sm:$0xf]
  %v43 = vld [vmem:[%s0 + $0x2c] sm:$0xf]
  %v44 = vld [vmem:[%s0 + $0x30] sm:$0xf]
  %v45 = vld [vmem:[%s0 + $0x34] sm:$0xf]
  %v46 = vld [vmem:[%s0 + $0x38] sm:$0xf]
  %v47 = vld [vmem:[%s0 + $0x3c] sm:$0xf]
  %v48 = vunpack.c.l.bf16 %v32
  %v49 = vunpack.c.l.bf16 %v33
  %v50 = vunpack.c.l.bf16 %v34
  %v51 = vunpack.c.l.bf16 %v35
  %v52 = vunpack.c.l.bf16 %v36
  %v53 = vunpack.c.l.bf16 %v37
  %v54 = vunpack.c.l.bf16 %v38
  %v55 = vunpack.c.l.bf16 %v39
  %v56 = vunpack.c.l.bf16 %v40
  %v57 = vunpack.c.l.bf16 %v41
  %v58 = vunpack.c.l.bf16 %v42
  %v59 = vunpack.c.l.bf16 %v43
  %v60 = vunpack.c.l.bf16 %v44
  %v61 = vunpack.c.l.bf16 %v45
  %v62 = vunpack.c.l.bf16 %v46
  %v63 = vunpack.c.l.bf16 %v47
  %v64 = vld [vmem:[%s1] sm:$0xf]
  %v65 = vld [vmem:[%s1 + $0x4] sm:$0xf]
  %v66 = vld [vmem:[%s1 + $0x8] sm:$0xf]
  %v67 = vld [vmem:[%s1 + $0xc] sm:$0xf]
  %v68 = vld [vmem:[%s1 + $0x10] sm:$0xf]
  %v69 = vld [vmem:[%s1 + $0x14] sm:$0xf]
  %v70 = vld [vmem:[%s1 + $0x18] sm:$0xf]
  %v71 = vld [vmem:[%s1 + $0x1c] sm:$0xf]
  %v72 = vld [vmem:[%s1 + $0x20] sm:$0xf]
  %v73 = vld [vmem:[%s1 + $0x24] sm:$0xf]
  %v74 = vld [vmem:[%s1 + $0x28] sm:$0xf]
  %v75 = vld [vmem:[%s1 + $0x2c] sm:$0xf]
  %v76 = vld [vmem:[%s1 + $0x30] sm:$0xf]
  %v77 = vld [vmem:[%s1 + $0x34] sm:$0xf]
  %v78 = vld [vmem:[%s1 + $0x38] sm:$0xf]
  %v79 = vld [vmem:[%s1 + $0x3c] sm:$0xf]
  %v80 = vunpack.c.l.bf16 %v64
  %v81 = vunpack.c.l.bf16 %v65
  %v82 = vunpack.c.l.bf16 %v66
  %v83 = vunpack.c.l.bf16 %v67
  %v84 = vunpack.c.l.bf16 %v68
  %v85 = vunpack.c.l.bf16 %v69
  %v86 = vunpack.c.l.bf16 %v70
  %v87 = vunpack.c.l.bf16 %v71
  %v88 = vunpack.c.l.bf16 %v72
  %v89 = vunpack.c.l.bf16 %v73
  %v90 = vunpack.c.l.bf16 %v74
  %v91 = vunpack.c.l.bf16 %v75
  %v92 = vunpack.c.l.bf16 %v76
  %v93 = vunpack.c.l.bf16 %v77
  %v94 = vunpack.c.l.bf16 %v78
  %v95 = vunpack.c.l.bf16 %v79
  %v96 = vld [vmem:[%s6] sm:$0xff]
  %v97 = vld [vmem:[%s6 + $0x8] sm:$0xff]
  %v98 = vld [vmem:[%s6 + $0x10] sm:$0xff]
  %v99 = vld [vmem:[%s6 + $0x18] sm:$0xff]
  %v100 = vld [vmem:[%s6 + $0x20] sm:$0xff]
  %v101 = vld [vmem:[%s6 + $0x28] sm:$0xff]
  %v102 = vld [vmem:[%s6 + $0x30] sm:$0xff]
  %v103 = vld [vmem:[%s6 + $0x38] sm:$0xff]
  %v104 = vld [vmem:[%s6 + $0x40] sm:$0xff]
  %v105 = vld [vmem:[%s6 + $0x48] sm:$0xff]
  %v106 = vld [vmem:[%s6 + $0x50] sm:$0xff]
  %v107 = vld [vmem:[%s6 + $0x58] sm:$0xff]
  %v108 = vld [vmem:[%s6 + $0x60] sm:$0xff]
  %v109 = vld [vmem:[%s6 + $0x68] sm:$0xff]
  %v110 = vld [vmem:[%s6 + $0x70] sm:$0xff]
  %v111 = vld [vmem:[%s6 + $0x78] sm:$0xff]
  %v112 = vld [vmem:[%s4] sm:$0x1]
  %v113 = vld [vmem:[%s5] sm:$0x1]
  %115 = vset.pattern.permute.xlu0 0
  %116 = vperm.xlu0 %115, %v96
  %v117 = vpop.permute.xlu0 %116
  %120 = vset.pattern.permute.xlu0 0
  %121 = vperm.xlu0 %120, %v97
  %v122 = vpop.permute.xlu0 %121
  %125 = vset.pattern.permute.xlu0 0
  %126 = vperm.xlu0 %125, %v98
  %v127 = vpop.permute.xlu0 %126
  %130 = vset.pattern.permute.xlu0 0
  %131 = vperm.xlu0 %130, %v99
  %v132 = vpop.permute.xlu0 %131
  %135 = vset.pattern.permute.xlu0 0
  %136 = vperm.xlu0 %135, %v100
  %v137 = vpop.permute.xlu0 %136
  %140 = vset.pattern.permute.xlu0 0
  %141 = vperm.xlu0 %140, %v101
  %v142 = vpop.permute.xlu0 %141
  %145 = vset.pattern.permute.xlu0 0
  %146 = vperm.xlu0 %145, %v102
  %v147 = vpop.permute.xlu0 %146
  %150 = vset.pattern.permute.xlu0 0
  %151 = vperm.xlu0 %150, %v103
  %v152 = vpop.permute.xlu0 %151
  %155 = vset.pattern.permute.xlu0 0
  %156 = vperm.xlu0 %155, %v104
  %v157 = vpop.permute.xlu0 %156
  %160 = vset.pattern.permute.xlu0 0
  %161 = vperm.xlu0 %160, %v105
  %v162 = vpop.permute.xlu0 %161
  %165 = vset.pattern.permute.xlu0 0
  %166 = vperm.xlu0 %165, %v106
  %v167 = vpop.permute.xlu0 %166
  %170 = vset.pattern.permute.xlu0 0
  %171 = vperm.xlu0 %170, %v107
  %v172 = vpop.permute.xlu0 %171
  %175 = vset.pattern.permute.xlu0 0
  %176 = vperm.xlu0 %175, %v108
  %v177 = vpop.permute.xlu0 %176
  %180 = vset.pattern.permute.xlu0 0
  %181 = vperm.xlu0 %180, %v109
  %v182 = vpop.permute.xlu0 %181
  %185 = vset.pattern.permute.xlu0 0
  %186 = vperm.xlu0 %185, %v110
  %v187 = vpop.permute.xlu0 %186
  %190 = vset.pattern.permute.xlu0 0
  %191 = vperm.xlu0 %190, %v111
  %v192 = vpop.permute.xlu0 %191
  %v194 = vperm.slane %v112, 0
  %v195 = vadd.f32 %v117, %v194
  %v196 = vadd.f32 %v122, %v194
  %v197 = vadd.f32 %v127, %v194
  %v198 = vadd.f32 %v132, %v194
  %v199 = vadd.f32 %v137, %v194
  %v200 = vadd.f32 %v142, %v194
  %v201 = vadd.f32 %v147, %v194
  %v202 = vadd.f32 %v152, %v194
  %v203 = vadd.f32 %v157, %v194
  %v204 = vadd.f32 %v162, %v194
  %v205 = vadd.f32 %v167, %v194
  %v206 = vadd.f32 %v172, %v194
  %v207 = vadd.f32 %v177, %v194
  %v208 = vadd.f32 %v182, %v194
  %v209 = vadd.f32 %v187, %v194
  %v210 = vadd.f32 %v192, %v194
  %vm211 = vcmp.gt.f32.partialorder %v195, 0.0
  %vm212 = vcmp.gt.f32.partialorder %v196, 0.0
  %vm213 = vcmp.gt.f32.partialorder %v197, 0.0
  %vm214 = vcmp.gt.f32.partialorder %v198, 0.0
  %vm215 = vcmp.gt.f32.partialorder %v199, 0.0
  %vm216 = vcmp.gt.f32.partialorder %v200, 0.0
  %vm217 = vcmp.gt.f32.partialorder %v201, 0.0
  %vm218 = vcmp.gt.f32.partialorder %v202, 0.0
  %vm219 = vcmp.gt.f32.partialorder %v203, 0.0
  %vm220 = vcmp.gt.f32.partialorder %v204, 0.0
  %vm221 = vcmp.gt.f32.partialorder %v205, 0.0
  %vm222 = vcmp.gt.f32.partialorder %v206, 0.0
  %vm223 = vcmp.gt.f32.partialorder %v207, 0.0
  %vm224 = vcmp.gt.f32.partialorder %v208, 0.0
  %vm225 = vcmp.gt.f32.partialorder %v209, 0.0
  %vm226 = vcmp.gt.f32.partialorder %v210, 0.0
  %v227 = vmul.f32 %v195, 0.2
  %v228 = vmul.f32 %v196, 0.2
  %v229 = vmul.f32 %v197, 0.2
  %v230 = vmul.f32 %v198, 0.2
  %v231 = vmul.f32 %v199, 0.2
  %v232 = vmul.f32 %v200, 0.2
  %v233 = vmul.f32 %v201, 0.2
  %v234 = vmul.f32 %v202, 0.2
  %v235 = vmul.f32 %v203, 0.2
  %v236 = vmul.f32 %v204, 0.2
  %v237 = vmul.f32 %v205, 0.2
  %v238 = vmul.f32 %v206, 0.2
  %v239 = vmul.f32 %v207, 0.2
  %v240 = vmul.f32 %v208, 0.2
  %v241 = vmul.f32 %v209, 0.2
  %v242 = vmul.f32 %v210, 0.2
  %v243 = vsel %vm211, %v195, %v227
  %v244 = vsel %vm212, %v196, %v228
  %v245 = vsel %vm213, %v197, %v229
  %v246 = vsel %vm214, %v198, %v230
  %v247 = vsel %vm215, %v199, %v231
  %v248 = vsel %vm216, %v200, %v232
  %v249 = vsel %vm217, %v201, %v233
  %v250 = vsel %vm218, %v202, %v234
  %v251 = vsel %vm219, %v203, %v235
  %v252 = vsel %vm220, %v204, %v236
  %v253 = vsel %vm221, %v205, %v237
  %v254 = vsel %vm222, %v206, %v238
  %v255 = vsel %vm223, %v207, %v239
  %v256 = vsel %vm224, %v208, %v240
  %v257 = vsel %vm225, %v209, %v241
  %v258 = vsel %vm226, %v210, %v242
  %vm259 = vcmp.gt.f32.partialorder %v48, 0.0
  %vm260 = vcmp.gt.f32.partialorder %v49, 0.0
  %vm261 = vcmp.gt.f32.partialorder %v50, 0.0
  %vm262 = vcmp.gt.f32.partialorder %v51, 0.0
  %vm263 = vcmp.gt.f32.partialorder %v52, 0.0
  %vm264 = vcmp.gt.f32.partialorder %v53, 0.0
  %vm265 = vcmp.gt.f32.partialorder %v54, 0.0
  %vm266 = vcmp.gt.f32.partialorder %v55, 0.0
  %vm267 = vcmp.gt.f32.partialorder %v56, 0.0
  %vm268 = vcmp.gt.f32.partialorder %v57, 0.0
  %vm269 = vcmp.gt.f32.partialorder %v58, 0.0
  %vm270 = vcmp.gt.f32.partialorder %v59, 0.0
  %vm271 = vcmp.gt.f32.partialorder %v60, 0.0
  %vm272 = vcmp.gt.f32.partialorder %v61, 0.0
  %vm273 = vcmp.gt.f32.partialorder %v62, 0.0
  %vm274 = vcmp.gt.f32.partialorder %v63, 0.0
  %v275 = vsel %vm259, %v243, -1e+30
  %v276 = vsel %vm260, %v244, -1e+30
  %v277 = vsel %vm261, %v245, -1e+30
  %v278 = vsel %vm262, %v246, -1e+30
  %v279 = vsel %vm263, %v247, -1e+30
  %v280 = vsel %vm264, %v248, -1e+30
  %v281 = vsel %vm265, %v249, -1e+30
  %v282 = vsel %vm266, %v250, -1e+30
  %v283 = vsel %vm267, %v251, -1e+30
  %v284 = vsel %vm268, %v252, -1e+30
  %v285 = vsel %vm269, %v253, -1e+30
  %v286 = vsel %vm270, %v254, -1e+30
  %v287 = vsel %vm271, %v255, -1e+30
  %v288 = vsel %vm272, %v256, -1e+30
  %v289 = vsel %vm273, %v257, -1e+30
  %v290 = vsel %vm274, %v258, -1e+30
  %291 = vmax.xlane.f32.xlu0 %v275
  %v292 = vpop.xlane.xlu0 %291
  %293 = vmax.xlane.f32.xlu0 %v276
  %v294 = vpop.xlane.xlu0 %293
  %295 = vmax.xlane.f32.xlu0 %v277
  %v296 = vpop.xlane.xlu0 %295
  %297 = vmax.xlane.f32.xlu0 %v278
  %v298 = vpop.xlane.xlu0 %297
  %299 = vmax.xlane.f32.xlu0 %v279
  %v300 = vpop.xlane.xlu0 %299
  %301 = vmax.xlane.f32.xlu0 %v280
  %v302 = vpop.xlane.xlu0 %301
  %303 = vmax.xlane.f32.xlu0 %v281
  %v304 = vpop.xlane.xlu0 %303
  %305 = vmax.xlane.f32.xlu0 %v282
  %v306 = vpop.xlane.xlu0 %305
  %307 = vmax.xlane.f32.xlu0 %v283
  %v308 = vpop.xlane.xlu0 %307
  %309 = vmax.xlane.f32.xlu0 %v284
  %v310 = vpop.xlane.xlu0 %309
  %311 = vmax.xlane.f32.xlu0 %v285
  %v312 = vpop.xlane.xlu0 %311
  %313 = vmax.xlane.f32.xlu0 %v286
  %v314 = vpop.xlane.xlu0 %313
  %315 = vmax.xlane.f32.xlu0 %v287
  %v316 = vpop.xlane.xlu0 %315
  %317 = vmax.xlane.f32.xlu0 %v288
  %v318 = vpop.xlane.xlu0 %317
  %319 = vmax.xlane.f32.xlu0 %v289
  %v320 = vpop.xlane.xlu0 %319
  %321 = vmax.xlane.f32.xlu0 %v290
  %v322 = vpop.xlane.xlu0 %321
  %v323 = vsub.f32 %v275, %v292
  %v324 = vsub.f32 %v276, %v294
  %v325 = vsub.f32 %v277, %v296
  %v326 = vsub.f32 %v278, %v298
  %v327 = vsub.f32 %v279, %v300
  %v328 = vsub.f32 %v280, %v302
  %v329 = vsub.f32 %v281, %v304
  %v330 = vsub.f32 %v282, %v306
  %v331 = vsub.f32 %v283, %v308
  %v332 = vsub.f32 %v284, %v310
  %v333 = vsub.f32 %v285, %v312
  %v334 = vsub.f32 %v286, %v314
  %v335 = vsub.f32 %v287, %v316
  %v336 = vsub.f32 %v288, %v318
  %v337 = vsub.f32 %v289, %v320
  %v338 = vsub.f32 %v290, %v322
  %v339 = vmul.f32 %v323, 1.442695
  %v340 = vpow.pop %v339
  %v341 = vmul.f32 %v324, 1.442695
  %v342 = vpow.pop %v341
  %v343 = vmul.f32 %v325, 1.442695
  %v344 = vpow.pop %v343
  %v345 = vmul.f32 %v326, 1.442695
  %v346 = vpow.pop %v345
  %v347 = vmul.f32 %v327, 1.442695
  %v348 = vpow.pop %v347
  %v349 = vmul.f32 %v328, 1.442695
  %v350 = vpow.pop %v349
  %v351 = vmul.f32 %v329, 1.442695
  %v352 = vpow.pop %v351
  %v353 = vmul.f32 %v330, 1.442695
  %v354 = vpow.pop %v353
  %v355 = vmul.f32 %v331, 1.442695
  %v356 = vpow.pop %v355
  %v357 = vmul.f32 %v332, 1.442695
  %v358 = vpow.pop %v357
  %v359 = vmul.f32 %v333, 1.442695
  %v360 = vpow.pop %v359
  %v361 = vmul.f32 %v334, 1.442695
  %v362 = vpow.pop %v361
  %v363 = vmul.f32 %v335, 1.442695
  %v364 = vpow.pop %v363
  %v365 = vmul.f32 %v336, 1.442695
  %v366 = vpow.pop %v365
  %v367 = vmul.f32 %v337, 1.442695
  %v368 = vpow.pop %v367
  %v369 = vmul.f32 %v338, 1.442695
  %v370 = vpow.pop %v369
  %v371 = vsel %vm259, %v340, 0.0
  %v372 = vsel %vm260, %v342, 0.0
  %v373 = vsel %vm261, %v344, 0.0
  %v374 = vsel %vm262, %v346, 0.0
  %v375 = vsel %vm263, %v348, 0.0
  %v376 = vsel %vm264, %v350, 0.0
  %v377 = vsel %vm265, %v352, 0.0
  %v378 = vsel %vm266, %v354, 0.0
  %v379 = vsel %vm267, %v356, 0.0
  %v380 = vsel %vm268, %v358, 0.0
  %v381 = vsel %vm269, %v360, 0.0
  %v382 = vsel %vm270, %v362, 0.0
  %v383 = vsel %vm271, %v364, 0.0
  %v384 = vsel %vm272, %v366, 0.0
  %v385 = vsel %vm273, %v368, 0.0
  %v386 = vsel %vm274, %v370, 0.0
  %387 = vadd.xlane.f32.xlu0 %v371
  %v388 = vpop.xlane.xlu0 %387
  %389 = vadd.xlane.f32.xlu0 %v372
  %v390 = vpop.xlane.xlu0 %389
  %391 = vadd.xlane.f32.xlu0 %v373
  %v392 = vpop.xlane.xlu0 %391
  %393 = vadd.xlane.f32.xlu0 %v374
  %v394 = vpop.xlane.xlu0 %393
  %395 = vadd.xlane.f32.xlu0 %v375
  %v396 = vpop.xlane.xlu0 %395
  %397 = vadd.xlane.f32.xlu0 %v376
  %v398 = vpop.xlane.xlu0 %397
  %399 = vadd.xlane.f32.xlu0 %v377
  %v400 = vpop.xlane.xlu0 %399
  %401 = vadd.xlane.f32.xlu0 %v378
  %v402 = vpop.xlane.xlu0 %401
  %403 = vadd.xlane.f32.xlu0 %v379
  %v404 = vpop.xlane.xlu0 %403
  %405 = vadd.xlane.f32.xlu0 %v380
  %v406 = vpop.xlane.xlu0 %405
  %407 = vadd.xlane.f32.xlu0 %v381
  %v408 = vpop.xlane.xlu0 %407
  %409 = vadd.xlane.f32.xlu0 %v382
  %v410 = vpop.xlane.xlu0 %409
  %411 = vadd.xlane.f32.xlu0 %v383
  %v412 = vpop.xlane.xlu0 %411
  %413 = vadd.xlane.f32.xlu0 %v384
  %v414 = vpop.xlane.xlu0 %413
  %415 = vadd.xlane.f32.xlu0 %v385
  %v416 = vpop.xlane.xlu0 %415
  %417 = vadd.xlane.f32.xlu0 %v386
  %v418 = vpop.xlane.xlu0 %417
  %v419 = vmax.f32 %v388, 1e-20
  %v420 = vmax.f32 %v390, 1e-20
  %v421 = vmax.f32 %v392, 1e-20
  %v422 = vmax.f32 %v394, 1e-20
  %v423 = vmax.f32 %v396, 1e-20
  %v424 = vmax.f32 %v398, 1e-20
  %v425 = vmax.f32 %v400, 1e-20
  %v426 = vmax.f32 %v402, 1e-20
  %v427 = vmax.f32 %v404, 1e-20
  %v428 = vmax.f32 %v406, 1e-20
  %v429 = vmax.f32 %v408, 1e-20
  %v430 = vmax.f32 %v410, 1e-20
  %v431 = vmax.f32 %v412, 1e-20
  %v432 = vmax.f32 %v414, 1e-20
  %v433 = vmax.f32 %v416, 1e-20
  %v434 = vmax.f32 %v418, 1e-20
  %v435 = vrcp.pop %v419
  %v436 = vrcp.pop %v420
  %v437 = vrcp.pop %v421
  %v438 = vrcp.pop %v422
  %v439 = vrcp.pop %v423
  %v440 = vrcp.pop %v424
  %v441 = vrcp.pop %v425
  %v442 = vrcp.pop %v426
  %v443 = vrcp.pop %v427
  %v444 = vrcp.pop %v428
  %v445 = vrcp.pop %v429
  %v446 = vrcp.pop %v430
  %v447 = vrcp.pop %v431
  %v448 = vrcp.pop %v432
  %v449 = vrcp.pop %v433
  %v450 = vrcp.pop %v434
  %v451 = vmul.f32 %v371, %v435
  %v452 = vmul.f32 %v372, %v436
  %v453 = vmul.f32 %v373, %v437
  %v454 = vmul.f32 %v374, %v438
  %v455 = vmul.f32 %v375, %v439
  %v456 = vmul.f32 %v376, %v440
  %v457 = vmul.f32 %v377, %v441
  %v458 = vmul.f32 %v378, %v442
  %v459 = vmul.f32 %v379, %v443
  %v460 = vmul.f32 %v380, %v444
  %v461 = vmul.f32 %v381, %v445
  %v462 = vmul.f32 %v382, %v446
  %v463 = vmul.f32 %v383, %v447
  %v464 = vmul.f32 %v384, %v448
  %v465 = vmul.f32 %v385, %v449
  %v466 = vmul.f32 %v386, %v450
  %v467 = vpack.c.bf16 %v452, %v451
  %v468 = vpack.c.bf16 %v454, %v453
  %v469 = vpack.c.bf16 %v456, %v455
  %v470 = vpack.c.bf16 %v458, %v457
  %v471 = vpack.c.bf16 %v460, %v459
  %v472 = vpack.c.bf16 %v462, %v461
  %v473 = vpack.c.bf16 %v464, %v463
  %v474 = vpack.c.bf16 %v466, %v465
  %v475 = vld [vmem:[%s2] sm:$0xf]
  %v476 = vld [vmem:[%s2 + $0x4] sm:$0xf]
  %v477 = vld [vmem:[%s2 + $0x8] sm:$0xf]
  %v478 = vld [vmem:[%s2 + $0xc] sm:$0xf]
  %v479 = vld [vmem:[%s2 + $0x10] sm:$0xf]
  %v480 = vld [vmem:[%s2 + $0x14] sm:$0xf]
  %v481 = vld [vmem:[%s2 + $0x18] sm:$0xf]
  %v482 = vld [vmem:[%s2 + $0x1c] sm:$0xf]
  %v483 = vld [vmem:[%s2 + $0x20] sm:$0xf]
  %v484 = vld [vmem:[%s2 + $0x24] sm:$0xf]
  %v485 = vld [vmem:[%s2 + $0x28] sm:$0xf]
  %v486 = vld [vmem:[%s2 + $0x2c] sm:$0xf]
  %v487 = vld [vmem:[%s2 + $0x30] sm:$0xf]
  %v488 = vld [vmem:[%s2 + $0x34] sm:$0xf]
  %v489 = vld [vmem:[%s2 + $0x38] sm:$0xf]
  %v490 = vld [vmem:[%s2 + $0x3c] sm:$0xf]
  %491 = vset.pattern.permute.xlu0 2
  %492 = vperm.xlu0 %491, %v96
  %v493 = vpop.permute.xlu0 %492
  %495 = vset.pattern.permute.xlu0 2
  %496 = vperm.xlu0 %495, %v97
  %v497 = vpop.permute.xlu0 %496
  %499 = vset.pattern.permute.xlu0 2
  %500 = vperm.xlu0 %499, %v98
  %v501 = vpop.permute.xlu0 %500
  %503 = vset.pattern.permute.xlu0 2
  %504 = vperm.xlu0 %503, %v99
  %v505 = vpop.permute.xlu0 %504
  %507 = vset.pattern.permute.xlu0 2
  %508 = vperm.xlu0 %507, %v100
  %v509 = vpop.permute.xlu0 %508
  %511 = vset.pattern.permute.xlu0 2
  %512 = vperm.xlu0 %511, %v101
  %v513 = vpop.permute.xlu0 %512
  %515 = vset.pattern.permute.xlu0 2
  %516 = vperm.xlu0 %515, %v102
  %v517 = vpop.permute.xlu0 %516
  %519 = vset.pattern.permute.xlu0 2
  %520 = vperm.xlu0 %519, %v103
  %v521 = vpop.permute.xlu0 %520
  %523 = vset.pattern.permute.xlu0 2
  %524 = vperm.xlu0 %523, %v104
  %v525 = vpop.permute.xlu0 %524
  %527 = vset.pattern.permute.xlu0 2
  %528 = vperm.xlu0 %527, %v105
  %v529 = vpop.permute.xlu0 %528
  %531 = vset.pattern.permute.xlu0 2
  %532 = vperm.xlu0 %531, %v106
  %v533 = vpop.permute.xlu0 %532
  %535 = vset.pattern.permute.xlu0 2
  %536 = vperm.xlu0 %535, %v107
  %v537 = vpop.permute.xlu0 %536
  %539 = vset.pattern.permute.xlu0 2
  %540 = vperm.xlu0 %539, %v108
  %v541 = vpop.permute.xlu0 %540
  %543 = vset.pattern.permute.xlu0 2
  %544 = vperm.xlu0 %543, %v109
  %v545 = vpop.permute.xlu0 %544
  %547 = vset.pattern.permute.xlu0 2
  %548 = vperm.xlu0 %547, %v110
  %v549 = vpop.permute.xlu0 %548
  %551 = vset.pattern.permute.xlu0 2
  %552 = vperm.xlu0 %551, %v111
  %v553 = vpop.permute.xlu0 %552
  %v555 = vperm.slane %v113, 0
  %v556 = vadd.f32 %v493, %v555
  %v557 = vadd.f32 %v497, %v555
  %v558 = vadd.f32 %v501, %v555
  %v559 = vadd.f32 %v505, %v555
  %v560 = vadd.f32 %v509, %v555
  %v561 = vadd.f32 %v513, %v555
  %v562 = vadd.f32 %v517, %v555
  %v563 = vadd.f32 %v521, %v555
  %v564 = vadd.f32 %v525, %v555
  %v565 = vadd.f32 %v529, %v555
  %v566 = vadd.f32 %v533, %v555
  %v567 = vadd.f32 %v537, %v555
  %v568 = vadd.f32 %v541, %v555
  %v569 = vadd.f32 %v545, %v555
  %v570 = vadd.f32 %v549, %v555
  %v571 = vadd.f32 %v553, %v555
  %vm572 = vcmp.gt.f32.partialorder %v556, 0.0
  %vm573 = vcmp.gt.f32.partialorder %v557, 0.0
  %vm574 = vcmp.gt.f32.partialorder %v558, 0.0
  %vm575 = vcmp.gt.f32.partialorder %v559, 0.0
  %vm576 = vcmp.gt.f32.partialorder %v560, 0.0
  %vm577 = vcmp.gt.f32.partialorder %v561, 0.0
  %vm578 = vcmp.gt.f32.partialorder %v562, 0.0
  %vm579 = vcmp.gt.f32.partialorder %v563, 0.0
  %vm580 = vcmp.gt.f32.partialorder %v564, 0.0
  %vm581 = vcmp.gt.f32.partialorder %v565, 0.0
  %vm582 = vcmp.gt.f32.partialorder %v566, 0.0
  %vm583 = vcmp.gt.f32.partialorder %v567, 0.0
  %vm584 = vcmp.gt.f32.partialorder %v568, 0.0
  %vm585 = vcmp.gt.f32.partialorder %v569, 0.0
  %vm586 = vcmp.gt.f32.partialorder %v570, 0.0
  %vm587 = vcmp.gt.f32.partialorder %v571, 0.0
  %v588 = vmul.f32 %v556, 0.2
  %v589 = vmul.f32 %v557, 0.2
  %v590 = vmul.f32 %v558, 0.2
  %v591 = vmul.f32 %v559, 0.2
  %v592 = vmul.f32 %v560, 0.2
  %v593 = vmul.f32 %v561, 0.2
  %v594 = vmul.f32 %v562, 0.2
  %v595 = vmul.f32 %v563, 0.2
  %v596 = vmul.f32 %v564, 0.2
  %v597 = vmul.f32 %v565, 0.2
  %v598 = vmul.f32 %v566, 0.2
  %v599 = vmul.f32 %v567, 0.2
  %v600 = vmul.f32 %v568, 0.2
  %v601 = vmul.f32 %v569, 0.2
  %v602 = vmul.f32 %v570, 0.2
  %v603 = vmul.f32 %v571, 0.2
  %v604 = vsel %vm572, %v556, %v588
  %v605 = vsel %vm573, %v557, %v589
  %v606 = vsel %vm574, %v558, %v590
  %v607 = vsel %vm575, %v559, %v591
  %v608 = vsel %vm576, %v560, %v592
  %v609 = vsel %vm577, %v561, %v593
  %v610 = vsel %vm578, %v562, %v594
  %v611 = vsel %vm579, %v563, %v595
  %v612 = vsel %vm580, %v564, %v596
  %v613 = vsel %vm581, %v565, %v597
  %v614 = vsel %vm582, %v566, %v598
  %v615 = vsel %vm583, %v567, %v599
  %v616 = vsel %vm584, %v568, %v600
  %v617 = vsel %vm585, %v569, %v601
  %v618 = vsel %vm586, %v570, %v602
  %v619 = vsel %vm587, %v571, %v603
  %vm620 = vcmp.gt.f32.partialorder %v80, 0.0
  %vm621 = vcmp.gt.f32.partialorder %v81, 0.0
  %vm622 = vcmp.gt.f32.partialorder %v82, 0.0
  %vm623 = vcmp.gt.f32.partialorder %v83, 0.0
  %vm624 = vcmp.gt.f32.partialorder %v84, 0.0
  %vm625 = vcmp.gt.f32.partialorder %v85, 0.0
  %vm626 = vcmp.gt.f32.partialorder %v86, 0.0
  %vm627 = vcmp.gt.f32.partialorder %v87, 0.0
  %vm628 = vcmp.gt.f32.partialorder %v88, 0.0
  %vm629 = vcmp.gt.f32.partialorder %v89, 0.0
  %vm630 = vcmp.gt.f32.partialorder %v90, 0.0
  %vm631 = vcmp.gt.f32.partialorder %v91, 0.0
  %vm632 = vcmp.gt.f32.partialorder %v92, 0.0
  %vm633 = vcmp.gt.f32.partialorder %v93, 0.0
  %vm634 = vcmp.gt.f32.partialorder %v94, 0.0
  %vm635 = vcmp.gt.f32.partialorder %v95, 0.0
  %v636 = vsel %vm620, %v604, -1e+30
  %v637 = vsel %vm621, %v605, -1e+30
  %v638 = vsel %vm622, %v606, -1e+30
  %v639 = vsel %vm623, %v607, -1e+30
  %v640 = vsel %vm624, %v608, -1e+30
  %v641 = vsel %vm625, %v609, -1e+30
  %v642 = vsel %vm626, %v610, -1e+30
  %v643 = vsel %vm627, %v611, -1e+30
  %v644 = vsel %vm628, %v612, -1e+30
  %v645 = vsel %vm629, %v613, -1e+30
  %v646 = vsel %vm630, %v614, -1e+30
  %v647 = vsel %vm631, %v615, -1e+30
  %v648 = vsel %vm632, %v616, -1e+30
  %v649 = vsel %vm633, %v617, -1e+30
  %v650 = vsel %vm634, %v618, -1e+30
  %v651 = vsel %vm635, %v619, -1e+30
  %652 = vmax.xlane.f32.xlu0 %v636
  %v653 = vpop.xlane.xlu0 %652
  %654 = vmax.xlane.f32.xlu0 %v637
  %v655 = vpop.xlane.xlu0 %654
  %656 = vmax.xlane.f32.xlu0 %v638
  %v657 = vpop.xlane.xlu0 %656
  %658 = vmax.xlane.f32.xlu0 %v639
  %v659 = vpop.xlane.xlu0 %658
  %660 = vmax.xlane.f32.xlu0 %v640
  %v661 = vpop.xlane.xlu0 %660
  %662 = vmax.xlane.f32.xlu0 %v641
  %v663 = vpop.xlane.xlu0 %662
  %664 = vmax.xlane.f32.xlu0 %v642
  %v665 = vpop.xlane.xlu0 %664
  %666 = vmax.xlane.f32.xlu0 %v643
  %v667 = vpop.xlane.xlu0 %666
  %668 = vmax.xlane.f32.xlu0 %v644
  %v669 = vpop.xlane.xlu0 %668
  %670 = vmax.xlane.f32.xlu0 %v645
  %v671 = vpop.xlane.xlu0 %670
  %672 = vmax.xlane.f32.xlu0 %v646
  %v673 = vpop.xlane.xlu0 %672
  %674 = vmax.xlane.f32.xlu0 %v647
  %v675 = vpop.xlane.xlu0 %674
  %676 = vmax.xlane.f32.xlu0 %v648
  %v677 = vpop.xlane.xlu0 %676
  %678 = vmax.xlane.f32.xlu0 %v649
  %v679 = vpop.xlane.xlu0 %678
  %680 = vmax.xlane.f32.xlu0 %v650
  %v681 = vpop.xlane.xlu0 %680
  %682 = vmax.xlane.f32.xlu0 %v651
  %v683 = vpop.xlane.xlu0 %682
  %v684 = vsub.f32 %v636, %v653
  %v685 = vsub.f32 %v637, %v655
  %v686 = vsub.f32 %v638, %v657
  %v687 = vsub.f32 %v639, %v659
  %v688 = vsub.f32 %v640, %v661
  %v689 = vsub.f32 %v641, %v663
  %v690 = vsub.f32 %v642, %v665
  %v691 = vsub.f32 %v643, %v667
  %v692 = vsub.f32 %v644, %v669
  %v693 = vsub.f32 %v645, %v671
  %v694 = vsub.f32 %v646, %v673
  %v695 = vsub.f32 %v647, %v675
  %v696 = vsub.f32 %v648, %v677
  %v697 = vsub.f32 %v649, %v679
  %v698 = vsub.f32 %v650, %v681
  %v699 = vsub.f32 %v651, %v683
  %v700 = vmul.f32 %v684, 1.442695
  %v701 = vpow.pop %v700
  %v702 = vmul.f32 %v685, 1.442695
  %v703 = vpow.pop %v702
  %v704 = vmul.f32 %v686, 1.442695
  %v705 = vpow.pop %v704
  %v706 = vmul.f32 %v687, 1.442695
  %v707 = vpow.pop %v706
  %v708 = vmul.f32 %v688, 1.442695
  %v709 = vpow.pop %v708
  %v710 = vmul.f32 %v689, 1.442695
  %v711 = vpow.pop %v710
  %v712 = vmul.f32 %v690, 1.442695
  %v713 = vpow.pop %v712
  %v714 = vmul.f32 %v691, 1.442695
  %v715 = vpow.pop %v714
  %v716 = vmul.f32 %v692, 1.442695
  %v717 = vpow.pop %v716
  %v718 = vmul.f32 %v693, 1.442695
  %v719 = vpow.pop %v718
  %v720 = vmul.f32 %v694, 1.442695
  %v721 = vpow.pop %v720
  %v722 = vmul.f32 %v695, 1.442695
  %v723 = vpow.pop %v722
  %v724 = vmul.f32 %v696, 1.442695
  %v725 = vpow.pop %v724
  %v726 = vmul.f32 %v697, 1.442695
  %v727 = vpow.pop %v726
  %v728 = vmul.f32 %v698, 1.442695
  %v729 = vpow.pop %v728
  %v730 = vmul.f32 %v699, 1.442695
  %v731 = vpow.pop %v730
  %v732 = vsel %vm620, %v701, 0.0
  %v733 = vsel %vm621, %v703, 0.0
  %v734 = vsel %vm622, %v705, 0.0
  %v735 = vsel %vm623, %v707, 0.0
  %v736 = vsel %vm624, %v709, 0.0
  %v737 = vsel %vm625, %v711, 0.0
  %v738 = vsel %vm626, %v713, 0.0
  %v739 = vsel %vm627, %v715, 0.0
  %v740 = vsel %vm628, %v717, 0.0
  %v741 = vsel %vm629, %v719, 0.0
  %v742 = vsel %vm630, %v721, 0.0
  %v743 = vsel %vm631, %v723, 0.0
  %v744 = vsel %vm632, %v725, 0.0
  %v745 = vsel %vm633, %v727, 0.0
  %v746 = vsel %vm634, %v729, 0.0
  %v747 = vsel %vm635, %v731, 0.0
  %748 = vadd.xlane.f32.xlu0 %v732
  %v749 = vpop.xlane.xlu0 %748
  %750 = vadd.xlane.f32.xlu0 %v733
  %v751 = vpop.xlane.xlu0 %750
  %752 = vadd.xlane.f32.xlu0 %v734
  %v753 = vpop.xlane.xlu0 %752
  %754 = vadd.xlane.f32.xlu0 %v735
  %v755 = vpop.xlane.xlu0 %754
  %756 = vadd.xlane.f32.xlu0 %v736
  %v757 = vpop.xlane.xlu0 %756
  %758 = vadd.xlane.f32.xlu0 %v737
  %v759 = vpop.xlane.xlu0 %758
  %760 = vadd.xlane.f32.xlu0 %v738
  %v761 = vpop.xlane.xlu0 %760
  %762 = vadd.xlane.f32.xlu0 %v739
  %v763 = vpop.xlane.xlu0 %762
  %764 = vadd.xlane.f32.xlu0 %v740
  %v765 = vpop.xlane.xlu0 %764
  %766 = vadd.xlane.f32.xlu0 %v741
  %v767 = vpop.xlane.xlu0 %766
  %768 = vadd.xlane.f32.xlu0 %v742
  %v769 = vpop.xlane.xlu0 %768
  %770 = vadd.xlane.f32.xlu0 %v743
  %v771 = vpop.xlane.xlu0 %770
  %772 = vadd.xlane.f32.xlu0 %v744
  %v773 = vpop.xlane.xlu0 %772
  %774 = vadd.xlane.f32.xlu0 %v745
  %v775 = vpop.xlane.xlu0 %774
  %776 = vadd.xlane.f32.xlu0 %v746
  %v777 = vpop.xlane.xlu0 %776
  %778 = vadd.xlane.f32.xlu0 %v747
  %v779 = vpop.xlane.xlu0 %778
  %v780 = vmax.f32 %v749, 1e-20
  %v781 = vmax.f32 %v751, 1e-20
  %v782 = vmax.f32 %v753, 1e-20
  %v783 = vmax.f32 %v755, 1e-20
  %v784 = vmax.f32 %v757, 1e-20
  %v785 = vmax.f32 %v759, 1e-20
  %v786 = vmax.f32 %v761, 1e-20
  %v787 = vmax.f32 %v763, 1e-20
  %v788 = vmax.f32 %v765, 1e-20
  %v789 = vmax.f32 %v767, 1e-20
  %v790 = vmax.f32 %v769, 1e-20
  %v791 = vmax.f32 %v771, 1e-20
  %v792 = vmax.f32 %v773, 1e-20
  %v793 = vmax.f32 %v775, 1e-20
  %v794 = vmax.f32 %v777, 1e-20
  %v795 = vmax.f32 %v779, 1e-20
  %v796 = vrcp.pop %v780
  %v797 = vrcp.pop %v781
  %v798 = vrcp.pop %v782
  %v799 = vrcp.pop %v783
  %v800 = vrcp.pop %v784
  %v801 = vrcp.pop %v785
  %v802 = vrcp.pop %v786
  %v803 = vrcp.pop %v787
  %v804 = vrcp.pop %v788
  %v805 = vrcp.pop %v789
  %v806 = vrcp.pop %v790
  %v807 = vrcp.pop %v791
  %v808 = vrcp.pop %v792
  %v809 = vrcp.pop %v793
  %v810 = vrcp.pop %v794
  %v811 = vrcp.pop %v795
  %v812 = vmul.f32 %v732, %v796
  %v813 = vmul.f32 %v733, %v797
  %v814 = vmul.f32 %v734, %v798
  %v815 = vmul.f32 %v735, %v799
  %v816 = vmul.f32 %v736, %v800
  %v817 = vmul.f32 %v737, %v801
  %v818 = vmul.f32 %v738, %v802
  %v819 = vmul.f32 %v739, %v803
  %v820 = vmul.f32 %v740, %v804
  %v821 = vmul.f32 %v741, %v805
  %v822 = vmul.f32 %v742, %v806
  %v823 = vmul.f32 %v743, %v807
  %v824 = vmul.f32 %v744, %v808
  %v825 = vmul.f32 %v745, %v809
  %v826 = vmul.f32 %v746, %v810
  %v827 = vmul.f32 %v747, %v811
  %v828 = vpack.c.bf16 %v813, %v812
  %v829 = vpack.c.bf16 %v815, %v814
  %v830 = vpack.c.bf16 %v817, %v816
  %v831 = vpack.c.bf16 %v819, %v818
  %v832 = vpack.c.bf16 %v821, %v820
  %v833 = vpack.c.bf16 %v823, %v822
  %v834 = vpack.c.bf16 %v825, %v824
  %v835 = vpack.c.bf16 %v827, %v826
  %v836 = vld [vmem:[%s3] sm:$0xf]
  %v837 = vld [vmem:[%s3 + $0x4] sm:$0xf]
  %v838 = vld [vmem:[%s3 + $0x8] sm:$0xf]
  %v839 = vld [vmem:[%s3 + $0xc] sm:$0xf]
  %v840 = vld [vmem:[%s3 + $0x10] sm:$0xf]
  %v841 = vld [vmem:[%s3 + $0x14] sm:$0xf]
  %v842 = vld [vmem:[%s3 + $0x18] sm:$0xf]
  %v843 = vld [vmem:[%s3 + $0x1c] sm:$0xf]
  %v844 = vld [vmem:[%s3 + $0x20] sm:$0xf]
  %v845 = vld [vmem:[%s3 + $0x24] sm:$0xf]
  %v846 = vld [vmem:[%s3 + $0x28] sm:$0xf]
  %v847 = vld [vmem:[%s3 + $0x2c] sm:$0xf]
  %v848 = vld [vmem:[%s3 + $0x30] sm:$0xf]
  %v849 = vld [vmem:[%s3 + $0x34] sm:$0xf]
  %v850 = vld [vmem:[%s3 + $0x38] sm:$0xf]
  %v851 = vld [vmem:[%s3 + $0x3c] sm:$0xf]
  %v868 = vunpack.c.l.b16 %v836
  %v869 = vunpack.c.l.b16 %v837
  %v870 = vunpack.c.l.b16 %v838
  %v871 = vunpack.c.l.b16 %v839
  %v872 = vunpack.c.l.b16 %v840
  %v873 = vunpack.c.l.b16 %v841
  %v874 = vunpack.c.l.b16 %v842
  %v875 = vunpack.c.l.b16 %v843
  %v876 = vunpack.c.l.b16 %v844
  %v877 = vunpack.c.l.b16 %v845
  %v878 = vunpack.c.l.b16 %v846
  %v879 = vunpack.c.l.b16 %v847
  %v880 = vunpack.c.l.b16 %v848
  %v881 = vunpack.c.l.b16 %v849
  %v882 = vunpack.c.l.b16 %v850
  %v883 = vunpack.c.l.b16 %v851
  %v884 = vpack.c.b16 %v869, %v868
  %v885 = vpack.c.b16 %v871, %v870
  %v886 = vpack.c.b16 %v873, %v872
  %v887 = vpack.c.b16 %v875, %v874
  %v888 = vpack.c.b16 %v877, %v876
  %v889 = vpack.c.b16 %v879, %v878
  %v890 = vpack.c.b16 %v881, %v880
  %v891 = vpack.c.b16 %v883, %v882
  %900 = vmatpush.bf16.msra.mxu0 %v891
  %901 = vmatpush.bf16.msra.mxu0 %v890
  %902 = vmatpush.bf16.msra.mxu0 %v889
  %903 = vmatpush.bf16.msra.mxu0 %v888
  %904 = vmatpush.bf16.msra.mxu0 %v887
  %905 = vmatpush.bf16.msra.mxu0 %v886
  %906 = vmatpush.bf16.msra.mxu0 %v885
  %907 = vmatpush.bf16.msra.mxu0 %v884
  %908 = vmatmul.bf16.gmra.mxu0 %v828
  %v909 = vpop.f32.mrf.mxu0
  %v910 = vadd.f32 0.0, %v909
  %v911 = vpop.f32.mrf.mxu0
  %v912 = vadd.f32 0.0, %v911
  %913 = vmatmul.bf16.gmra.mxu0 %v829
  %v914 = vpop.f32.mrf.mxu0
  %v915 = vadd.f32 0.0, %v914
  %v916 = vpop.f32.mrf.mxu0
  %v917 = vadd.f32 0.0, %v916
  %918 = vmatmul.bf16.gmra.mxu0 %v830
  %v919 = vpop.f32.mrf.mxu0
  %v920 = vadd.f32 0.0, %v919
  %v921 = vpop.f32.mrf.mxu0
  %v922 = vadd.f32 0.0, %v921
  %923 = vmatmul.bf16.gmra.mxu0 %v831
  %v924 = vpop.f32.mrf.mxu0
  %v925 = vadd.f32 0.0, %v924
  %v926 = vpop.f32.mrf.mxu0
  %v927 = vadd.f32 0.0, %v926
  %928 = vmatmul.bf16.gmra.mxu0 %v832
  %v929 = vpop.f32.mrf.mxu0
  %v930 = vadd.f32 0.0, %v929
  %v931 = vpop.f32.mrf.mxu0
  %v932 = vadd.f32 0.0, %v931
  %933 = vmatmul.bf16.gmra.mxu0 %v833
  %v934 = vpop.f32.mrf.mxu0
  %v935 = vadd.f32 0.0, %v934
  %v936 = vpop.f32.mrf.mxu0
  %v937 = vadd.f32 0.0, %v936
  %938 = vmatmul.bf16.gmra.mxu0 %v834
  %v939 = vpop.f32.mrf.mxu0
  %v940 = vadd.f32 0.0, %v939
  %v941 = vpop.f32.mrf.mxu0
  %v942 = vadd.f32 0.0, %v941
  %943 = vmatmul.bf16.gmra.mxu0 %v835
  %v944 = vpop.f32.mrf.mxu0
  %v945 = vadd.f32 0.0, %v944
  %v946 = vpop.f32.mrf.mxu0
  %v947 = vadd.f32 0.0, %v946
  %948 = vdwg.mxu0
  %v965 = vunpack.c.l.b16 %v475
  %v966 = vunpack.c.l.b16 %v476
  %v967 = vunpack.c.l.b16 %v477
  %v968 = vunpack.c.l.b16 %v478
  %v969 = vunpack.c.l.b16 %v479
  %v970 = vunpack.c.l.b16 %v480
  %v971 = vunpack.c.l.b16 %v481
  %v972 = vunpack.c.l.b16 %v482
  %v973 = vunpack.c.l.b16 %v483
  %v974 = vunpack.c.l.b16 %v484
  %v975 = vunpack.c.l.b16 %v485
  %v976 = vunpack.c.l.b16 %v486
  %v977 = vunpack.c.l.b16 %v487
  %v978 = vunpack.c.l.b16 %v488
  %v979 = vunpack.c.l.b16 %v489
  %v980 = vunpack.c.l.b16 %v490
  %v981 = vpack.c.b16 %v966, %v965
  %v982 = vpack.c.b16 %v968, %v967
  %v983 = vpack.c.b16 %v970, %v969
  %v984 = vpack.c.b16 %v972, %v971
  %v985 = vpack.c.b16 %v974, %v973
  %v986 = vpack.c.b16 %v976, %v975
  %v987 = vpack.c.b16 %v978, %v977
  %v988 = vpack.c.b16 %v980, %v979
  %997 = vmatpush.bf16.msra.mxu0 %v988
  %998 = vmatpush.bf16.msra.mxu0 %v987
  %999 = vmatpush.bf16.msra.mxu0 %v986
  %1000 = vmatpush.bf16.msra.mxu0 %v985
  %1001 = vmatpush.bf16.msra.mxu0 %v984
  %1002 = vmatpush.bf16.msra.mxu0 %v983
  %1003 = vmatpush.bf16.msra.mxu0 %v982
  %1004 = vmatpush.bf16.msra.mxu0 %v981
  %1005 = vmatmul.bf16.gmra.mxu0 %v467
  %v1006 = vpop.f32.mrf.mxu0
  %v1007 = vadd.f32 %v910, %v1006
  %v1008 = vpop.f32.mrf.mxu0
  %v1009 = vadd.f32 %v912, %v1008
  %1010 = vmatmul.bf16.gmra.mxu0 %v468
  %v1011 = vpop.f32.mrf.mxu0
  %v1012 = vadd.f32 %v915, %v1011
  %v1013 = vpop.f32.mrf.mxu0
  %v1014 = vadd.f32 %v917, %v1013
  %1015 = vmatmul.bf16.gmra.mxu0 %v469
  %v1016 = vpop.f32.mrf.mxu0
  %v1017 = vadd.f32 %v920, %v1016
  %v1018 = vpop.f32.mrf.mxu0
  %v1019 = vadd.f32 %v922, %v1018
  %1020 = vmatmul.bf16.gmra.mxu0 %v470
  %v1021 = vpop.f32.mrf.mxu0
  %v1022 = vadd.f32 %v925, %v1021
  %v1023 = vpop.f32.mrf.mxu0
  %v1024 = vadd.f32 %v927, %v1023
  %1025 = vmatmul.bf16.gmra.mxu0 %v471
  %v1026 = vpop.f32.mrf.mxu0
  %v1027 = vadd.f32 %v930, %v1026
  %v1028 = vpop.f32.mrf.mxu0
  %v1029 = vadd.f32 %v932, %v1028
  %1030 = vmatmul.bf16.gmra.mxu0 %v472
  %v1031 = vpop.f32.mrf.mxu0
  %v1032 = vadd.f32 %v935, %v1031
  %v1033 = vpop.f32.mrf.mxu0
  %v1034 = vadd.f32 %v937, %v1033
  %1035 = vmatmul.bf16.gmra.mxu0 %v473
  %v1036 = vpop.f32.mrf.mxu0
  %v1037 = vadd.f32 %v940, %v1036
  %v1038 = vpop.f32.mrf.mxu0
  %v1039 = vadd.f32 %v942, %v1038
  %1040 = vmatmul.bf16.gmra.mxu0 %v474
  %v1041 = vpop.f32.mrf.mxu0
  %v1042 = vadd.f32 %v945, %v1041
  %v1043 = vpop.f32.mrf.mxu0
  %v1044 = vadd.f32 %v947, %v1043
  %1045 = vdwg.mxu0
  %v1046 = vld [vmem:[%s4 + $0x1] sm:$0x1]
  %v1047 = vld [vmem:[%s5 + $0x1] sm:$0x1]
  %1048 = vset.pattern.permute.xlu0 1
  %1049 = vperm.xlu0 %1048, %v96
  %v1050 = vpop.permute.xlu0 %1049
  %1052 = vset.pattern.permute.xlu0 1
  %1053 = vperm.xlu0 %1052, %v97
  %v1054 = vpop.permute.xlu0 %1053
  %1056 = vset.pattern.permute.xlu0 1
  %1057 = vperm.xlu0 %1056, %v98
  %v1058 = vpop.permute.xlu0 %1057
  %1060 = vset.pattern.permute.xlu0 1
  %1061 = vperm.xlu0 %1060, %v99
  %v1062 = vpop.permute.xlu0 %1061
  %1064 = vset.pattern.permute.xlu0 1
  %1065 = vperm.xlu0 %1064, %v100
  %v1066 = vpop.permute.xlu0 %1065
  %1068 = vset.pattern.permute.xlu0 1
  %1069 = vperm.xlu0 %1068, %v101
  %v1070 = vpop.permute.xlu0 %1069
  %1072 = vset.pattern.permute.xlu0 1
  %1073 = vperm.xlu0 %1072, %v102
  %v1074 = vpop.permute.xlu0 %1073
  %1076 = vset.pattern.permute.xlu0 1
  %1077 = vperm.xlu0 %1076, %v103
  %v1078 = vpop.permute.xlu0 %1077
  %1080 = vset.pattern.permute.xlu0 1
  %1081 = vperm.xlu0 %1080, %v104
  %v1082 = vpop.permute.xlu0 %1081
  %1084 = vset.pattern.permute.xlu0 1
  %1085 = vperm.xlu0 %1084, %v105
  %v1086 = vpop.permute.xlu0 %1085
  %1088 = vset.pattern.permute.xlu0 1
  %1089 = vperm.xlu0 %1088, %v106
  %v1090 = vpop.permute.xlu0 %1089
  %1092 = vset.pattern.permute.xlu0 1
  %1093 = vperm.xlu0 %1092, %v107
  %v1094 = vpop.permute.xlu0 %1093
  %1096 = vset.pattern.permute.xlu0 1
  %1097 = vperm.xlu0 %1096, %v108
  %v1098 = vpop.permute.xlu0 %1097
  %1100 = vset.pattern.permute.xlu0 1
  %1101 = vperm.xlu0 %1100, %v109
  %v1102 = vpop.permute.xlu0 %1101
  %1104 = vset.pattern.permute.xlu0 1
  %1105 = vperm.xlu0 %1104, %v110
  %v1106 = vpop.permute.xlu0 %1105
  %1108 = vset.pattern.permute.xlu0 1
  %1109 = vperm.xlu0 %1108, %v111
  %v1110 = vpop.permute.xlu0 %1109
  %v1112 = vperm.slane %v1046, 0
  %v1113 = vadd.f32 %v1050, %v1112
  %v1114 = vadd.f32 %v1054, %v1112
  %v1115 = vadd.f32 %v1058, %v1112
  %v1116 = vadd.f32 %v1062, %v1112
  %v1117 = vadd.f32 %v1066, %v1112
  %v1118 = vadd.f32 %v1070, %v1112
  %v1119 = vadd.f32 %v1074, %v1112
  %v1120 = vadd.f32 %v1078, %v1112
  %v1121 = vadd.f32 %v1082, %v1112
  %v1122 = vadd.f32 %v1086, %v1112
  %v1123 = vadd.f32 %v1090, %v1112
  %v1124 = vadd.f32 %v1094, %v1112
  %v1125 = vadd.f32 %v1098, %v1112
  %v1126 = vadd.f32 %v1102, %v1112
  %v1127 = vadd.f32 %v1106, %v1112
  %v1128 = vadd.f32 %v1110, %v1112
  %vm1129 = vcmp.gt.f32.partialorder %v1113, 0.0
  %vm1130 = vcmp.gt.f32.partialorder %v1114, 0.0
  %vm1131 = vcmp.gt.f32.partialorder %v1115, 0.0
  %vm1132 = vcmp.gt.f32.partialorder %v1116, 0.0
  %vm1133 = vcmp.gt.f32.partialorder %v1117, 0.0
  %vm1134 = vcmp.gt.f32.partialorder %v1118, 0.0
  %vm1135 = vcmp.gt.f32.partialorder %v1119, 0.0
  %vm1136 = vcmp.gt.f32.partialorder %v1120, 0.0
  %vm1137 = vcmp.gt.f32.partialorder %v1121, 0.0
  %vm1138 = vcmp.gt.f32.partialorder %v1122, 0.0
  %vm1139 = vcmp.gt.f32.partialorder %v1123, 0.0
  %vm1140 = vcmp.gt.f32.partialorder %v1124, 0.0
  %vm1141 = vcmp.gt.f32.partialorder %v1125, 0.0
  %vm1142 = vcmp.gt.f32.partialorder %v1126, 0.0
  %vm1143 = vcmp.gt.f32.partialorder %v1127, 0.0
  %vm1144 = vcmp.gt.f32.partialorder %v1128, 0.0
  %v1145 = vmul.f32 %v1113, 0.2
  %v1146 = vmul.f32 %v1114, 0.2
  %v1147 = vmul.f32 %v1115, 0.2
  %v1148 = vmul.f32 %v1116, 0.2
  %v1149 = vmul.f32 %v1117, 0.2
  %v1150 = vmul.f32 %v1118, 0.2
  %v1151 = vmul.f32 %v1119, 0.2
  %v1152 = vmul.f32 %v1120, 0.2
  %v1153 = vmul.f32 %v1121, 0.2
  %v1154 = vmul.f32 %v1122, 0.2
  %v1155 = vmul.f32 %v1123, 0.2
  %v1156 = vmul.f32 %v1124, 0.2
  %v1157 = vmul.f32 %v1125, 0.2
  %v1158 = vmul.f32 %v1126, 0.2
  %v1159 = vmul.f32 %v1127, 0.2
  %v1160 = vmul.f32 %v1128, 0.2
  %v1161 = vsel %vm1129, %v1113, %v1145
  %v1162 = vsel %vm1130, %v1114, %v1146
  %v1163 = vsel %vm1131, %v1115, %v1147
  %v1164 = vsel %vm1132, %v1116, %v1148
  %v1165 = vsel %vm1133, %v1117, %v1149
  %v1166 = vsel %vm1134, %v1118, %v1150
  %v1167 = vsel %vm1135, %v1119, %v1151
  %v1168 = vsel %vm1136, %v1120, %v1152
  %v1169 = vsel %vm1137, %v1121, %v1153
  %v1170 = vsel %vm1138, %v1122, %v1154
  %v1171 = vsel %vm1139, %v1123, %v1155
  %v1172 = vsel %vm1140, %v1124, %v1156
  %v1173 = vsel %vm1141, %v1125, %v1157
  %v1174 = vsel %vm1142, %v1126, %v1158
  %v1175 = vsel %vm1143, %v1127, %v1159
  %v1176 = vsel %vm1144, %v1128, %v1160
  %v1177 = vsel %vm259, %v1161, -1e+30
  %v1178 = vsel %vm260, %v1162, -1e+30
  %v1179 = vsel %vm261, %v1163, -1e+30
  %v1180 = vsel %vm262, %v1164, -1e+30
  %v1181 = vsel %vm263, %v1165, -1e+30
  %v1182 = vsel %vm264, %v1166, -1e+30
  %v1183 = vsel %vm265, %v1167, -1e+30
  %v1184 = vsel %vm266, %v1168, -1e+30
  %v1185 = vsel %vm267, %v1169, -1e+30
  %v1186 = vsel %vm268, %v1170, -1e+30
  %v1187 = vsel %vm269, %v1171, -1e+30
  %v1188 = vsel %vm270, %v1172, -1e+30
  %v1189 = vsel %vm271, %v1173, -1e+30
  %v1190 = vsel %vm272, %v1174, -1e+30
  %v1191 = vsel %vm273, %v1175, -1e+30
  %v1192 = vsel %vm274, %v1176, -1e+30
  %1193 = vmax.xlane.f32.xlu0 %v1177
  %v1194 = vpop.xlane.xlu0 %1193
  %1195 = vmax.xlane.f32.xlu0 %v1178
  %v1196 = vpop.xlane.xlu0 %1195
  %1197 = vmax.xlane.f32.xlu0 %v1179
  %v1198 = vpop.xlane.xlu0 %1197
  %1199 = vmax.xlane.f32.xlu0 %v1180
  %v1200 = vpop.xlane.xlu0 %1199
  %1201 = vmax.xlane.f32.xlu0 %v1181
  %v1202 = vpop.xlane.xlu0 %1201
  %1203 = vmax.xlane.f32.xlu0 %v1182
  %v1204 = vpop.xlane.xlu0 %1203
  %1205 = vmax.xlane.f32.xlu0 %v1183
  %v1206 = vpop.xlane.xlu0 %1205
  %1207 = vmax.xlane.f32.xlu0 %v1184
  %v1208 = vpop.xlane.xlu0 %1207
  %1209 = vmax.xlane.f32.xlu0 %v1185
  %v1210 = vpop.xlane.xlu0 %1209
  %1211 = vmax.xlane.f32.xlu0 %v1186
  %v1212 = vpop.xlane.xlu0 %1211
  %1213 = vmax.xlane.f32.xlu0 %v1187
  %v1214 = vpop.xlane.xlu0 %1213
  %1215 = vmax.xlane.f32.xlu0 %v1188
  %v1216 = vpop.xlane.xlu0 %1215
  %1217 = vmax.xlane.f32.xlu0 %v1189
  %v1218 = vpop.xlane.xlu0 %1217
  %1219 = vmax.xlane.f32.xlu0 %v1190
  %v1220 = vpop.xlane.xlu0 %1219
  %1221 = vmax.xlane.f32.xlu0 %v1191
  %v1222 = vpop.xlane.xlu0 %1221
  %1223 = vmax.xlane.f32.xlu0 %v1192
  %v1224 = vpop.xlane.xlu0 %1223
  %v1225 = vsub.f32 %v1177, %v1194
  %v1226 = vsub.f32 %v1178, %v1196
  %v1227 = vsub.f32 %v1179, %v1198
  %v1228 = vsub.f32 %v1180, %v1200
  %v1229 = vsub.f32 %v1181, %v1202
  %v1230 = vsub.f32 %v1182, %v1204
  %v1231 = vsub.f32 %v1183, %v1206
  %v1232 = vsub.f32 %v1184, %v1208
  %v1233 = vsub.f32 %v1185, %v1210
  %v1234 = vsub.f32 %v1186, %v1212
  %v1235 = vsub.f32 %v1187, %v1214
  %v1236 = vsub.f32 %v1188, %v1216
  %v1237 = vsub.f32 %v1189, %v1218
  %v1238 = vsub.f32 %v1190, %v1220
  %v1239 = vsub.f32 %v1191, %v1222
  %v1240 = vsub.f32 %v1192, %v1224
  %v1241 = vmul.f32 %v1225, 1.442695
  %v1242 = vpow.pop %v1241
  %v1243 = vmul.f32 %v1226, 1.442695
  %v1244 = vpow.pop %v1243
  %v1245 = vmul.f32 %v1227, 1.442695
  %v1246 = vpow.pop %v1245
  %v1247 = vmul.f32 %v1228, 1.442695
  %v1248 = vpow.pop %v1247
  %v1249 = vmul.f32 %v1229, 1.442695
  %v1250 = vpow.pop %v1249
  %v1251 = vmul.f32 %v1230, 1.442695
  %v1252 = vpow.pop %v1251
  %v1253 = vmul.f32 %v1231, 1.442695
  %v1254 = vpow.pop %v1253
  %v1255 = vmul.f32 %v1232, 1.442695
  %v1256 = vpow.pop %v1255
  %v1257 = vmul.f32 %v1233, 1.442695
  %v1258 = vpow.pop %v1257
  %v1259 = vmul.f32 %v1234, 1.442695
  %v1260 = vpow.pop %v1259
  %v1261 = vmul.f32 %v1235, 1.442695
  %v1262 = vpow.pop %v1261
  %v1263 = vmul.f32 %v1236, 1.442695
  %v1264 = vpow.pop %v1263
  %v1265 = vmul.f32 %v1237, 1.442695
  %v1266 = vpow.pop %v1265
  %v1267 = vmul.f32 %v1238, 1.442695
  %v1268 = vpow.pop %v1267
  %v1269 = vmul.f32 %v1239, 1.442695
  %v1270 = vpow.pop %v1269
  %v1271 = vmul.f32 %v1240, 1.442695
  %v1272 = vpow.pop %v1271
  %v1273 = vsel %vm259, %v1242, 0.0
  %v1274 = vsel %vm260, %v1244, 0.0
  %v1275 = vsel %vm261, %v1246, 0.0
  %v1276 = vsel %vm262, %v1248, 0.0
  %v1277 = vsel %vm263, %v1250, 0.0
  %v1278 = vsel %vm264, %v1252, 0.0
  %v1279 = vsel %vm265, %v1254, 0.0
  %v1280 = vsel %vm266, %v1256, 0.0
  %v1281 = vsel %vm267, %v1258, 0.0
  %v1282 = vsel %vm268, %v1260, 0.0
  %v1283 = vsel %vm269, %v1262, 0.0
  %v1284 = vsel %vm270, %v1264, 0.0
  %v1285 = vsel %vm271, %v1266, 0.0
  %v1286 = vsel %vm272, %v1268, 0.0
  %v1287 = vsel %vm273, %v1270, 0.0
  %v1288 = vsel %vm274, %v1272, 0.0
  %1289 = vadd.xlane.f32.xlu0 %v1273
  %v1290 = vpop.xlane.xlu0 %1289
  %1291 = vadd.xlane.f32.xlu0 %v1274
  %v1292 = vpop.xlane.xlu0 %1291
  %1293 = vadd.xlane.f32.xlu0 %v1275
  %v1294 = vpop.xlane.xlu0 %1293
  %1295 = vadd.xlane.f32.xlu0 %v1276
  %v1296 = vpop.xlane.xlu0 %1295
  %1297 = vadd.xlane.f32.xlu0 %v1277
  %v1298 = vpop.xlane.xlu0 %1297
  %1299 = vadd.xlane.f32.xlu0 %v1278
  %v1300 = vpop.xlane.xlu0 %1299
  %1301 = vadd.xlane.f32.xlu0 %v1279
  %v1302 = vpop.xlane.xlu0 %1301
  %1303 = vadd.xlane.f32.xlu0 %v1280
  %v1304 = vpop.xlane.xlu0 %1303
  %1305 = vadd.xlane.f32.xlu0 %v1281
  %v1306 = vpop.xlane.xlu0 %1305
  %1307 = vadd.xlane.f32.xlu0 %v1282
  %v1308 = vpop.xlane.xlu0 %1307
  %1309 = vadd.xlane.f32.xlu0 %v1283
  %v1310 = vpop.xlane.xlu0 %1309
  %1311 = vadd.xlane.f32.xlu0 %v1284
  %v1312 = vpop.xlane.xlu0 %1311
  %1313 = vadd.xlane.f32.xlu0 %v1285
  %v1314 = vpop.xlane.xlu0 %1313
  %1315 = vadd.xlane.f32.xlu0 %v1286
  %v1316 = vpop.xlane.xlu0 %1315
  %1317 = vadd.xlane.f32.xlu0 %v1287
  %v1318 = vpop.xlane.xlu0 %1317
  %1319 = vadd.xlane.f32.xlu0 %v1288
  %v1320 = vpop.xlane.xlu0 %1319
  %v1321 = vmax.f32 %v1290, 1e-20
  %v1322 = vmax.f32 %v1292, 1e-20
  %v1323 = vmax.f32 %v1294, 1e-20
  %v1324 = vmax.f32 %v1296, 1e-20
  %v1325 = vmax.f32 %v1298, 1e-20
  %v1326 = vmax.f32 %v1300, 1e-20
  %v1327 = vmax.f32 %v1302, 1e-20
  %v1328 = vmax.f32 %v1304, 1e-20
  %v1329 = vmax.f32 %v1306, 1e-20
  %v1330 = vmax.f32 %v1308, 1e-20
  %v1331 = vmax.f32 %v1310, 1e-20
  %v1332 = vmax.f32 %v1312, 1e-20
  %v1333 = vmax.f32 %v1314, 1e-20
  %v1334 = vmax.f32 %v1316, 1e-20
  %v1335 = vmax.f32 %v1318, 1e-20
  %v1336 = vmax.f32 %v1320, 1e-20
  %v1337 = vrcp.pop %v1321
  %v1338 = vrcp.pop %v1322
  %v1339 = vrcp.pop %v1323
  %v1340 = vrcp.pop %v1324
  %v1341 = vrcp.pop %v1325
  %v1342 = vrcp.pop %v1326
  %v1343 = vrcp.pop %v1327
  %v1344 = vrcp.pop %v1328
  %v1345 = vrcp.pop %v1329
  %v1346 = vrcp.pop %v1330
  %v1347 = vrcp.pop %v1331
  %v1348 = vrcp.pop %v1332
  %v1349 = vrcp.pop %v1333
  %v1350 = vrcp.pop %v1334
  %v1351 = vrcp.pop %v1335
  %v1352 = vrcp.pop %v1336
  %v1353 = vmul.f32 %v1273, %v1337
  %v1354 = vmul.f32 %v1274, %v1338
  %v1355 = vmul.f32 %v1275, %v1339
  %v1356 = vmul.f32 %v1276, %v1340
  %v1357 = vmul.f32 %v1277, %v1341
  %v1358 = vmul.f32 %v1278, %v1342
  %v1359 = vmul.f32 %v1279, %v1343
  %v1360 = vmul.f32 %v1280, %v1344
  %v1361 = vmul.f32 %v1281, %v1345
  %v1362 = vmul.f32 %v1282, %v1346
  %v1363 = vmul.f32 %v1283, %v1347
  %v1364 = vmul.f32 %v1284, %v1348
  %v1365 = vmul.f32 %v1285, %v1349
  %v1366 = vmul.f32 %v1286, %v1350
  %v1367 = vmul.f32 %v1287, %v1351
  %v1368 = vmul.f32 %v1288, %v1352
  %v1369 = vpack.c.bf16 %v1354, %v1353
  %v1370 = vpack.c.bf16 %v1356, %v1355
  %v1371 = vpack.c.bf16 %v1358, %v1357
  %v1372 = vpack.c.bf16 %v1360, %v1359
  %v1373 = vpack.c.bf16 %v1362, %v1361
  %v1374 = vpack.c.bf16 %v1364, %v1363
  %v1375 = vpack.c.bf16 %v1366, %v1365
  %v1376 = vpack.c.bf16 %v1368, %v1367
  %1377 = vset.pattern.permute.xlu0 3
  %1378 = vperm.xlu0 %1377, %v96
  %v1379 = vpop.permute.xlu0 %1378
  %1381 = vset.pattern.permute.xlu0 3
  %1382 = vperm.xlu0 %1381, %v97
  %v1383 = vpop.permute.xlu0 %1382
  %1385 = vset.pattern.permute.xlu0 3
  %1386 = vperm.xlu0 %1385, %v98
  %v1387 = vpop.permute.xlu0 %1386
  %1389 = vset.pattern.permute.xlu0 3
  %1390 = vperm.xlu0 %1389, %v99
  %v1391 = vpop.permute.xlu0 %1390
  %1393 = vset.pattern.permute.xlu0 3
  %1394 = vperm.xlu0 %1393, %v100
  %v1395 = vpop.permute.xlu0 %1394
  %1397 = vset.pattern.permute.xlu0 3
  %1398 = vperm.xlu0 %1397, %v101
  %v1399 = vpop.permute.xlu0 %1398
  %1401 = vset.pattern.permute.xlu0 3
  %1402 = vperm.xlu0 %1401, %v102
  %v1403 = vpop.permute.xlu0 %1402
  %1405 = vset.pattern.permute.xlu0 3
  %1406 = vperm.xlu0 %1405, %v103
  %v1407 = vpop.permute.xlu0 %1406
  %1409 = vset.pattern.permute.xlu0 3
  %1410 = vperm.xlu0 %1409, %v104
  %v1411 = vpop.permute.xlu0 %1410
  %1413 = vset.pattern.permute.xlu0 3
  %1414 = vperm.xlu0 %1413, %v105
  %v1415 = vpop.permute.xlu0 %1414
  %1417 = vset.pattern.permute.xlu0 3
  %1418 = vperm.xlu0 %1417, %v106
  %v1419 = vpop.permute.xlu0 %1418
  %1421 = vset.pattern.permute.xlu0 3
  %1422 = vperm.xlu0 %1421, %v107
  %v1423 = vpop.permute.xlu0 %1422
  %1425 = vset.pattern.permute.xlu0 3
  %1426 = vperm.xlu0 %1425, %v108
  %v1427 = vpop.permute.xlu0 %1426
  %1429 = vset.pattern.permute.xlu0 3
  %1430 = vperm.xlu0 %1429, %v109
  %v1431 = vpop.permute.xlu0 %1430
  %1433 = vset.pattern.permute.xlu0 3
  %1434 = vperm.xlu0 %1433, %v110
  %v1435 = vpop.permute.xlu0 %1434
  %1437 = vset.pattern.permute.xlu0 3
  %1438 = vperm.xlu0 %1437, %v111
  %v1439 = vpop.permute.xlu0 %1438
  %v1441 = vperm.slane %v1047, 0
  %v1442 = vadd.f32 %v1379, %v1441
  %v1443 = vadd.f32 %v1383, %v1441
  %v1444 = vadd.f32 %v1387, %v1441
  %v1445 = vadd.f32 %v1391, %v1441
  %v1446 = vadd.f32 %v1395, %v1441
  %v1447 = vadd.f32 %v1399, %v1441
  %v1448 = vadd.f32 %v1403, %v1441
  %v1449 = vadd.f32 %v1407, %v1441
  %v1450 = vadd.f32 %v1411, %v1441
  %v1451 = vadd.f32 %v1415, %v1441
  %v1452 = vadd.f32 %v1419, %v1441
  %v1453 = vadd.f32 %v1423, %v1441
  %v1454 = vadd.f32 %v1427, %v1441
  %v1455 = vadd.f32 %v1431, %v1441
  %v1456 = vadd.f32 %v1435, %v1441
  %v1457 = vadd.f32 %v1439, %v1441
  %vm1458 = vcmp.gt.f32.partialorder %v1442, 0.0
  %vm1459 = vcmp.gt.f32.partialorder %v1443, 0.0
  %vm1460 = vcmp.gt.f32.partialorder %v1444, 0.0
  %vm1461 = vcmp.gt.f32.partialorder %v1445, 0.0
  %vm1462 = vcmp.gt.f32.partialorder %v1446, 0.0
  %vm1463 = vcmp.gt.f32.partialorder %v1447, 0.0
  %vm1464 = vcmp.gt.f32.partialorder %v1448, 0.0
  %vm1465 = vcmp.gt.f32.partialorder %v1449, 0.0
  %vm1466 = vcmp.gt.f32.partialorder %v1450, 0.0
  %vm1467 = vcmp.gt.f32.partialorder %v1451, 0.0
  %vm1468 = vcmp.gt.f32.partialorder %v1452, 0.0
  %vm1469 = vcmp.gt.f32.partialorder %v1453, 0.0
  %vm1470 = vcmp.gt.f32.partialorder %v1454, 0.0
  %vm1471 = vcmp.gt.f32.partialorder %v1455, 0.0
  %vm1472 = vcmp.gt.f32.partialorder %v1456, 0.0
  %vm1473 = vcmp.gt.f32.partialorder %v1457, 0.0
  %v1474 = vmul.f32 %v1442, 0.2
  %v1475 = vmul.f32 %v1443, 0.2
  %v1476 = vmul.f32 %v1444, 0.2
  %v1477 = vmul.f32 %v1445, 0.2
  %v1478 = vmul.f32 %v1446, 0.2
  %v1479 = vmul.f32 %v1447, 0.2
  %v1480 = vmul.f32 %v1448, 0.2
  %v1481 = vmul.f32 %v1449, 0.2
  %v1482 = vmul.f32 %v1450, 0.2
  %v1483 = vmul.f32 %v1451, 0.2
  %v1484 = vmul.f32 %v1452, 0.2
  %v1485 = vmul.f32 %v1453, 0.2
  %v1486 = vmul.f32 %v1454, 0.2
  %v1487 = vmul.f32 %v1455, 0.2
  %v1488 = vmul.f32 %v1456, 0.2
  %v1489 = vmul.f32 %v1457, 0.2
  %v1490 = vsel %vm1458, %v1442, %v1474
  %v1491 = vsel %vm1459, %v1443, %v1475
  %v1492 = vsel %vm1460, %v1444, %v1476
  %v1493 = vsel %vm1461, %v1445, %v1477
  %v1494 = vsel %vm1462, %v1446, %v1478
  %v1495 = vsel %vm1463, %v1447, %v1479
  %v1496 = vsel %vm1464, %v1448, %v1480
  %v1497 = vsel %vm1465, %v1449, %v1481
  %v1498 = vsel %vm1466, %v1450, %v1482
  %v1499 = vsel %vm1467, %v1451, %v1483
  %v1500 = vsel %vm1468, %v1452, %v1484
  %v1501 = vsel %vm1469, %v1453, %v1485
  %v1502 = vsel %vm1470, %v1454, %v1486
  %v1503 = vsel %vm1471, %v1455, %v1487
  %v1504 = vsel %vm1472, %v1456, %v1488
  %v1505 = vsel %vm1473, %v1457, %v1489
  %v1506 = vsel %vm620, %v1490, -1e+30
  %v1507 = vsel %vm621, %v1491, -1e+30
  %v1508 = vsel %vm622, %v1492, -1e+30
  %v1509 = vsel %vm623, %v1493, -1e+30
  %v1510 = vsel %vm624, %v1494, -1e+30
  %v1511 = vsel %vm625, %v1495, -1e+30
  %v1512 = vsel %vm626, %v1496, -1e+30
  %v1513 = vsel %vm627, %v1497, -1e+30
  %v1514 = vsel %vm628, %v1498, -1e+30
  %v1515 = vsel %vm629, %v1499, -1e+30
  %v1516 = vsel %vm630, %v1500, -1e+30
  %v1517 = vsel %vm631, %v1501, -1e+30
  %v1518 = vsel %vm632, %v1502, -1e+30
  %v1519 = vsel %vm633, %v1503, -1e+30
  %v1520 = vsel %vm634, %v1504, -1e+30
  %v1521 = vsel %vm635, %v1505, -1e+30
  %1522 = vmax.xlane.f32.xlu0 %v1506
  %v1523 = vpop.xlane.xlu0 %1522
  %1524 = vmax.xlane.f32.xlu0 %v1507
  %v1525 = vpop.xlane.xlu0 %1524
  %1526 = vmax.xlane.f32.xlu0 %v1508
  %v1527 = vpop.xlane.xlu0 %1526
  %1528 = vmax.xlane.f32.xlu0 %v1509
  %v1529 = vpop.xlane.xlu0 %1528
  %1530 = vmax.xlane.f32.xlu0 %v1510
  %v1531 = vpop.xlane.xlu0 %1530
  %1532 = vmax.xlane.f32.xlu0 %v1511
  %v1533 = vpop.xlane.xlu0 %1532
  %1534 = vmax.xlane.f32.xlu0 %v1512
  %v1535 = vpop.xlane.xlu0 %1534
  %1536 = vmax.xlane.f32.xlu0 %v1513
  %v1537 = vpop.xlane.xlu0 %1536
  %1538 = vmax.xlane.f32.xlu0 %v1514
  %v1539 = vpop.xlane.xlu0 %1538
  %1540 = vmax.xlane.f32.xlu0 %v1515
  %v1541 = vpop.xlane.xlu0 %1540
  %1542 = vmax.xlane.f32.xlu0 %v1516
  %v1543 = vpop.xlane.xlu0 %1542
  %1544 = vmax.xlane.f32.xlu0 %v1517
  %v1545 = vpop.xlane.xlu0 %1544
  %1546 = vmax.xlane.f32.xlu0 %v1518
  %v1547 = vpop.xlane.xlu0 %1546
  %1548 = vmax.xlane.f32.xlu0 %v1519
  %v1549 = vpop.xlane.xlu0 %1548
  %1550 = vmax.xlane.f32.xlu0 %v1520
  %v1551 = vpop.xlane.xlu0 %1550
  %1552 = vmax.xlane.f32.xlu0 %v1521
  %v1553 = vpop.xlane.xlu0 %1552
  %v1554 = vsub.f32 %v1506, %v1523
  %v1555 = vsub.f32 %v1507, %v1525
  %v1556 = vsub.f32 %v1508, %v1527
  %v1557 = vsub.f32 %v1509, %v1529
  %v1558 = vsub.f32 %v1510, %v1531
  %v1559 = vsub.f32 %v1511, %v1533
  %v1560 = vsub.f32 %v1512, %v1535
  %v1561 = vsub.f32 %v1513, %v1537
  %v1562 = vsub.f32 %v1514, %v1539
  %v1563 = vsub.f32 %v1515, %v1541
  %v1564 = vsub.f32 %v1516, %v1543
  %v1565 = vsub.f32 %v1517, %v1545
  %v1566 = vsub.f32 %v1518, %v1547
  %v1567 = vsub.f32 %v1519, %v1549
  %v1568 = vsub.f32 %v1520, %v1551
  %v1569 = vsub.f32 %v1521, %v1553
  %v1570 = vmul.f32 %v1554, 1.442695
  %v1571 = vpow.pop %v1570
  %v1572 = vmul.f32 %v1555, 1.442695
  %v1573 = vpow.pop %v1572
  %v1574 = vmul.f32 %v1556, 1.442695
  %v1575 = vpow.pop %v1574
  %v1576 = vmul.f32 %v1557, 1.442695
  %v1577 = vpow.pop %v1576
  %v1578 = vmul.f32 %v1558, 1.442695
  %v1579 = vpow.pop %v1578
  %v1580 = vmul.f32 %v1559, 1.442695
  %v1581 = vpow.pop %v1580
  %v1582 = vmul.f32 %v1560, 1.442695
  %v1583 = vpow.pop %v1582
  %v1584 = vmul.f32 %v1561, 1.442695
  %v1585 = vpow.pop %v1584
  %v1586 = vmul.f32 %v1562, 1.442695
  %v1587 = vpow.pop %v1586
  %v1588 = vmul.f32 %v1563, 1.442695
  %v1589 = vpow.pop %v1588
  %v1590 = vmul.f32 %v1564, 1.442695
  %v1591 = vpow.pop %v1590
  %v1592 = vmul.f32 %v1565, 1.442695
  %v1593 = vpow.pop %v1592
  %v1594 = vmul.f32 %v1566, 1.442695
  %v1595 = vpow.pop %v1594
  %v1596 = vmul.f32 %v1567, 1.442695
  %v1597 = vpow.pop %v1596
  %v1598 = vmul.f32 %v1568, 1.442695
  %v1599 = vpow.pop %v1598
  %v1600 = vmul.f32 %v1569, 1.442695
  %v1601 = vpow.pop %v1600
  %v1602 = vsel %vm620, %v1571, 0.0
  %v1603 = vsel %vm621, %v1573, 0.0
  %v1604 = vsel %vm622, %v1575, 0.0
  %v1605 = vsel %vm623, %v1577, 0.0
  %v1606 = vsel %vm624, %v1579, 0.0
  %v1607 = vsel %vm625, %v1581, 0.0
  %v1608 = vsel %vm626, %v1583, 0.0
  %v1609 = vsel %vm627, %v1585, 0.0
  %v1610 = vsel %vm628, %v1587, 0.0
  %v1611 = vsel %vm629, %v1589, 0.0
  %v1612 = vsel %vm630, %v1591, 0.0
  %v1613 = vsel %vm631, %v1593, 0.0
  %v1614 = vsel %vm632, %v1595, 0.0
  %v1615 = vsel %vm633, %v1597, 0.0
  %v1616 = vsel %vm634, %v1599, 0.0
  %v1617 = vsel %vm635, %v1601, 0.0
  %1618 = vadd.xlane.f32.xlu0 %v1602
  %v1619 = vpop.xlane.xlu0 %1618
  %1620 = vadd.xlane.f32.xlu0 %v1603
  %v1621 = vpop.xlane.xlu0 %1620
  %1622 = vadd.xlane.f32.xlu0 %v1604
  %v1623 = vpop.xlane.xlu0 %1622
  %1624 = vadd.xlane.f32.xlu0 %v1605
  %v1625 = vpop.xlane.xlu0 %1624
  %1626 = vadd.xlane.f32.xlu0 %v1606
  %v1627 = vpop.xlane.xlu0 %1626
  %1628 = vadd.xlane.f32.xlu0 %v1607
  %v1629 = vpop.xlane.xlu0 %1628
  %1630 = vadd.xlane.f32.xlu0 %v1608
  %v1631 = vpop.xlane.xlu0 %1630
  %1632 = vadd.xlane.f32.xlu0 %v1609
  %v1633 = vpop.xlane.xlu0 %1632
  %1634 = vadd.xlane.f32.xlu0 %v1610
  %v1635 = vpop.xlane.xlu0 %1634
  %1636 = vadd.xlane.f32.xlu0 %v1611
  %v1637 = vpop.xlane.xlu0 %1636
  %1638 = vadd.xlane.f32.xlu0 %v1612
  %v1639 = vpop.xlane.xlu0 %1638
  %1640 = vadd.xlane.f32.xlu0 %v1613
  %v1641 = vpop.xlane.xlu0 %1640
  %1642 = vadd.xlane.f32.xlu0 %v1614
  %v1643 = vpop.xlane.xlu0 %1642
  %1644 = vadd.xlane.f32.xlu0 %v1615
  %v1645 = vpop.xlane.xlu0 %1644
  %1646 = vadd.xlane.f32.xlu0 %v1616
  %v1647 = vpop.xlane.xlu0 %1646
  %1648 = vadd.xlane.f32.xlu0 %v1617
  %v1649 = vpop.xlane.xlu0 %1648
  %v1650 = vmax.f32 %v1619, 1e-20
  %v1651 = vmax.f32 %v1621, 1e-20
  %v1652 = vmax.f32 %v1623, 1e-20
  %v1653 = vmax.f32 %v1625, 1e-20
  %v1654 = vmax.f32 %v1627, 1e-20
  %v1655 = vmax.f32 %v1629, 1e-20
  %v1656 = vmax.f32 %v1631, 1e-20
  %v1657 = vmax.f32 %v1633, 1e-20
  %v1658 = vmax.f32 %v1635, 1e-20
  %v1659 = vmax.f32 %v1637, 1e-20
  %v1660 = vmax.f32 %v1639, 1e-20
  %v1661 = vmax.f32 %v1641, 1e-20
  %v1662 = vmax.f32 %v1643, 1e-20
  %v1663 = vmax.f32 %v1645, 1e-20
  %v1664 = vmax.f32 %v1647, 1e-20
  %v1665 = vmax.f32 %v1649, 1e-20
  %v1666 = vrcp.pop %v1650
  %v1667 = vrcp.pop %v1651
  %v1668 = vrcp.pop %v1652
  %v1669 = vrcp.pop %v1653
  %v1670 = vrcp.pop %v1654
  %v1671 = vrcp.pop %v1655
  %v1672 = vrcp.pop %v1656
  %v1673 = vrcp.pop %v1657
  %v1674 = vrcp.pop %v1658
  %v1675 = vrcp.pop %v1659
  %v1676 = vrcp.pop %v1660
  %v1677 = vrcp.pop %v1661
  %v1678 = vrcp.pop %v1662
  %v1679 = vrcp.pop %v1663
  %v1680 = vrcp.pop %v1664
  %v1681 = vrcp.pop %v1665
  %v1682 = vmul.f32 %v1602, %v1666
  %v1683 = vmul.f32 %v1603, %v1667
  %v1684 = vmul.f32 %v1604, %v1668
  %v1685 = vmul.f32 %v1605, %v1669
  %v1686 = vmul.f32 %v1606, %v1670
  %v1687 = vmul.f32 %v1607, %v1671
  %v1688 = vmul.f32 %v1608, %v1672
  %v1689 = vmul.f32 %v1609, %v1673
  %v1690 = vmul.f32 %v1610, %v1674
  %v1691 = vmul.f32 %v1611, %v1675
  %v1692 = vmul.f32 %v1612, %v1676
  %v1693 = vmul.f32 %v1613, %v1677
  %v1694 = vmul.f32 %v1614, %v1678
  %v1695 = vmul.f32 %v1615, %v1679
  %v1696 = vmul.f32 %v1616, %v1680
  %v1697 = vmul.f32 %v1617, %v1681
  %v1698 = vpack.c.bf16 %v1683, %v1682
  %v1699 = vpack.c.bf16 %v1685, %v1684
  %v1700 = vpack.c.bf16 %v1687, %v1686
  %v1701 = vpack.c.bf16 %v1689, %v1688
  %v1702 = vpack.c.bf16 %v1691, %v1690
  %v1703 = vpack.c.bf16 %v1693, %v1692
  %v1704 = vpack.c.bf16 %v1695, %v1694
  %v1705 = vpack.c.bf16 %v1697, %v1696
  %1706 = vrot.lane.b32.xlu0 %v884, 64
  %v1707 = vpop.permute.xlu0 %1706
  %1708 = vrot.lane.b32.xlu0 %v885, 64
  %v1709 = vpop.permute.xlu0 %1708
  %1710 = vrot.lane.b32.xlu0 %v886, 64
  %v1711 = vpop.permute.xlu0 %1710
  %1712 = vrot.lane.b32.xlu0 %v887, 64
  %v1713 = vpop.permute.xlu0 %1712
  %1714 = vrot.lane.b32.xlu0 %v888, 64
  %v1715 = vpop.permute.xlu0 %1714
  %1716 = vrot.lane.b32.xlu0 %v889, 64
  %v1717 = vpop.permute.xlu0 %1716
  %1718 = vrot.lane.b32.xlu0 %v890, 64
  %v1719 = vpop.permute.xlu0 %1718
  %1720 = vrot.lane.b32.xlu0 %v891, 64
  %v1721 = vpop.permute.xlu0 %1720
  %1730 = vmatpush.bf16.msra.mxu0 %v1721
  %1731 = vmatpush.bf16.msra.mxu0 %v1719
  %1732 = vmatpush.bf16.msra.mxu0 %v1717
  %1733 = vmatpush.bf16.msra.mxu0 %v1715
  %1734 = vmatpush.bf16.msra.mxu0 %v1713
  %1735 = vmatpush.bf16.msra.mxu0 %v1711
  %1736 = vmatpush.bf16.msra.mxu0 %v1709
  %1737 = vmatpush.bf16.msra.mxu0 %v1707
  %1738 = vmatmul.bf16.gmra.mxu0 %v1698
  %v1739 = vpop.f32.mrf.mxu0
  %v1740 = vadd.f32 0.0, %v1739
  %v1741 = vpop.f32.mrf.mxu0
  %v1742 = vadd.f32 0.0, %v1741
  %1743 = vmatmul.bf16.gmra.mxu0 %v1699
  %v1744 = vpop.f32.mrf.mxu0
  %v1745 = vadd.f32 0.0, %v1744
  %v1746 = vpop.f32.mrf.mxu0
  %v1747 = vadd.f32 0.0, %v1746
  %1748 = vmatmul.bf16.gmra.mxu0 %v1700
  %v1749 = vpop.f32.mrf.mxu0
  %v1750 = vadd.f32 0.0, %v1749
  %v1751 = vpop.f32.mrf.mxu0
  %v1752 = vadd.f32 0.0, %v1751
  %1753 = vmatmul.bf16.gmra.mxu0 %v1701
  %v1754 = vpop.f32.mrf.mxu0
  %v1755 = vadd.f32 0.0, %v1754
  %v1756 = vpop.f32.mrf.mxu0
  %v1757 = vadd.f32 0.0, %v1756
  %1758 = vmatmul.bf16.gmra.mxu0 %v1702
  %v1759 = vpop.f32.mrf.mxu0
  %v1760 = vadd.f32 0.0, %v1759
  %v1761 = vpop.f32.mrf.mxu0
  %v1762 = vadd.f32 0.0, %v1761
  %1763 = vmatmul.bf16.gmra.mxu0 %v1703
  %v1764 = vpop.f32.mrf.mxu0
  %v1765 = vadd.f32 0.0, %v1764
  %v1766 = vpop.f32.mrf.mxu0
  %v1767 = vadd.f32 0.0, %v1766
  %1768 = vmatmul.bf16.gmra.mxu0 %v1704
  %v1769 = vpop.f32.mrf.mxu0
  %v1770 = vadd.f32 0.0, %v1769
  %v1771 = vpop.f32.mrf.mxu0
  %v1772 = vadd.f32 0.0, %v1771
  %1773 = vmatmul.bf16.gmra.mxu0 %v1705
  %v1774 = vpop.f32.mrf.mxu0
  %v1775 = vadd.f32 0.0, %v1774
  %v1776 = vpop.f32.mrf.mxu0
  %v1777 = vadd.f32 0.0, %v1776
  %1778 = vdwg.mxu0
  %1779 = vrot.lane.b32.xlu0 %v981, 64
  %v1780 = vpop.permute.xlu0 %1779
  %1781 = vrot.lane.b32.xlu0 %v982, 64
  %v1782 = vpop.permute.xlu0 %1781
  %1783 = vrot.lane.b32.xlu0 %v983, 64
  %v1784 = vpop.permute.xlu0 %1783
  %1785 = vrot.lane.b32.xlu0 %v984, 64
  %v1786 = vpop.permute.xlu0 %1785
  %1787 = vrot.lane.b32.xlu0 %v985, 64
  %v1788 = vpop.permute.xlu0 %1787
  %1789 = vrot.lane.b32.xlu0 %v986, 64
  %v1790 = vpop.permute.xlu0 %1789
  %1791 = vrot.lane.b32.xlu0 %v987, 64
  %v1792 = vpop.permute.xlu0 %1791
  %1793 = vrot.lane.b32.xlu0 %v988, 64
  %v1794 = vpop.permute.xlu0 %1793
  %1803 = vmatpush.bf16.msra.mxu0 %v1794
  %1804 = vmatpush.bf16.msra.mxu0 %v1792
  %1805 = vmatpush.bf16.msra.mxu0 %v1790
  %1806 = vmatpush.bf16.msra.mxu0 %v1788
  %1807 = vmatpush.bf16.msra.mxu0 %v1786
  %1808 = vmatpush.bf16.msra.mxu0 %v1784
  %1809 = vmatpush.bf16.msra.mxu0 %v1782
  %1810 = vmatpush.bf16.msra.mxu0 %v1780
  %1811 = vmatmul.bf16.gmra.mxu0 %v1369
  %v1812 = vpop.f32.mrf.mxu0
  %v1813 = vadd.f32 %v1740, %v1812
  %v1814 = vpop.f32.mrf.mxu0
  %v1815 = vadd.f32 %v1742, %v1814
  %1816 = vmatmul.bf16.gmra.mxu0 %v1370
  %v1817 = vpop.f32.mrf.mxu0
  %v1818 = vadd.f32 %v1745, %v1817
  %v1819 = vpop.f32.mrf.mxu0
  %v1820 = vadd.f32 %v1747, %v1819
  %1821 = vmatmul.bf16.gmra.mxu0 %v1371
  %v1822 = vpop.f32.mrf.mxu0
  %v1823 = vadd.f32 %v1750, %v1822
  %v1824 = vpop.f32.mrf.mxu0
  %v1825 = vadd.f32 %v1752, %v1824
  %1826 = vmatmul.bf16.gmra.mxu0 %v1372
  %v1827 = vpop.f32.mrf.mxu0
  %v1828 = vadd.f32 %v1755, %v1827
  %v1829 = vpop.f32.mrf.mxu0
  %v1830 = vadd.f32 %v1757, %v1829
  %1831 = vmatmul.bf16.gmra.mxu0 %v1373
  %v1832 = vpop.f32.mrf.mxu0
  %v1833 = vadd.f32 %v1760, %v1832
  %v1834 = vpop.f32.mrf.mxu0
  %v1835 = vadd.f32 %v1762, %v1834
  %1836 = vmatmul.bf16.gmra.mxu0 %v1374
  %v1837 = vpop.f32.mrf.mxu0
  %v1838 = vadd.f32 %v1765, %v1837
  %v1839 = vpop.f32.mrf.mxu0
  %v1840 = vadd.f32 %v1767, %v1839
  %1841 = vmatmul.bf16.gmra.mxu0 %v1375
  %v1842 = vpop.f32.mrf.mxu0
  %v1843 = vadd.f32 %v1770, %v1842
  %v1844 = vpop.f32.mrf.mxu0
  %v1845 = vadd.f32 %v1772, %v1844
  %1846 = vmatmul.bf16.gmra.mxu0 %v1376
  %v1847 = vpop.f32.mrf.mxu0
  %v1848 = vadd.f32 %v1775, %v1847
  %v1849 = vpop.f32.mrf.mxu0
  %v1850 = vadd.f32 %v1777, %v1849
  %1851 = vdwg.mxu0
  %1868 = vrot.lane.b32.xlu0 %v1813, 64
  %v1869 = vpop.permute.xlu0 %1868
  %1870 = vrot.lane.b32.xlu0 %v1815, 64
  %v1871 = vpop.permute.xlu0 %1870
  %1872 = vrot.lane.b32.xlu0 %v1818, 64
  %v1873 = vpop.permute.xlu0 %1872
  %1874 = vrot.lane.b32.xlu0 %v1820, 64
  %v1875 = vpop.permute.xlu0 %1874
  %1876 = vrot.lane.b32.xlu0 %v1823, 64
  %v1877 = vpop.permute.xlu0 %1876
  %1878 = vrot.lane.b32.xlu0 %v1825, 64
  %v1879 = vpop.permute.xlu0 %1878
  %1880 = vrot.lane.b32.xlu0 %v1828, 64
  %v1881 = vpop.permute.xlu0 %1880
  %1882 = vrot.lane.b32.xlu0 %v1830, 64
  %v1883 = vpop.permute.xlu0 %1882
  %1884 = vrot.lane.b32.xlu0 %v1833, 64
  %v1885 = vpop.permute.xlu0 %1884
  %1886 = vrot.lane.b32.xlu0 %v1835, 64
  %v1887 = vpop.permute.xlu0 %1886
  %1888 = vrot.lane.b32.xlu0 %v1838, 64
  %v1889 = vpop.permute.xlu0 %1888
  %1890 = vrot.lane.b32.xlu0 %v1840, 64
  %v1891 = vpop.permute.xlu0 %1890
  %1892 = vrot.lane.b32.xlu0 %v1843, 64
  %v1893 = vpop.permute.xlu0 %1892
  %1894 = vrot.lane.b32.xlu0 %v1845, 64
  %v1895 = vpop.permute.xlu0 %1894
  %1896 = vrot.lane.b32.xlu0 %v1848, 64
  %v1897 = vpop.permute.xlu0 %1896
  %1898 = vrot.lane.b32.xlu0 %v1850, 64
  %v1899 = vpop.permute.xlu0 %1898
  %vm1916 = vcmask 523264
  %v1917 = vsel %vm1916, %v1007, %v1869
  %v1918 = vsel %vm1916, %v1009, %v1871
  %v1919 = vsel %vm1916, %v1012, %v1873
  %v1920 = vsel %vm1916, %v1014, %v1875
  %v1921 = vsel %vm1916, %v1017, %v1877
  %v1922 = vsel %vm1916, %v1019, %v1879
  %v1923 = vsel %vm1916, %v1022, %v1881
  %v1924 = vsel %vm1916, %v1024, %v1883
  %v1925 = vsel %vm1916, %v1027, %v1885
  %v1926 = vsel %vm1916, %v1029, %v1887
  %v1927 = vsel %vm1916, %v1032, %v1889
  %v1928 = vsel %vm1916, %v1034, %v1891
  %v1929 = vsel %vm1916, %v1037, %v1893
  %v1930 = vsel %vm1916, %v1039, %v1895
  %v1931 = vsel %vm1916, %v1042, %v1897
  %v1932 = vsel %vm1916, %v1044, %v1899
  %v1933 = vld [vmem:[%s7] sm:$0x1]
  %v1935 = vperm.slane %v1933, 0
  %v1937 = vadd.f32 %v1917, %v1935
  %v1938 = vadd.f32 %v1918, %v1935
  %v1939 = vadd.f32 %v1919, %v1935
  %v1940 = vadd.f32 %v1920, %v1935
  %v1941 = vadd.f32 %v1921, %v1935
  %v1942 = vadd.f32 %v1922, %v1935
  %v1943 = vadd.f32 %v1923, %v1935
  %v1944 = vadd.f32 %v1924, %v1935
  %v1945 = vadd.f32 %v1925, %v1935
  %v1946 = vadd.f32 %v1926, %v1935
  %v1947 = vadd.f32 %v1927, %v1935
  %v1948 = vadd.f32 %v1928, %v1935
  %v1949 = vadd.f32 %v1929, %v1935
  %v1950 = vadd.f32 %v1930, %v1935
  %v1951 = vadd.f32 %v1931, %v1935
  %v1952 = vadd.f32 %v1932, %v1935
  %v1953 = vpack.c.bf16 %v1938, %v1937
  %v1954 = vpack.c.bf16 %v1940, %v1939
  %v1955 = vpack.c.bf16 %v1942, %v1941
  %v1956 = vpack.c.bf16 %v1944, %v1943
  %v1957 = vpack.c.bf16 %v1946, %v1945
  %v1958 = vpack.c.bf16 %v1948, %v1947
  %v1959 = vpack.c.bf16 %v1950, %v1949
  %v1960 = vpack.c.bf16 %v1952, %v1951
  %v1961 = vld [vmem:[%s8] sm:$0xff]
  %v1962 = vld [vmem:[%s8 + $0x8] sm:$0xff]
  %v1963 = vld [vmem:[%s8 + $0x10] sm:$0xff]
  %v1964 = vld [vmem:[%s8 + $0x18] sm:$0xff]
  %v1965 = vld [vmem:[%s8 + $0x20] sm:$0xff]
  %v1966 = vld [vmem:[%s8 + $0x28] sm:$0xff]
  %v1967 = vld [vmem:[%s8 + $0x30] sm:$0xff]
  %v1968 = vld [vmem:[%s8 + $0x38] sm:$0xff]
  %v1969 = vld [vmem:[%s8 + $0x40] sm:$0xff]
  %v1970 = vld [vmem:[%s8 + $0x48] sm:$0xff]
  %v1971 = vld [vmem:[%s8 + $0x50] sm:$0xff]
  %v1972 = vld [vmem:[%s8 + $0x58] sm:$0xff]
  %v1973 = vld [vmem:[%s8 + $0x60] sm:$0xff]
  %v1974 = vld [vmem:[%s8 + $0x68] sm:$0xff]
  %v1975 = vld [vmem:[%s8 + $0x70] sm:$0xff]
  %v1976 = vld [vmem:[%s8 + $0x78] sm:$0xff]
  %v1993 = vunpack.c.l.b16 %v1961
  %v1994 = vunpack.c.h.b16 %v1961
  %v1995 = vunpack.c.l.b16 %v1962
  %v1996 = vunpack.c.h.b16 %v1962
  %v1997 = vunpack.c.l.b16 %v1963
  %v1998 = vunpack.c.h.b16 %v1963
  %v1999 = vunpack.c.l.b16 %v1964
  %v2000 = vunpack.c.h.b16 %v1964
  %v2001 = vunpack.c.l.b16 %v1965
  %v2002 = vunpack.c.h.b16 %v1965
  %v2003 = vunpack.c.l.b16 %v1966
  %v2004 = vunpack.c.h.b16 %v1966
  %v2005 = vunpack.c.l.b16 %v1967
  %v2006 = vunpack.c.h.b16 %v1967
  %v2007 = vunpack.c.l.b16 %v1968
  %v2008 = vunpack.c.h.b16 %v1968
  %v2009 = vunpack.c.l.b16 %v1969
  %v2010 = vunpack.c.h.b16 %v1969
  %v2011 = vunpack.c.l.b16 %v1970
  %v2012 = vunpack.c.h.b16 %v1970
  %v2013 = vunpack.c.l.b16 %v1971
  %v2014 = vunpack.c.h.b16 %v1971
  %v2015 = vunpack.c.l.b16 %v1972
  %v2016 = vunpack.c.h.b16 %v1972
  %v2017 = vunpack.c.l.b16 %v1973
  %v2018 = vunpack.c.h.b16 %v1973
  %v2019 = vunpack.c.l.b16 %v1974
  %v2020 = vunpack.c.h.b16 %v1974
  %v2021 = vunpack.c.l.b16 %v1975
  %v2022 = vunpack.c.h.b16 %v1975
  %v2023 = vunpack.c.l.b16 %v1976
  %v2024 = vunpack.c.h.b16 %v1976
  %v2025 = vpack.c.b16 %v1995, %v1993
  %v2026 = vpack.c.b16 %v1996, %v1994
  %v2027 = vpack.c.b16 %v1999, %v1997
  %v2028 = vpack.c.b16 %v2000, %v1998
  %v2029 = vpack.c.b16 %v2003, %v2001
  %v2030 = vpack.c.b16 %v2004, %v2002
  %v2031 = vpack.c.b16 %v2007, %v2005
  %v2032 = vpack.c.b16 %v2008, %v2006
  %v2033 = vpack.c.b16 %v2011, %v2009
  %v2034 = vpack.c.b16 %v2012, %v2010
  %v2035 = vpack.c.b16 %v2015, %v2013
  %v2036 = vpack.c.b16 %v2016, %v2014
  %v2037 = vpack.c.b16 %v2019, %v2017
  %v2038 = vpack.c.b16 %v2020, %v2018
  %v2039 = vpack.c.b16 %v2023, %v2021
  %v2040 = vpack.c.b16 %v2024, %v2022
  %2057 = vmatpush.bf16.msra.mxu0 %v2039
  %2058 = vmatpush.bf16.msra.mxu0 %v2037
  %2059 = vmatpush.bf16.msra.mxu0 %v2035
  %2060 = vmatpush.bf16.msra.mxu0 %v2033
  %2061 = vmatpush.bf16.msra.mxu0 %v2031
  %2062 = vmatpush.bf16.msra.mxu0 %v2029
  %2063 = vmatpush.bf16.msra.mxu0 %v2027
  %2064 = vmatpush.bf16.msra.mxu0 %v2025
  %2065 = vmatmul.bf16.gmra.mxu0 %v1953
  %v2066 = vpop.f32.mrf.mxu0
  %v2067 = vadd.f32 0.0, %v2066
  %v2068 = vpop.f32.mrf.mxu0
  %v2069 = vadd.f32 0.0, %v2068
  %2070 = vmatmul.bf16.gmra.mxu0 %v1954
  %v2071 = vpop.f32.mrf.mxu0
  %v2072 = vadd.f32 0.0, %v2071
  %v2073 = vpop.f32.mrf.mxu0
  %v2074 = vadd.f32 0.0, %v2073
  %2075 = vmatmul.bf16.gmra.mxu0 %v1955
  %v2076 = vpop.f32.mrf.mxu0
  %v2077 = vadd.f32 0.0, %v2076
  %v2078 = vpop.f32.mrf.mxu0
  %v2079 = vadd.f32 0.0, %v2078
  %2080 = vmatmul.bf16.gmra.mxu0 %v1956
  %v2081 = vpop.f32.mrf.mxu0
  %v2082 = vadd.f32 0.0, %v2081
  %v2083 = vpop.f32.mrf.mxu0
  %v2084 = vadd.f32 0.0, %v2083
  %2085 = vmatmul.bf16.gmra.mxu0 %v1957
  %v2086 = vpop.f32.mrf.mxu0
  %v2087 = vadd.f32 0.0, %v2086
  %v2088 = vpop.f32.mrf.mxu0
  %v2089 = vadd.f32 0.0, %v2088
  %2090 = vmatmul.bf16.gmra.mxu0 %v1958
  %v2091 = vpop.f32.mrf.mxu0
  %v2092 = vadd.f32 0.0, %v2091
  %v2093 = vpop.f32.mrf.mxu0
  %v2094 = vadd.f32 0.0, %v2093
  %2095 = vmatmul.bf16.gmra.mxu0 %v1959
  %v2096 = vpop.f32.mrf.mxu0
  %v2097 = vadd.f32 0.0, %v2096
  %v2098 = vpop.f32.mrf.mxu0
  %v2099 = vadd.f32 0.0, %v2098
  %2100 = vmatmul.bf16.gmra.mxu0 %v1960
  %v2101 = vpop.f32.mrf.mxu0
  %v2102 = vadd.f32 0.0, %v2101
  %v2103 = vpop.f32.mrf.mxu0
  %v2104 = vadd.f32 0.0, %v2103
  %2105 = vdwg.mxu0
  %2106 = vmatpush.bf16.msra.mxu0 %v2040
  %2107 = vmatpush.bf16.msra.mxu0 %v2038
  %2108 = vmatpush.bf16.msra.mxu0 %v2036
  %2109 = vmatpush.bf16.msra.mxu0 %v2034
  %2110 = vmatpush.bf16.msra.mxu0 %v2032
  %2111 = vmatpush.bf16.msra.mxu0 %v2030
  %2112 = vmatpush.bf16.msra.mxu0 %v2028
  %2113 = vmatpush.bf16.msra.mxu0 %v2026
  %2114 = vmatmul.bf16.gmra.mxu0 %v1953
  %v2115 = vpop.f32.mrf.mxu0
  %v2116 = vadd.f32 0.0, %v2115
  %v2117 = vpop.f32.mrf.mxu0
  %v2118 = vadd.f32 0.0, %v2117
  %2119 = vmatmul.bf16.gmra.mxu0 %v1954
  %v2120 = vpop.f32.mrf.mxu0
  %v2121 = vadd.f32 0.0, %v2120
  %v2122 = vpop.f32.mrf.mxu0
  %v2123 = vadd.f32 0.0, %v2122
  %2124 = vmatmul.bf16.gmra.mxu0 %v1955
  %v2125 = vpop.f32.mrf.mxu0
  %v2126 = vadd.f32 0.0, %v2125
  %v2127 = vpop.f32.mrf.mxu0
  %v2128 = vadd.f32 0.0, %v2127
  %2129 = vmatmul.bf16.gmra.mxu0 %v1956
  %v2130 = vpop.f32.mrf.mxu0
  %v2131 = vadd.f32 0.0, %v2130
  %v2132 = vpop.f32.mrf.mxu0
  %v2133 = vadd.f32 0.0, %v2132
  %2134 = vmatmul.bf16.gmra.mxu0 %v1957
  %v2135 = vpop.f32.mrf.mxu0
  %v2136 = vadd.f32 0.0, %v2135
  %v2137 = vpop.f32.mrf.mxu0
  %v2138 = vadd.f32 0.0, %v2137
  %2139 = vmatmul.bf16.gmra.mxu0 %v1958
  %v2140 = vpop.f32.mrf.mxu0
  %v2141 = vadd.f32 0.0, %v2140
  %v2142 = vpop.f32.mrf.mxu0
  %v2143 = vadd.f32 0.0, %v2142
  %2144 = vmatmul.bf16.gmra.mxu0 %v1959
  %v2145 = vpop.f32.mrf.mxu0
  %v2146 = vadd.f32 0.0, %v2145
  %v2147 = vpop.f32.mrf.mxu0
  %v2148 = vadd.f32 0.0, %v2147
  %2149 = vmatmul.bf16.gmra.mxu0 %v1960
  %v2150 = vpop.f32.mrf.mxu0
  %v2151 = vadd.f32 0.0, %v2150
  %v2152 = vpop.f32.mrf.mxu0
  %v2153 = vadd.f32 0.0, %v2152
  %2154 = vdwg.mxu0
  %v2155 = vpack.c.bf16 %v2116, %v2067
  %v2156 = vpack.c.bf16 %v2118, %v2069
  %v2157 = vpack.c.bf16 %v2121, %v2072
  %v2158 = vpack.c.bf16 %v2123, %v2074
  %v2159 = vpack.c.bf16 %v2126, %v2077
  %v2160 = vpack.c.bf16 %v2128, %v2079
  %v2161 = vpack.c.bf16 %v2131, %v2082
  %v2162 = vpack.c.bf16 %v2133, %v2084
  %v2163 = vpack.c.bf16 %v2136, %v2087
  %v2164 = vpack.c.bf16 %v2138, %v2089
  %v2165 = vpack.c.bf16 %v2141, %v2092
  %v2166 = vpack.c.bf16 %v2143, %v2094
  %v2167 = vpack.c.bf16 %v2146, %v2097
  %v2168 = vpack.c.bf16 %v2148, %v2099
  %v2169 = vpack.c.bf16 %v2151, %v2102
  %v2170 = vpack.c.bf16 %v2153, %v2104
  %2171 = vst [vmem:[%s9] sm:$0xff] %v2155
  %2172 = vst [vmem:[%s9 + $0x8] sm:$0xff] %v2156
  %2173 = vst [vmem:[%s9 + $0x10] sm:$0xff] %v2157
  %2174 = vst [vmem:[%s9 + $0x18] sm:$0xff] %v2158
  %2175 = vst [vmem:[%s9 + $0x20] sm:$0xff] %v2159
  %2176 = vst [vmem:[%s9 + $0x28] sm:$0xff] %v2160
  %2177 = vst [vmem:[%s9 + $0x30] sm:$0xff] %v2161
  %2178 = vst [vmem:[%s9 + $0x38] sm:$0xff] %v2162
  %2179 = vst [vmem:[%s9 + $0x40] sm:$0xff] %v2163
  %2180 = vst [vmem:[%s9 + $0x48] sm:$0xff] %v2164
  %2181 = vst [vmem:[%s9 + $0x50] sm:$0xff] %v2165
  %2182 = vst [vmem:[%s9 + $0x58] sm:$0xff] %v2166
  %2183 = vst [vmem:[%s9 + $0x60] sm:$0xff] %v2167
  %2184 = vst [vmem:[%s9 + $0x68] sm:$0xff] %v2168
  %2185 = vst [vmem:[%s9 + $0x70] sm:$0xff] %v2169
  %2186 = vst [vmem:[%s9 + $0x78] sm:$0xff] %v2170
  // Predicated region
  $region38: #{rel_het_graph_forward.7} parent=0 // pred_check
    _
  $region39: #{rel_het_graph_forward.7} parent=0 // pred_check_branch
    %2188 = sbr.rel (0) target = $region41
  $region40: #{rel_het_graph_forward.7} parent=0 // pred_region
    _
  $region41: #{rel_het_graph_forward.7} parent=0 // pred_fallthru
    _
  // Predicated region
  $region42: #{rel_het_graph_forward.7} parent=0 // pred_check
    _
  $region43: #{rel_het_graph_forward.7} parent=0 // pred_check_branch
    %2190 = sbr.rel (0) target = $region45
  $region44: #{rel_het_graph_forward.7} parent=0 // pred_region
    _
  $region45: #{rel_het_graph_forward.7} parent=0 // pred_fallthru
    _

</llo_original>
